<compile_context>
chip_gen: v6e
topology: v6e:2x2x1
jax: 0.10.0
libtpu: 0.0.40
codegen_flags: <defaults>
</compile_context>

<pallas_src>
import jax
import jax.numpy as jnp
from jax.experimental import pallas as pl
from jax.experimental.pallas import tpu as pltpu


# ----------------------------------------------------------------------------
# Fused Pallas kernel
# ----------------------------------------------------------------------------
def _seq2seq_kernel(tf_ref,                 # SMEM (T,) int32 teacher-forcing flags
                    src_f_ref,              # (S, B, 4H) f32  src_emb @ W_ih_fwd + b_fwd
                    src_b_ref,              # (S, B, 4H) f32  src_emb @ W_ih_bwd + b_bwd
                    trg_ref,                # (T, B, 4H) f32  trg_emb @ W_ih_dec + b_dec
                    dec_tab_ref,            # (Vp, 4H)  f32   dec_embed @ W_ih_dec + b_dec (row-padded)
                    whh_f_ref,              # (H, 4H)  encoder fwd recurrent weight
                    whh_b_ref,              # (H, 4H)  encoder bwd recurrent weight
                    whh_d_ref,              # (H, 4H)  decoder recurrent weight
                    out_w_ref,              # (H, Vp)  output projection (col-padded with 0)
                    out_b_ref,              # (1, Vp)  output bias (pad lanes = -1e30)
                    out_ref):               # (T, B, Vp) f32 logits slab (output)
    seq_len, batch, _ = src_f_ref.shape
    trg_len = trg_ref.shape[0]
    hidden = whh_d_ref.shape[0]
    vpad = out_w_ref.shape[1]

    zeros_bh = jnp.zeros((batch, hidden), jnp.float32)

    def cell(x_proj, h, c, whh_ref):
        """One LSTM cell step; input contribution (incl. bias) is precomputed."""
        gates = x_proj + jnp.dot(h, whh_ref[...],
                                 preferred_element_type=jnp.float32)  # (B, 4H)
        sg = jax.nn.sigmoid(gates)          # whole-vreg EUP pass
        th = jnp.tanh(gates)                # whole-vreg EUP pass
        i_g = sg[:, 0 * hidden:1 * hidden]
        f_g = sg[:, 1 * hidden:2 * hidden]
        g_g = th[:, 2 * hidden:3 * hidden]
        o_g = sg[:, 3 * hidden:4 * hidden]
        c_new = f_g * c + i_g * g_g
        h_new = o_g * jnp.tanh(c_new)
        return h_new, c_new

    # ---------------- bidirectional encoder (two independent 128-wide matmuls
    # per step; on v6e/v7x these could be block-diagonal-fused into one
    # (B,2H)x(2H,8H) matmul, kept separate here so v5e pipelines them). -------
    def enc_body(t, carry):
        hf, cf, hb, cb = carry
        hf, cf = cell(src_f_ref[t], hf, cf, whh_f_ref)
        hb, cb = cell(src_b_ref[seq_len - 1 - t], hb, cb, whh_b_ref)
        return hf, cf, hb, cb

    hf, cf, hb, cb = jax.lax.fori_loop(
        0, seq_len, enc_body, (zeros_bh, zeros_bh, zeros_bh, zeros_bh),
        unroll=True)

    # bidirectional combine as in Seq2Seq.forward: average the two directions
    h = (hf + hb) * 0.5
    c = (cf + cb) * 0.5

    # ---------------- decoder -------------------------------------------------
    out_ref[0] = jnp.zeros((batch, vpad), jnp.float32)        # outputs[0] stays 0

    # hoisted out of the (unrolled) loop: lane iota + broadcast bias
    iota_v = jax.lax.broadcasted_iota(jnp.int32, (batch, vpad), 1)
    out_b = jnp.broadcast_to(out_b_ref[...], (batch, vpad))   # pad lanes = -1e30

    def dec_body(t, carry):
        h, c, x_proj = carry
        h, c = cell(x_proj, h, c, whh_d_ref)
        logits = jnp.dot(h, out_w_ref[...],
                         preferred_element_type=jnp.float32) + out_b  # (B, Vp)
        out_ref[t] = logits                                    # lane-dense store

        def teacher(_):
            # teacher forcing: precomputed projection of trg[t] (plain load)
            return trg_ref[t]

        def greedy(_):
            # greedy token = argmax(logits); first-max tie-break like torch.max.
            # Pad lanes are at ~-1e30 so they can never win the max.
            mx = jnp.max(logits, axis=-1, keepdims=True)
            idx = jnp.min(jnp.where(logits == mx, iota_v, vpad),
                          axis=-1, keepdims=True)              # (B, 1) int32
            onehot = (iota_v == idx).astype(jnp.float32)       # (B, Vp)
            # one-hot x (Vp, 4H) fused table: embedding lookup + x-projection
            # + bias in a single MXU pass.
            return jnp.dot(onehot, dec_tab_ref[...],
                           preferred_element_type=jnp.float32)  # (B, 4H)

        x_next = jax.lax.cond(tf_ref[t] == 1, teacher, greedy, None)
        return h, c, x_next

    jax.lax.fori_loop(1, trg_len, dec_body, (h, c, trg_ref[0]), unroll=True)
    # NOTE: the reference's final extra decoder call discards its result, so it
    # is omitted here (pure dead compute; returned outputs are identical).


_VMEM = pl.BlockSpec(memory_space=pltpu.MemorySpace.VMEM)
_SMEM = pl.BlockSpec(memory_space=pltpu.MemorySpace.SMEM)


@jax.jit
def seq2seq_forward(params, src, trg, tf_flags):
    """src: (S, B) int32, trg: (T, B) int32, tf_flags: (T,) int32 coin flips.

    Returns outputs: (T, B, V) f32 with outputs[0] == 0, matching
    Seq2Seq.forward of the reference module.
    """
    _, batch = src.shape
    trg_len = trg.shape[0]
    vocab = params["out_w"].shape[1]
    vpad = ((vocab + 127) // 128) * 128          # lane-dense padded vocab dim

    # One embedding gather per sequence (not per timestep).
    src_emb = jnp.take(params["enc_embed"], src, axis=0)   # (S, B, E)
    trg_emb = jnp.take(params["dec_embed"], trg, axis=0)   # (T, B, E)

    # Hoisted input-to-hidden projections (bias folded in) — batched matmuls,
    # removes the x half of every per-step gate matmul from the serial chain.
    ef, eb, dl = params["enc_fwd"], params["enc_bwd"], params["dec_lstm"]
    src_f_proj = jnp.einsum('sbe,eg->sbg', src_emb, ef["w_ih"]) + ef["b"]
    src_b_proj = jnp.einsum('sbe,eg->sbg', src_emb, eb["w_ih"]) + eb["b"]
    trg_proj = jnp.einsum('tbe,eg->tbg', trg_emb, dl["w_ih"]) + dl["b"]

    # Fused decoder embedding→gates table (V, 4H), row-padded to Vp (pad rows
    # are unreachable because pad logit lanes sit at -1e30).
    dec_tab = jnp.dot(params["dec_embed"], dl["w_ih"]) + dl["b"]
    dec_tab = jnp.pad(dec_tab, ((0, vpad - vocab), (0, 0)))

    # Lane-dense output projection: zero-pad weights, -1e30-pad bias lanes.
    out_w = jnp.pad(params["out_w"], ((0, 0), (0, vpad - vocab)))
    out_b = jnp.pad(params["out_b"], ((0, 0), (0, vpad - vocab)),
                    constant_values=-1e30)

    padded = pl.pallas_call(
        _seq2seq_kernel,
        out_shape=jax.ShapeDtypeStruct((trg_len, batch, vpad), jnp.float32),
        in_specs=[_SMEM] + [_VMEM] * 9,
        out_specs=_VMEM,
    )(
        tf_flags,
        src_f_proj, src_b_proj, trg_proj, dec_tab,
        ef["w_hh"], eb["w_hh"], dl["w_hh"],
        out_w, out_b,
    )
    return padded[:, :, :vocab]


# ----------------------------------------------------------------------------
# Parameter construction (deterministic, synthetic)
# ----------------------------------------------------------------------------
def _init_lstm(key, emb, hidden, scale=0.1):
    k1, k2, k3 = jax.random.split(key, 3)
    return dict(
        w_ih=scale * jax.random.normal(k1, (emb, 4 * hidden), jnp.float32),
        w_hh=scale * jax.random.normal(k2, (hidden, 4 * hidden), jnp.float32),
        b=scale * jax.random.normal(k3, (1, 4 * hidden), jnp.float32),
    )


def make_params(key, src_vocab, trg_vocab, emb, hidden):
    ks = jax.random.split(key, 8)
    return dict(
        enc_embed=0.1 * jax.random.normal(ks[0], (src_vocab, emb), jnp.float32),
        enc_fwd=_init_lstm(ks[1], emb, hidden),
        enc_bwd=_init_lstm(ks[2], emb, hidden),
        dec_embed=0.1 * jax.random.normal(ks[3], (trg_vocab, emb), jnp.float32),
        dec_lstm=_init_lstm(ks[4], emb, hidden),
        out_w=0.1 * jax.random.normal(ks[5], (hidden, trg_vocab), jnp.float32),
        out_b=0.1 * jax.random.normal(ks[6], (1, trg_vocab), jnp.float32),
    )


# ----------------------------------------------------------------------------
if __name__ == "__main__":
    SRC_VOCAB = 32
    TRG_VOCAB = 32
    EMB = 32
    HIDDEN = 32          # 4*HIDDEN = 128 -> gate lane dim is MXU/vreg native
    BATCH = 8
    SRC_LEN = 8
    TRG_LEN = 8
    TEACHER_FORCING_RATIO = 0.5

    key = jax.random.PRNGKey(0)
    k_par, k_src, k_trg, k_tf = jax.random.split(key, 4)

    params = make_params(k_par, SRC_VOCAB, TRG_VOCAB, EMB, HIDDEN)
    src = jax.random.randint(k_src, (SRC_LEN, BATCH), 0, SRC_VOCAB, jnp.int32)
    trg = jax.random.randint(k_trg, (TRG_LEN, BATCH), 0, TRG_VOCAB, jnp.int32)
    # One coin flip per decoder step (matches torch.rand(1) < ratio semantics,
    # drawn after outputs[t] is emitted -> flag t selects input to step t+1).
    tf_flags = (jax.random.uniform(k_tf, (TRG_LEN,))
                < TEACHER_FORCING_RATIO).astype(jnp.int32)

    outputs = seq2seq_forward(params, src, trg, tf_flags)
    jax.block_until_ready(outputs)

    assert outputs.shape == (TRG_LEN, BATCH, TRG_VOCAB)
    assert bool(jnp.all(outputs[0] == 0.0))
    assert bool(jnp.all(jnp.isfinite(outputs)))
    print("KERNEL_OK")
</pallas_src>

<mosaic_0001>
module attributes {stable_mosaic.version = 11 : i64} {
  func.func @_seq2seq_kernel(%arg0: memref<8xi32, #tpu.memory_space<smem>>, %arg1: memref<8x8x128xf32, #tpu.memory_space<vmem>>, %arg2: memref<8x8x128xf32, #tpu.memory_space<vmem>>, %arg3: memref<8x8x128xf32, #tpu.memory_space<vmem>>, %arg4: memref<128x128xf32, #tpu.memory_space<vmem>>, %arg5: memref<32x128xf32, #tpu.memory_space<vmem>>, %arg6: memref<32x128xf32, #tpu.memory_space<vmem>>, %arg7: memref<32x128xf32, #tpu.memory_space<vmem>>, %arg8: memref<32x128xf32, #tpu.memory_space<vmem>>, %arg9: memref<1x128xf32, #tpu.memory_space<vmem>>, %arg10: memref<8x8x128xf32, #tpu.memory_space<vmem>>) attributes {dimension_semantics = [], scalar_prefetch = 0 : i64, scratch_operands = 0 : i64, tpu.core_type = #tpu.core_type<tc>} {
    %cst = arith.constant 0.000000e+00 : f32
    %0 = vector.broadcast %cst : f32 to vector<8x32xf32>
    %c0_i32 = arith.constant 0 : i32
    %1 = arith.index_cast %c0_i32 : i32 to index
    %c0 = arith.constant 0 : index
    %c0_0 = arith.constant 0 : index
    %2 = vector.load %arg1[%1, %c0, %c0_0] : memref<8x8x128xf32, #tpu.memory_space<vmem>>, vector<1x8x128xf32>
    %3 = vector.shape_cast %2 : vector<1x8x128xf32> to vector<8x128xf32>
    %c0_1 = arith.constant 0 : index
    %c0_2 = arith.constant 0 : index
    %4 = vector.load %arg5[%c0_1, %c0_2] : memref<32x128xf32, #tpu.memory_space<vmem>>, vector<32x128xf32>
    %cst_3 = arith.constant dense<0.000000e+00> : vector<8x128xf32>
    %5 = tpu.matmul %0, %4, %cst_3 {dimension_numbers = #tpu.dot_dimension_numbers<[1], [0], [0], [1], [0, 0, 1, 1], [], []>} : vector<8x32xf32>, vector<32x128xf32>, vector<8x128xf32> -> vector<8x128xf32>
    %6 = arith.addf %3, %5 : vector<8x128xf32>
    %7 = arith.negf %6 : vector<8x128xf32>
    %8 = math.exp %7 : vector<8x128xf32>
    %cst_4 = arith.constant 1.000000e+00 : f32
    %9 = vector.broadcast %cst_4 : f32 to vector<8x128xf32>
    %10 = arith.addf %9, %8 : vector<8x128xf32>
    %11 = arith.divf %9, %10 : vector<8x128xf32>
    %12 = math.tanh %6 : vector<8x128xf32>
    %13 = vector.extract_strided_slice %11 {offsets = [0, 0], sizes = [8, 32], strides = [1, 1]} : vector<8x128xf32> to vector<8x32xf32>
    %14 = vector.extract_strided_slice %11 {offsets = [0, 32], sizes = [8, 32], strides = [1, 1]} : vector<8x128xf32> to vector<8x32xf32>
    %15 = vector.extract_strided_slice %12 {offsets = [0, 64], sizes = [8, 32], strides = [1, 1]} : vector<8x128xf32> to vector<8x32xf32>
    %16 = vector.extract_strided_slice %11 {offsets = [0, 96], sizes = [8, 32], strides = [1, 1]} : vector<8x128xf32> to vector<8x32xf32>
    %17 = arith.mulf %14, %0 : vector<8x32xf32>
    %18 = arith.mulf %13, %15 : vector<8x32xf32>
    %19 = arith.addf %17, %18 : vector<8x32xf32>
    %20 = math.tanh %19 : vector<8x32xf32>
    %21 = arith.mulf %16, %20 : vector<8x32xf32>
    %c7_i32 = arith.constant 7 : i32
    %22 = arith.subi %c7_i32, %c0_i32 : i32
    %23 = arith.index_cast %22 : i32 to index
    %c0_5 = arith.constant 0 : index
    %c0_6 = arith.constant 0 : index
    %24 = vector.load %arg2[%23, %c0_5, %c0_6] : memref<8x8x128xf32, #tpu.memory_space<vmem>>, vector<1x8x128xf32>
    %25 = vector.shape_cast %24 : vector<1x8x128xf32> to vector<8x128xf32>
    %c0_7 = arith.constant 0 : index
    %c0_8 = arith.constant 0 : index
    %26 = vector.load %arg6[%c0_7, %c0_8] : memref<32x128xf32, #tpu.memory_space<vmem>>, vector<32x128xf32>
    %cst_9 = arith.constant dense<0.000000e+00> : vector<8x128xf32>
    %27 = tpu.matmul %0, %26, %cst_9 {dimension_numbers = #tpu.dot_dimension_numbers<[1], [0], [0], [1], [0, 0, 1, 1], [], []>} : vector<8x32xf32>, vector<32x128xf32>, vector<8x128xf32> -> vector<8x128xf32>
    %28 = arith.addf %25, %27 : vector<8x128xf32>
    %29 = arith.negf %28 : vector<8x128xf32>
    %30 = math.exp %29 : vector<8x128xf32>
    %cst_10 = arith.constant 1.000000e+00 : f32
    %31 = vector.broadcast %cst_10 : f32 to vector<8x128xf32>
    %32 = arith.addf %31, %30 : vector<8x128xf32>
    %33 = arith.divf %31, %32 : vector<8x128xf32>
    %34 = math.tanh %28 : vector<8x128xf32>
    %35 = vector.extract_strided_slice %33 {offsets = [0, 0], sizes = [8, 32], strides = [1, 1]} : vector<8x128xf32> to vector<8x32xf32>
    %36 = vector.extract_strided_slice %33 {offsets = [0, 32], sizes = [8, 32], strides = [1, 1]} : vector<8x128xf32> to vector<8x32xf32>
    %37 = vector.extract_strided_slice %34 {offsets = [0, 64], sizes = [8, 32], strides = [1, 1]} : vector<8x128xf32> to vector<8x32xf32>
    %38 = vector.extract_strided_slice %33 {offsets = [0, 96], sizes = [8, 32], strides = [1, 1]} : vector<8x128xf32> to vector<8x32xf32>
    %39 = arith.mulf %36, %0 : vector<8x32xf32>
    %40 = arith.mulf %35, %37 : vector<8x32xf32>
    %41 = arith.addf %39, %40 : vector<8x32xf32>
    %42 = math.tanh %41 : vector<8x32xf32>
    %43 = arith.mulf %38, %42 : vector<8x32xf32>
    %c1_i32 = arith.constant 1 : i32
    %44 = arith.index_cast %c1_i32 : i32 to index
    %c0_11 = arith.constant 0 : index
    %c0_12 = arith.constant 0 : index
    %45 = vector.load %arg1[%44, %c0_11, %c0_12] : memref<8x8x128xf32, #tpu.memory_space<vmem>>, vector<1x8x128xf32>
    %46 = vector.shape_cast %45 : vector<1x8x128xf32> to vector<8x128xf32>
    %c0_13 = arith.constant 0 : index
    %c0_14 = arith.constant 0 : index
    %47 = vector.load %arg5[%c0_13, %c0_14] : memref<32x128xf32, #tpu.memory_space<vmem>>, vector<32x128xf32>
    %cst_15 = arith.constant dense<0.000000e+00> : vector<8x128xf32>
    %48 = tpu.matmul %21, %47, %cst_15 {dimension_numbers = #tpu.dot_dimension_numbers<[1], [0], [0], [1], [0, 0, 1, 1], [], []>} : vector<8x32xf32>, vector<32x128xf32>, vector<8x128xf32> -> vector<8x128xf32>
    %49 = arith.addf %46, %48 : vector<8x128xf32>
    %50 = arith.negf %49 : vector<8x128xf32>
    %51 = math.exp %50 : vector<8x128xf32>
    %cst_16 = arith.constant 1.000000e+00 : f32
    %52 = vector.broadcast %cst_16 : f32 to vector<8x128xf32>
    %53 = arith.addf %52, %51 : vector<8x128xf32>
    %54 = arith.divf %52, %53 : vector<8x128xf32>
    %55 = math.tanh %49 : vector<8x128xf32>
    %56 = vector.extract_strided_slice %54 {offsets = [0, 0], sizes = [8, 32], strides = [1, 1]} : vector<8x128xf32> to vector<8x32xf32>
    %57 = vector.extract_strided_slice %54 {offsets = [0, 32], sizes = [8, 32], strides = [1, 1]} : vector<8x128xf32> to vector<8x32xf32>
    %58 = vector.extract_strided_slice %55 {offsets = [0, 64], sizes = [8, 32], strides = [1, 1]} : vector<8x128xf32> to vector<8x32xf32>
    %59 = vector.extract_strided_slice %54 {offsets = [0, 96], sizes = [8, 32], strides = [1, 1]} : vector<8x128xf32> to vector<8x32xf32>
    %60 = arith.mulf %57, %19 : vector<8x32xf32>
    %61 = arith.mulf %56, %58 : vector<8x32xf32>
    %62 = arith.addf %60, %61 : vector<8x32xf32>
    %63 = math.tanh %62 : vector<8x32xf32>
    %64 = arith.mulf %59, %63 : vector<8x32xf32>
    %c7_i32_17 = arith.constant 7 : i32
    %65 = arith.subi %c7_i32_17, %c1_i32 : i32
    %66 = arith.index_cast %65 : i32 to index
    %c0_18 = arith.constant 0 : index
    %c0_19 = arith.constant 0 : index
    %67 = vector.load %arg2[%66, %c0_18, %c0_19] : memref<8x8x128xf32, #tpu.memory_space<vmem>>, vector<1x8x128xf32>
    %68 = vector.shape_cast %67 : vector<1x8x128xf32> to vector<8x128xf32>
    %c0_20 = arith.constant 0 : index
    %c0_21 = arith.constant 0 : index
    %69 = vector.load %arg6[%c0_20, %c0_21] : memref<32x128xf32, #tpu.memory_space<vmem>>, vector<32x128xf32>
    %cst_22 = arith.constant dense<0.000000e+00> : vector<8x128xf32>
    %70 = tpu.matmul %43, %69, %cst_22 {dimension_numbers = #tpu.dot_dimension_numbers<[1], [0], [0], [1], [0, 0, 1, 1], [], []>} : vector<8x32xf32>, vector<32x128xf32>, vector<8x128xf32> -> vector<8x128xf32>
    %71 = arith.addf %68, %70 : vector<8x128xf32>
    %72 = arith.negf %71 : vector<8x128xf32>
    %73 = math.exp %72 : vector<8x128xf32>
    %cst_23 = arith.constant 1.000000e+00 : f32
    %74 = vector.broadcast %cst_23 : f32 to vector<8x128xf32>
    %75 = arith.addf %74, %73 : vector<8x128xf32>
    %76 = arith.divf %74, %75 : vector<8x128xf32>
    %77 = math.tanh %71 : vector<8x128xf32>
    %78 = vector.extract_strided_slice %76 {offsets = [0, 0], sizes = [8, 32], strides = [1, 1]} : vector<8x128xf32> to vector<8x32xf32>
    %79 = vector.extract_strided_slice %76 {offsets = [0, 32], sizes = [8, 32], strides = [1, 1]} : vector<8x128xf32> to vector<8x32xf32>
    %80 = vector.extract_strided_slice %77 {offsets = [0, 64], sizes = [8, 32], strides = [1, 1]} : vector<8x128xf32> to vector<8x32xf32>
    %81 = vector.extract_strided_slice %76 {offsets = [0, 96], sizes = [8, 32], strides = [1, 1]} : vector<8x128xf32> to vector<8x32xf32>
    %82 = arith.mulf %79, %41 : vector<8x32xf32>
    %83 = arith.mulf %78, %80 : vector<8x32xf32>
    %84 = arith.addf %82, %83 : vector<8x32xf32>
    %85 = math.tanh %84 : vector<8x32xf32>
    %86 = arith.mulf %81, %85 : vector<8x32xf32>
    %c2_i32 = arith.constant 2 : i32
    %87 = arith.index_cast %c2_i32 : i32 to index
    %c0_24 = arith.constant 0 : index
    %c0_25 = arith.constant 0 : index
    %88 = vector.load %arg1[%87, %c0_24, %c0_25] : memref<8x8x128xf32, #tpu.memory_space<vmem>>, vector<1x8x128xf32>
    %89 = vector.shape_cast %88 : vector<1x8x128xf32> to vector<8x128xf32>
    %c0_26 = arith.constant 0 : index
    %c0_27 = arith.constant 0 : index
    %90 = vector.load %arg5[%c0_26, %c0_27] : memref<32x128xf32, #tpu.memory_space<vmem>>, vector<32x128xf32>
    %cst_28 = arith.constant dense<0.000000e+00> : vector<8x128xf32>
    %91 = tpu.matmul %64, %90, %cst_28 {dimension_numbers = #tpu.dot_dimension_numbers<[1], [0], [0], [1], [0, 0, 1, 1], [], []>} : vector<8x32xf32>, vector<32x128xf32>, vector<8x128xf32> -> vector<8x128xf32>
    %92 = arith.addf %89, %91 : vector<8x128xf32>
    %93 = arith.negf %92 : vector<8x128xf32>
    %94 = math.exp %93 : vector<8x128xf32>
    %cst_29 = arith.constant 1.000000e+00 : f32
    %95 = vector.broadcast %cst_29 : f32 to vector<8x128xf32>
    %96 = arith.addf %95, %94 : vector<8x128xf32>
    %97 = arith.divf %95, %96 : vector<8x128xf32>
    %98 = math.tanh %92 : vector<8x128xf32>
    %99 = vector.extract_strided_slice %97 {offsets = [0, 0], sizes = [8, 32], strides = [1, 1]} : vector<8x128xf32> to vector<8x32xf32>
    %100 = vector.extract_strided_slice %97 {offsets = [0, 32], sizes = [8, 32], strides = [1, 1]} : vector<8x128xf32> to vector<8x32xf32>
    %101 = vector.extract_strided_slice %98 {offsets = [0, 64], sizes = [8, 32], strides = [1, 1]} : vector<8x128xf32> to vector<8x32xf32>
    %102 = vector.extract_strided_slice %97 {offsets = [0, 96], sizes = [8, 32], strides = [1, 1]} : vector<8x128xf32> to vector<8x32xf32>
    %103 = arith.mulf %100, %62 : vector<8x32xf32>
    %104 = arith.mulf %99, %101 : vector<8x32xf32>
    %105 = arith.addf %103, %104 : vector<8x32xf32>
    %106 = math.tanh %105 : vector<8x32xf32>
    %107 = arith.mulf %102, %106 : vector<8x32xf32>
    %c7_i32_30 = arith.constant 7 : i32
    %108 = arith.subi %c7_i32_30, %c2_i32 : i32
    %109 = arith.index_cast %108 : i32 to index
    %c0_31 = arith.constant 0 : index
    %c0_32 = arith.constant 0 : index
    %110 = vector.load %arg2[%109, %c0_31, %c0_32] : memref<8x8x128xf32, #tpu.memory_space<vmem>>, vector<1x8x128xf32>
    %111 = vector.shape_cast %110 : vector<1x8x128xf32> to vector<8x128xf32>
    %c0_33 = arith.constant 0 : index
    %c0_34 = arith.constant 0 : index
    %112 = vector.load %arg6[%c0_33, %c0_34] : memref<32x128xf32, #tpu.memory_space<vmem>>, vector<32x128xf32>
    %cst_35 = arith.constant dense<0.000000e+00> : vector<8x128xf32>
    %113 = tpu.matmul %86, %112, %cst_35 {dimension_numbers = #tpu.dot_dimension_numbers<[1], [0], [0], [1], [0, 0, 1, 1], [], []>} : vector<8x32xf32>, vector<32x128xf32>, vector<8x128xf32> -> vector<8x128xf32>
    %114 = arith.addf %111, %113 : vector<8x128xf32>
    %115 = arith.negf %114 : vector<8x128xf32>
    %116 = math.exp %115 : vector<8x128xf32>
    %cst_36 = arith.constant 1.000000e+00 : f32
    %117 = vector.broadcast %cst_36 : f32 to vector<8x128xf32>
    %118 = arith.addf %117, %116 : vector<8x128xf32>
    %119 = arith.divf %117, %118 : vector<8x128xf32>
    %120 = math.tanh %114 : vector<8x128xf32>
    %121 = vector.extract_strided_slice %119 {offsets = [0, 0], sizes = [8, 32], strides = [1, 1]} : vector<8x128xf32> to vector<8x32xf32>
    %122 = vector.extract_strided_slice %119 {offsets = [0, 32], sizes = [8, 32], strides = [1, 1]} : vector<8x128xf32> to vector<8x32xf32>
    %123 = vector.extract_strided_slice %120 {offsets = [0, 64], sizes = [8, 32], strides = [1, 1]} : vector<8x128xf32> to vector<8x32xf32>
    %124 = vector.extract_strided_slice %119 {offsets = [0, 96], sizes = [8, 32], strides = [1, 1]} : vector<8x128xf32> to vector<8x32xf32>
    %125 = arith.mulf %122, %84 : vector<8x32xf32>
    %126 = arith.mulf %121, %123 : vector<8x32xf32>
    %127 = arith.addf %125, %126 : vector<8x32xf32>
    %128 = math.tanh %127 : vector<8x32xf32>
    %129 = arith.mulf %124, %128 : vector<8x32xf32>
    %c3_i32 = arith.constant 3 : i32
    %130 = arith.index_cast %c3_i32 : i32 to index
    %c0_37 = arith.constant 0 : index
    %c0_38 = arith.constant 0 : index
    %131 = vector.load %arg1[%130, %c0_37, %c0_38] : memref<8x8x128xf32, #tpu.memory_space<vmem>>, vector<1x8x128xf32>
    %132 = vector.shape_cast %131 : vector<1x8x128xf32> to vector<8x128xf32>
    %c0_39 = arith.constant 0 : index
    %c0_40 = arith.constant 0 : index
    %133 = vector.load %arg5[%c0_39, %c0_40] : memref<32x128xf32, #tpu.memory_space<vmem>>, vector<32x128xf32>
    %cst_41 = arith.constant dense<0.000000e+00> : vector<8x128xf32>
    %134 = tpu.matmul %107, %133, %cst_41 {dimension_numbers = #tpu.dot_dimension_numbers<[1], [0], [0], [1], [0, 0, 1, 1], [], []>} : vector<8x32xf32>, vector<32x128xf32>, vector<8x128xf32> -> vector<8x128xf32>
    %135 = arith.addf %132, %134 : vector<8x128xf32>
    %136 = arith.negf %135 : vector<8x128xf32>
    %137 = math.exp %136 : vector<8x128xf32>
    %cst_42 = arith.constant 1.000000e+00 : f32
    %138 = vector.broadcast %cst_42 : f32 to vector<8x128xf32>
    %139 = arith.addf %138, %137 : vector<8x128xf32>
    %140 = arith.divf %138, %139 : vector<8x128xf32>
    %141 = math.tanh %135 : vector<8x128xf32>
    %142 = vector.extract_strided_slice %140 {offsets = [0, 0], sizes = [8, 32], strides = [1, 1]} : vector<8x128xf32> to vector<8x32xf32>
    %143 = vector.extract_strided_slice %140 {offsets = [0, 32], sizes = [8, 32], strides = [1, 1]} : vector<8x128xf32> to vector<8x32xf32>
    %144 = vector.extract_strided_slice %141 {offsets = [0, 64], sizes = [8, 32], strides = [1, 1]} : vector<8x128xf32> to vector<8x32xf32>
    %145 = vector.extract_strided_slice %140 {offsets = [0, 96], sizes = [8, 32], strides = [1, 1]} : vector<8x128xf32> to vector<8x32xf32>
    %146 = arith.mulf %143, %105 : vector<8x32xf32>
    %147 = arith.mulf %142, %144 : vector<8x32xf32>
    %148 = arith.addf %146, %147 : vector<8x32xf32>
    %149 = math.tanh %148 : vector<8x32xf32>
    %150 = arith.mulf %145, %149 : vector<8x32xf32>
    %c7_i32_43 = arith.constant 7 : i32
    %151 = arith.subi %c7_i32_43, %c3_i32 : i32
    %152 = arith.index_cast %151 : i32 to index
    %c0_44 = arith.constant 0 : index
    %c0_45 = arith.constant 0 : index
    %153 = vector.load %arg2[%152, %c0_44, %c0_45] : memref<8x8x128xf32, #tpu.memory_space<vmem>>, vector<1x8x128xf32>
    %154 = vector.shape_cast %153 : vector<1x8x128xf32> to vector<8x128xf32>
    %c0_46 = arith.constant 0 : index
    %c0_47 = arith.constant 0 : index
    %155 = vector.load %arg6[%c0_46, %c0_47] : memref<32x128xf32, #tpu.memory_space<vmem>>, vector<32x128xf32>
    %cst_48 = arith.constant dense<0.000000e+00> : vector<8x128xf32>
    %156 = tpu.matmul %129, %155, %cst_48 {dimension_numbers = #tpu.dot_dimension_numbers<[1], [0], [0], [1], [0, 0, 1, 1], [], []>} : vector<8x32xf32>, vector<32x128xf32>, vector<8x128xf32> -> vector<8x128xf32>
    %157 = arith.addf %154, %156 : vector<8x128xf32>
    %158 = arith.negf %157 : vector<8x128xf32>
    %159 = math.exp %158 : vector<8x128xf32>
    %cst_49 = arith.constant 1.000000e+00 : f32
    %160 = vector.broadcast %cst_49 : f32 to vector<8x128xf32>
    %161 = arith.addf %160, %159 : vector<8x128xf32>
    %162 = arith.divf %160, %161 : vector<8x128xf32>
    %163 = math.tanh %157 : vector<8x128xf32>
    %164 = vector.extract_strided_slice %162 {offsets = [0, 0], sizes = [8, 32], strides = [1, 1]} : vector<8x128xf32> to vector<8x32xf32>
    %165 = vector.extract_strided_slice %162 {offsets = [0, 32], sizes = [8, 32], strides = [1, 1]} : vector<8x128xf32> to vector<8x32xf32>
    %166 = vector.extract_strided_slice %163 {offsets = [0, 64], sizes = [8, 32], strides = [1, 1]} : vector<8x128xf32> to vector<8x32xf32>
    %167 = vector.extract_strided_slice %162 {offsets = [0, 96], sizes = [8, 32], strides = [1, 1]} : vector<8x128xf32> to vector<8x32xf32>
    %168 = arith.mulf %165, %127 : vector<8x32xf32>
    %169 = arith.mulf %164, %166 : vector<8x32xf32>
    %170 = arith.addf %168, %169 : vector<8x32xf32>
    %171 = math.tanh %170 : vector<8x32xf32>
    %172 = arith.mulf %167, %171 : vector<8x32xf32>
    %c4_i32 = arith.constant 4 : i32
    %173 = arith.index_cast %c4_i32 : i32 to index
    %c0_50 = arith.constant 0 : index
    %c0_51 = arith.constant 0 : index
    %174 = vector.load %arg1[%173, %c0_50, %c0_51] : memref<8x8x128xf32, #tpu.memory_space<vmem>>, vector<1x8x128xf32>
    %175 = vector.shape_cast %174 : vector<1x8x128xf32> to vector<8x128xf32>
    %c0_52 = arith.constant 0 : index
    %c0_53 = arith.constant 0 : index
    %176 = vector.load %arg5[%c0_52, %c0_53] : memref<32x128xf32, #tpu.memory_space<vmem>>, vector<32x128xf32>
    %cst_54 = arith.constant dense<0.000000e+00> : vector<8x128xf32>
    %177 = tpu.matmul %150, %176, %cst_54 {dimension_numbers = #tpu.dot_dimension_numbers<[1], [0], [0], [1], [0, 0, 1, 1], [], []>} : vector<8x32xf32>, vector<32x128xf32>, vector<8x128xf32> -> vector<8x128xf32>
    %178 = arith.addf %175, %177 : vector<8x128xf32>
    %179 = arith.negf %178 : vector<8x128xf32>
    %180 = math.exp %179 : vector<8x128xf32>
    %cst_55 = arith.constant 1.000000e+00 : f32
    %181 = vector.broadcast %cst_55 : f32 to vector<8x128xf32>
    %182 = arith.addf %181, %180 : vector<8x128xf32>
    %183 = arith.divf %181, %182 : vector<8x128xf32>
    %184 = math.tanh %178 : vector<8x128xf32>
    %185 = vector.extract_strided_slice %183 {offsets = [0, 0], sizes = [8, 32], strides = [1, 1]} : vector<8x128xf32> to vector<8x32xf32>
    %186 = vector.extract_strided_slice %183 {offsets = [0, 32], sizes = [8, 32], strides = [1, 1]} : vector<8x128xf32> to vector<8x32xf32>
    %187 = vector.extract_strided_slice %184 {offsets = [0, 64], sizes = [8, 32], strides = [1, 1]} : vector<8x128xf32> to vector<8x32xf32>
    %188 = vector.extract_strided_slice %183 {offsets = [0, 96], sizes = [8, 32], strides = [1, 1]} : vector<8x128xf32> to vector<8x32xf32>
    %189 = arith.mulf %186, %148 : vector<8x32xf32>
    %190 = arith.mulf %185, %187 : vector<8x32xf32>
    %191 = arith.addf %189, %190 : vector<8x32xf32>
    %192 = math.tanh %191 : vector<8x32xf32>
    %193 = arith.mulf %188, %192 : vector<8x32xf32>
    %c7_i32_56 = arith.constant 7 : i32
    %194 = arith.subi %c7_i32_56, %c4_i32 : i32
    %195 = arith.index_cast %194 : i32 to index
    %c0_57 = arith.constant 0 : index
    %c0_58 = arith.constant 0 : index
    %196 = vector.load %arg2[%195, %c0_57, %c0_58] : memref<8x8x128xf32, #tpu.memory_space<vmem>>, vector<1x8x128xf32>
    %197 = vector.shape_cast %196 : vector<1x8x128xf32> to vector<8x128xf32>
    %c0_59 = arith.constant 0 : index
    %c0_60 = arith.constant 0 : index
    %198 = vector.load %arg6[%c0_59, %c0_60] : memref<32x128xf32, #tpu.memory_space<vmem>>, vector<32x128xf32>
    %cst_61 = arith.constant dense<0.000000e+00> : vector<8x128xf32>
    %199 = tpu.matmul %172, %198, %cst_61 {dimension_numbers = #tpu.dot_dimension_numbers<[1], [0], [0], [1], [0, 0, 1, 1], [], []>} : vector<8x32xf32>, vector<32x128xf32>, vector<8x128xf32> -> vector<8x128xf32>
    %200 = arith.addf %197, %199 : vector<8x128xf32>
    %201 = arith.negf %200 : vector<8x128xf32>
    %202 = math.exp %201 : vector<8x128xf32>
    %cst_62 = arith.constant 1.000000e+00 : f32
    %203 = vector.broadcast %cst_62 : f32 to vector<8x128xf32>
    %204 = arith.addf %203, %202 : vector<8x128xf32>
    %205 = arith.divf %203, %204 : vector<8x128xf32>
    %206 = math.tanh %200 : vector<8x128xf32>
    %207 = vector.extract_strided_slice %205 {offsets = [0, 0], sizes = [8, 32], strides = [1, 1]} : vector<8x128xf32> to vector<8x32xf32>
    %208 = vector.extract_strided_slice %205 {offsets = [0, 32], sizes = [8, 32], strides = [1, 1]} : vector<8x128xf32> to vector<8x32xf32>
    %209 = vector.extract_strided_slice %206 {offsets = [0, 64], sizes = [8, 32], strides = [1, 1]} : vector<8x128xf32> to vector<8x32xf32>
    %210 = vector.extract_strided_slice %205 {offsets = [0, 96], sizes = [8, 32], strides = [1, 1]} : vector<8x128xf32> to vector<8x32xf32>
    %211 = arith.mulf %208, %170 : vector<8x32xf32>
    %212 = arith.mulf %207, %209 : vector<8x32xf32>
    %213 = arith.addf %211, %212 : vector<8x32xf32>
    %214 = math.tanh %213 : vector<8x32xf32>
    %215 = arith.mulf %210, %214 : vector<8x32xf32>
    %c5_i32 = arith.constant 5 : i32
    %216 = arith.index_cast %c5_i32 : i32 to index
    %c0_63 = arith.constant 0 : index
    %c0_64 = arith.constant 0 : index
    %217 = vector.load %arg1[%216, %c0_63, %c0_64] : memref<8x8x128xf32, #tpu.memory_space<vmem>>, vector<1x8x128xf32>
    %218 = vector.shape_cast %217 : vector<1x8x128xf32> to vector<8x128xf32>
    %c0_65 = arith.constant 0 : index
    %c0_66 = arith.constant 0 : index
    %219 = vector.load %arg5[%c0_65, %c0_66] : memref<32x128xf32, #tpu.memory_space<vmem>>, vector<32x128xf32>
    %cst_67 = arith.constant dense<0.000000e+00> : vector<8x128xf32>
    %220 = tpu.matmul %193, %219, %cst_67 {dimension_numbers = #tpu.dot_dimension_numbers<[1], [0], [0], [1], [0, 0, 1, 1], [], []>} : vector<8x32xf32>, vector<32x128xf32>, vector<8x128xf32> -> vector<8x128xf32>
    %221 = arith.addf %218, %220 : vector<8x128xf32>
    %222 = arith.negf %221 : vector<8x128xf32>
    %223 = math.exp %222 : vector<8x128xf32>
    %cst_68 = arith.constant 1.000000e+00 : f32
    %224 = vector.broadcast %cst_68 : f32 to vector<8x128xf32>
    %225 = arith.addf %224, %223 : vector<8x128xf32>
    %226 = arith.divf %224, %225 : vector<8x128xf32>
    %227 = math.tanh %221 : vector<8x128xf32>
    %228 = vector.extract_strided_slice %226 {offsets = [0, 0], sizes = [8, 32], strides = [1, 1]} : vector<8x128xf32> to vector<8x32xf32>
    %229 = vector.extract_strided_slice %226 {offsets = [0, 32], sizes = [8, 32], strides = [1, 1]} : vector<8x128xf32> to vector<8x32xf32>
    %230 = vector.extract_strided_slice %227 {offsets = [0, 64], sizes = [8, 32], strides = [1, 1]} : vector<8x128xf32> to vector<8x32xf32>
    %231 = vector.extract_strided_slice %226 {offsets = [0, 96], sizes = [8, 32], strides = [1, 1]} : vector<8x128xf32> to vector<8x32xf32>
    %232 = arith.mulf %229, %191 : vector<8x32xf32>
    %233 = arith.mulf %228, %230 : vector<8x32xf32>
    %234 = arith.addf %232, %233 : vector<8x32xf32>
    %235 = math.tanh %234 : vector<8x32xf32>
    %236 = arith.mulf %231, %235 : vector<8x32xf32>
    %c7_i32_69 = arith.constant 7 : i32
    %237 = arith.subi %c7_i32_69, %c5_i32 : i32
    %238 = arith.index_cast %237 : i32 to index
    %c0_70 = arith.constant 0 : index
    %c0_71 = arith.constant 0 : index
    %239 = vector.load %arg2[%238, %c0_70, %c0_71] : memref<8x8x128xf32, #tpu.memory_space<vmem>>, vector<1x8x128xf32>
    %240 = vector.shape_cast %239 : vector<1x8x128xf32> to vector<8x128xf32>
    %c0_72 = arith.constant 0 : index
    %c0_73 = arith.constant 0 : index
    %241 = vector.load %arg6[%c0_72, %c0_73] : memref<32x128xf32, #tpu.memory_space<vmem>>, vector<32x128xf32>
    %cst_74 = arith.constant dense<0.000000e+00> : vector<8x128xf32>
    %242 = tpu.matmul %215, %241, %cst_74 {dimension_numbers = #tpu.dot_dimension_numbers<[1], [0], [0], [1], [0, 0, 1, 1], [], []>} : vector<8x32xf32>, vector<32x128xf32>, vector<8x128xf32> -> vector<8x128xf32>
    %243 = arith.addf %240, %242 : vector<8x128xf32>
    %244 = arith.negf %243 : vector<8x128xf32>
    %245 = math.exp %244 : vector<8x128xf32>
    %cst_75 = arith.constant 1.000000e+00 : f32
    %246 = vector.broadcast %cst_75 : f32 to vector<8x128xf32>
    %247 = arith.addf %246, %245 : vector<8x128xf32>
    %248 = arith.divf %246, %247 : vector<8x128xf32>
    %249 = math.tanh %243 : vector<8x128xf32>
    %250 = vector.extract_strided_slice %248 {offsets = [0, 0], sizes = [8, 32], strides = [1, 1]} : vector<8x128xf32> to vector<8x32xf32>
    %251 = vector.extract_strided_slice %248 {offsets = [0, 32], sizes = [8, 32], strides = [1, 1]} : vector<8x128xf32> to vector<8x32xf32>
    %252 = vector.extract_strided_slice %249 {offsets = [0, 64], sizes = [8, 32], strides = [1, 1]} : vector<8x128xf32> to vector<8x32xf32>
    %253 = vector.extract_strided_slice %248 {offsets = [0, 96], sizes = [8, 32], strides = [1, 1]} : vector<8x128xf32> to vector<8x32xf32>
    %254 = arith.mulf %251, %213 : vector<8x32xf32>
    %255 = arith.mulf %250, %252 : vector<8x32xf32>
    %256 = arith.addf %254, %255 : vector<8x32xf32>
    %257 = math.tanh %256 : vector<8x32xf32>
    %258 = arith.mulf %253, %257 : vector<8x32xf32>
    %c6_i32 = arith.constant 6 : i32
    %259 = arith.index_cast %c6_i32 : i32 to index
    %c0_76 = arith.constant 0 : index
    %c0_77 = arith.constant 0 : index
    %260 = vector.load %arg1[%259, %c0_76, %c0_77] : memref<8x8x128xf32, #tpu.memory_space<vmem>>, vector<1x8x128xf32>
    %261 = vector.shape_cast %260 : vector<1x8x128xf32> to vector<8x128xf32>
    %c0_78 = arith.constant 0 : index
    %c0_79 = arith.constant 0 : index
    %262 = vector.load %arg5[%c0_78, %c0_79] : memref<32x128xf32, #tpu.memory_space<vmem>>, vector<32x128xf32>
    %cst_80 = arith.constant dense<0.000000e+00> : vector<8x128xf32>
    %263 = tpu.matmul %236, %262, %cst_80 {dimension_numbers = #tpu.dot_dimension_numbers<[1], [0], [0], [1], [0, 0, 1, 1], [], []>} : vector<8x32xf32>, vector<32x128xf32>, vector<8x128xf32> -> vector<8x128xf32>
    %264 = arith.addf %261, %263 : vector<8x128xf32>
    %265 = arith.negf %264 : vector<8x128xf32>
    %266 = math.exp %265 : vector<8x128xf32>
    %cst_81 = arith.constant 1.000000e+00 : f32
    %267 = vector.broadcast %cst_81 : f32 to vector<8x128xf32>
    %268 = arith.addf %267, %266 : vector<8x128xf32>
    %269 = arith.divf %267, %268 : vector<8x128xf32>
    %270 = math.tanh %264 : vector<8x128xf32>
    %271 = vector.extract_strided_slice %269 {offsets = [0, 0], sizes = [8, 32], strides = [1, 1]} : vector<8x128xf32> to vector<8x32xf32>
    %272 = vector.extract_strided_slice %269 {offsets = [0, 32], sizes = [8, 32], strides = [1, 1]} : vector<8x128xf32> to vector<8x32xf32>
    %273 = vector.extract_strided_slice %270 {offsets = [0, 64], sizes = [8, 32], strides = [1, 1]} : vector<8x128xf32> to vector<8x32xf32>
    %274 = vector.extract_strided_slice %269 {offsets = [0, 96], sizes = [8, 32], strides = [1, 1]} : vector<8x128xf32> to vector<8x32xf32>
    %275 = arith.mulf %272, %234 : vector<8x32xf32>
    %276 = arith.mulf %271, %273 : vector<8x32xf32>
    %277 = arith.addf %275, %276 : vector<8x32xf32>
    %278 = math.tanh %277 : vector<8x32xf32>
    %279 = arith.mulf %274, %278 : vector<8x32xf32>
    %c7_i32_82 = arith.constant 7 : i32
    %280 = arith.subi %c7_i32_82, %c6_i32 : i32
    %281 = arith.index_cast %280 : i32 to index
    %c0_83 = arith.constant 0 : index
    %c0_84 = arith.constant 0 : index
    %282 = vector.load %arg2[%281, %c0_83, %c0_84] : memref<8x8x128xf32, #tpu.memory_space<vmem>>, vector<1x8x128xf32>
    %283 = vector.shape_cast %282 : vector<1x8x128xf32> to vector<8x128xf32>
    %c0_85 = arith.constant 0 : index
    %c0_86 = arith.constant 0 : index
    %284 = vector.load %arg6[%c0_85, %c0_86] : memref<32x128xf32, #tpu.memory_space<vmem>>, vector<32x128xf32>
    %cst_87 = arith.constant dense<0.000000e+00> : vector<8x128xf32>
    %285 = tpu.matmul %258, %284, %cst_87 {dimension_numbers = #tpu.dot_dimension_numbers<[1], [0], [0], [1], [0, 0, 1, 1], [], []>} : vector<8x32xf32>, vector<32x128xf32>, vector<8x128xf32> -> vector<8x128xf32>
    %286 = arith.addf %283, %285 : vector<8x128xf32>
    %287 = arith.negf %286 : vector<8x128xf32>
    %288 = math.exp %287 : vector<8x128xf32>
    %cst_88 = arith.constant 1.000000e+00 : f32
    %289 = vector.broadcast %cst_88 : f32 to vector<8x128xf32>
    %290 = arith.addf %289, %288 : vector<8x128xf32>
    %291 = arith.divf %289, %290 : vector<8x128xf32>
    %292 = math.tanh %286 : vector<8x128xf32>
    %293 = vector.extract_strided_slice %291 {offsets = [0, 0], sizes = [8, 32], strides = [1, 1]} : vector<8x128xf32> to vector<8x32xf32>
    %294 = vector.extract_strided_slice %291 {offsets = [0, 32], sizes = [8, 32], strides = [1, 1]} : vector<8x128xf32> to vector<8x32xf32>
    %295 = vector.extract_strided_slice %292 {offsets = [0, 64], sizes = [8, 32], strides = [1, 1]} : vector<8x128xf32> to vector<8x32xf32>
    %296 = vector.extract_strided_slice %291 {offsets = [0, 96], sizes = [8, 32], strides = [1, 1]} : vector<8x128xf32> to vector<8x32xf32>
    %297 = arith.mulf %294, %256 : vector<8x32xf32>
    %298 = arith.mulf %293, %295 : vector<8x32xf32>
    %299 = arith.addf %297, %298 : vector<8x32xf32>
    %300 = math.tanh %299 : vector<8x32xf32>
    %301 = arith.mulf %296, %300 : vector<8x32xf32>
    %c7_i32_89 = arith.constant 7 : i32
    %302 = arith.index_cast %c7_i32_89 : i32 to index
    %c0_90 = arith.constant 0 : index
    %c0_91 = arith.constant 0 : index
    %303 = vector.load %arg1[%302, %c0_90, %c0_91] : memref<8x8x128xf32, #tpu.memory_space<vmem>>, vector<1x8x128xf32>
    %304 = vector.shape_cast %303 : vector<1x8x128xf32> to vector<8x128xf32>
    %c0_92 = arith.constant 0 : index
    %c0_93 = arith.constant 0 : index
    %305 = vector.load %arg5[%c0_92, %c0_93] : memref<32x128xf32, #tpu.memory_space<vmem>>, vector<32x128xf32>
    %cst_94 = arith.constant dense<0.000000e+00> : vector<8x128xf32>
    %306 = tpu.matmul %279, %305, %cst_94 {dimension_numbers = #tpu.dot_dimension_numbers<[1], [0], [0], [1], [0, 0, 1, 1], [], []>} : vector<8x32xf32>, vector<32x128xf32>, vector<8x128xf32> -> vector<8x128xf32>
    %307 = arith.addf %304, %306 : vector<8x128xf32>
    %308 = arith.negf %307 : vector<8x128xf32>
    %309 = math.exp %308 : vector<8x128xf32>
    %cst_95 = arith.constant 1.000000e+00 : f32
    %310 = vector.broadcast %cst_95 : f32 to vector<8x128xf32>
    %311 = arith.addf %310, %309 : vector<8x128xf32>
    %312 = arith.divf %310, %311 : vector<8x128xf32>
    %313 = math.tanh %307 : vector<8x128xf32>
    %314 = vector.extract_strided_slice %312 {offsets = [0, 0], sizes = [8, 32], strides = [1, 1]} : vector<8x128xf32> to vector<8x32xf32>
    %315 = vector.extract_strided_slice %312 {offsets = [0, 32], sizes = [8, 32], strides = [1, 1]} : vector<8x128xf32> to vector<8x32xf32>
    %316 = vector.extract_strided_slice %313 {offsets = [0, 64], sizes = [8, 32], strides = [1, 1]} : vector<8x128xf32> to vector<8x32xf32>
    %317 = vector.extract_strided_slice %312 {offsets = [0, 96], sizes = [8, 32], strides = [1, 1]} : vector<8x128xf32> to vector<8x32xf32>
    %318 = arith.mulf %315, %277 : vector<8x32xf32>
    %319 = arith.mulf %314, %316 : vector<8x32xf32>
    %320 = arith.addf %318, %319 : vector<8x32xf32>
    %321 = math.tanh %320 : vector<8x32xf32>
    %322 = arith.mulf %317, %321 : vector<8x32xf32>
    %c7_i32_96 = arith.constant 7 : i32
    %323 = arith.subi %c7_i32_96, %c7_i32_89 : i32
    %324 = arith.index_cast %323 : i32 to index
    %c0_97 = arith.constant 0 : index
    %c0_98 = arith.constant 0 : index
    %325 = vector.load %arg2[%324, %c0_97, %c0_98] : memref<8x8x128xf32, #tpu.memory_space<vmem>>, vector<1x8x128xf32>
    %326 = vector.shape_cast %325 : vector<1x8x128xf32> to vector<8x128xf32>
    %c0_99 = arith.constant 0 : index
    %c0_100 = arith.constant 0 : index
    %327 = vector.load %arg6[%c0_99, %c0_100] : memref<32x128xf32, #tpu.memory_space<vmem>>, vector<32x128xf32>
    %cst_101 = arith.constant dense<0.000000e+00> : vector<8x128xf32>
    %328 = tpu.matmul %301, %327, %cst_101 {dimension_numbers = #tpu.dot_dimension_numbers<[1], [0], [0], [1], [0, 0, 1, 1], [], []>} : vector<8x32xf32>, vector<32x128xf32>, vector<8x128xf32> -> vector<8x128xf32>
    %329 = arith.addf %326, %328 : vector<8x128xf32>
    %330 = arith.negf %329 : vector<8x128xf32>
    %331 = math.exp %330 : vector<8x128xf32>
    %cst_102 = arith.constant 1.000000e+00 : f32
    %332 = vector.broadcast %cst_102 : f32 to vector<8x128xf32>
    %333 = arith.addf %332, %331 : vector<8x128xf32>
    %334 = arith.divf %332, %333 : vector<8x128xf32>
    %335 = math.tanh %329 : vector<8x128xf32>
    %336 = vector.extract_strided_slice %334 {offsets = [0, 0], sizes = [8, 32], strides = [1, 1]} : vector<8x128xf32> to vector<8x32xf32>
    %337 = vector.extract_strided_slice %334 {offsets = [0, 32], sizes = [8, 32], strides = [1, 1]} : vector<8x128xf32> to vector<8x32xf32>
    %338 = vector.extract_strided_slice %335 {offsets = [0, 64], sizes = [8, 32], strides = [1, 1]} : vector<8x128xf32> to vector<8x32xf32>
    %339 = vector.extract_strided_slice %334 {offsets = [0, 96], sizes = [8, 32], strides = [1, 1]} : vector<8x128xf32> to vector<8x32xf32>
    %340 = arith.mulf %337, %299 : vector<8x32xf32>
    %341 = arith.mulf %336, %338 : vector<8x32xf32>
    %342 = arith.addf %340, %341 : vector<8x32xf32>
    %343 = math.tanh %342 : vector<8x32xf32>
    %344 = arith.mulf %339, %343 : vector<8x32xf32>
    %c8_i32 = arith.constant 8 : i32
    %345 = arith.addf %322, %344 : vector<8x32xf32>
    %cst_103 = arith.constant 5.000000e-01 : f32
    %346 = vector.broadcast %cst_103 : f32 to vector<8x32xf32>
    %347 = arith.mulf %345, %346 : vector<8x32xf32>
    %348 = arith.addf %320, %342 : vector<8x32xf32>
    %cst_104 = arith.constant 5.000000e-01 : f32
    %349 = vector.broadcast %cst_104 : f32 to vector<8x32xf32>
    %350 = arith.mulf %348, %349 : vector<8x32xf32>
    %cst_105 = arith.constant 0.000000e+00 : f32
    %351 = vector.broadcast %cst_105 : f32 to vector<8x128xf32>
    %c0_106 = arith.constant 0 : index
    %c0_107 = arith.constant 0 : index
    %c0_108 = arith.constant 0 : index
    %352 = vector.load %arg10[%c0_106, %c0_107, %c0_108] : memref<8x8x128xf32, #tpu.memory_space<vmem>>, vector<1x8x128xf32>
    %353 = vector.shape_cast %352 : vector<1x8x128xf32> to vector<8x128xf32>
    %354 = vector.shape_cast %351 : vector<8x128xf32> to vector<1x8x128xf32>
    tpu.vector_store %arg10[%c0_106, %c0_107, %c0_108], %354 {strides = array<i32>} : memref<8x8x128xf32, #tpu.memory_space<vmem>>, vector<1x8x128xf32>,
    %355 = tpu.iota {dimensions = array<i32: 1>} : vector<8x128xi32>
    %c0_109 = arith.constant 0 : index
    %c0_110 = arith.constant 0 : index
    %356 = vector.load %arg9[%c0_109, %c0_110] : memref<1x128xf32, #tpu.memory_space<vmem>>, vector<1x128xf32>
    %357 = vector.shape_cast %356 : vector<1x128xf32> to vector<1x128xf32>
    %358 = vector.broadcast %357 : vector<1x128xf32> to vector<8x128xf32>
    %c0_111 = arith.constant 0 : index
    %c0_112 = arith.constant 0 : index
    %c0_113 = arith.constant 0 : index
    %359 = vector.load %arg3[%c0_111, %c0_112, %c0_113] : memref<8x8x128xf32, #tpu.memory_space<vmem>>, vector<1x8x128xf32>
    %360 = vector.shape_cast %359 : vector<1x8x128xf32> to vector<8x128xf32>
    %c1_i32_114 = arith.constant 1 : i32
    %c0_115 = arith.constant 0 : index
    %c0_116 = arith.constant 0 : index
    %361 = vector.load %arg7[%c0_115, %c0_116] : memref<32x128xf32, #tpu.memory_space<vmem>>, vector<32x128xf32>
    %cst_117 = arith.constant dense<0.000000e+00> : vector<8x128xf32>
    %362 = tpu.matmul %347, %361, %cst_117 {dimension_numbers = #tpu.dot_dimension_numbers<[1], [0], [0], [1], [0, 0, 1, 1], [], []>} : vector<8x32xf32>, vector<32x128xf32>, vector<8x128xf32> -> vector<8x128xf32>
    %363 = arith.addf %360, %362 : vector<8x128xf32>
    %364 = arith.negf %363 : vector<8x128xf32>
    %365 = math.exp %364 : vector<8x128xf32>
    %cst_118 = arith.constant 1.000000e+00 : f32
    %366 = vector.broadcast %cst_118 : f32 to vector<8x128xf32>
    %367 = arith.addf %366, %365 : vector<8x128xf32>
    %368 = arith.divf %366, %367 : vector<8x128xf32>
    %369 = math.tanh %363 : vector<8x128xf32>
    %370 = vector.extract_strided_slice %368 {offsets = [0, 0], sizes = [8, 32], strides = [1, 1]} : vector<8x128xf32> to vector<8x32xf32>
    %371 = vector.extract_strided_slice %368 {offsets = [0, 32], sizes = [8, 32], strides = [1, 1]} : vector<8x128xf32> to vector<8x32xf32>
    %372 = vector.extract_strided_slice %369 {offsets = [0, 64], sizes = [8, 32], strides = [1, 1]} : vector<8x128xf32> to vector<8x32xf32>
    %373 = vector.extract_strided_slice %368 {offsets = [0, 96], sizes = [8, 32], strides = [1, 1]} : vector<8x128xf32> to vector<8x32xf32>
    %374 = arith.mulf %371, %350 : vector<8x32xf32>
    %375 = arith.mulf %370, %372 : vector<8x32xf32>
    %376 = arith.addf %374, %375 : vector<8x32xf32>
    %377 = math.tanh %376 : vector<8x32xf32>
    %378 = arith.mulf %373, %377 : vector<8x32xf32>
    %c0_119 = arith.constant 0 : index
    %c0_120 = arith.constant 0 : index
    %379 = vector.load %arg8[%c0_119, %c0_120] : memref<32x128xf32, #tpu.memory_space<vmem>>, vector<32x128xf32>
    %cst_121 = arith.constant dense<0.000000e+00> : vector<8x128xf32>
    %380 = tpu.matmul %378, %379, %cst_121 {dimension_numbers = #tpu.dot_dimension_numbers<[1], [0], [0], [1], [0, 0, 1, 1], [], []>} : vector<8x32xf32>, vector<32x128xf32>, vector<8x128xf32> -> vector<8x128xf32>
    %381 = arith.addf %380, %358 : vector<8x128xf32>
    %382 = arith.index_cast %c1_i32_114 : i32 to index
    %c0_122 = arith.constant 0 : index
    %c0_123 = arith.constant 0 : index
    %383 = vector.load %arg10[%382, %c0_122, %c0_123] : memref<8x8x128xf32, #tpu.memory_space<vmem>>, vector<1x8x128xf32>
    %384 = vector.shape_cast %383 : vector<1x8x128xf32> to vector<8x128xf32>
    %385 = vector.shape_cast %381 : vector<8x128xf32> to vector<1x8x128xf32>
    tpu.vector_store %arg10[%382, %c0_122, %c0_123], %385 {strides = array<i32>} : memref<8x8x128xf32, #tpu.memory_space<vmem>>, vector<1x8x128xf32>,
    %386 = arith.index_cast %c1_i32_114 : i32 to index
    %387 = memref.load %arg0[%386] : memref<8xi32, #tpu.memory_space<smem>>
    %c1_i32_124 = arith.constant 1 : i32
    %388 = arith.cmpi eq, %387, %c1_i32_124 : i32
    %389 = arith.extui %388 : i1 to i32
    %c0_i32_125 = arith.constant 0 : i32
    %390 = arith.cmpi ne, %389, %c0_i32_125 : i32
    %391 = scf.if %390 -> (vector<8x128xf32>) {
      %578 = arith.index_cast %c1_i32_114 : i32 to index
      %c0_199 = arith.constant 0 : index
      %c0_200 = arith.constant 0 : index
      %579 = vector.load %arg3[%578, %c0_199, %c0_200] : memref<8x8x128xf32, #tpu.memory_space<vmem>>, vector<1x8x128xf32>
      %580 = vector.shape_cast %579 : vector<1x8x128xf32> to vector<8x128xf32>
      scf.yield %580 : vector<8x128xf32>
    } else {
      %cst_199 = arith.constant dense<0xFF800000> : vector<8xf32>
      %578 = vector.multi_reduction <maximumf>, %381, %cst_199 [1] : vector<8x128xf32> to vector<8xf32>
      %579 = vector.shape_cast %578 : vector<8xf32> to vector<8x1xf32>
      %580 = vector.broadcast %579 : vector<8x1xf32> to vector<8x128xf32>
      %581 = arith.cmpf oeq, %381, %580 : vector<8x128xf32>
      %c128_i32 = arith.constant 128 : i32
      %582 = vector.broadcast %c128_i32 : i32 to vector<8x128xi32>
      %583 = arith.select %581, %355, %582 : vector<8x128xi1>, vector<8x128xi32>
      %cst_200 = arith.constant dense<2147483647> : vector<8xi32>
      %584 = vector.multi_reduction <minsi>, %583, %cst_200 [1] : vector<8x128xi32> to vector<8xi32>
      %585 = vector.shape_cast %584 : vector<8xi32> to vector<8x1xi32>
      %586 = vector.broadcast %585 : vector<8x1xi32> to vector<8x128xi32>
      %587 = arith.cmpi eq, %355, %586 : vector<8x128xi32>
      %588 = arith.extui %587 : vector<8x128xi1> to vector<8x128xi32>
      %589 = arith.sitofp %588 : vector<8x128xi32> to vector<8x128xf32>
      %c0_201 = arith.constant 0 : index
      %c0_202 = arith.constant 0 : index
      %590 = vector.load %arg4[%c0_201, %c0_202] : memref<128x128xf32, #tpu.memory_space<vmem>>, vector<128x128xf32>
      %cst_203 = arith.constant dense<0.000000e+00> : vector<8x128xf32>
      %591 = tpu.matmul %589, %590, %cst_203 {dimension_numbers = #tpu.dot_dimension_numbers<[1], [0], [0], [1], [0, 0, 1, 1], [], []>} : vector<8x128xf32>, vector<128x128xf32>, vector<8x128xf32> -> vector<8x128xf32>
      scf.yield %591 : vector<8x128xf32>
    }
    %c2_i32_126 = arith.constant 2 : i32
    %c0_127 = arith.constant 0 : index
    %c0_128 = arith.constant 0 : index
    %392 = vector.load %arg7[%c0_127, %c0_128] : memref<32x128xf32, #tpu.memory_space<vmem>>, vector<32x128xf32>
    %cst_129 = arith.constant dense<0.000000e+00> : vector<8x128xf32>
    %393 = tpu.matmul %378, %392, %cst_129 {dimension_numbers = #tpu.dot_dimension_numbers<[1], [0], [0], [1], [0, 0, 1, 1], [], []>} : vector<8x32xf32>, vector<32x128xf32>, vector<8x128xf32> -> vector<8x128xf32>
    %394 = arith.addf %391, %393 : vector<8x128xf32>
    %395 = arith.negf %394 : vector<8x128xf32>
    %396 = math.exp %395 : vector<8x128xf32>
    %cst_130 = arith.constant 1.000000e+00 : f32
    %397 = vector.broadcast %cst_130 : f32 to vector<8x128xf32>
    %398 = arith.addf %397, %396 : vector<8x128xf32>
    %399 = arith.divf %397, %398 : vector<8x128xf32>
    %400 = math.tanh %394 : vector<8x128xf32>
    %401 = vector.extract_strided_slice %399 {offsets = [0, 0], sizes = [8, 32], strides = [1, 1]} : vector<8x128xf32> to vector<8x32xf32>
    %402 = vector.extract_strided_slice %399 {offsets = [0, 32], sizes = [8, 32], strides = [1, 1]} : vector<8x128xf32> to vector<8x32xf32>
    %403 = vector.extract_strided_slice %400 {offsets = [0, 64], sizes = [8, 32], strides = [1, 1]} : vector<8x128xf32> to vector<8x32xf32>
    %404 = vector.extract_strided_slice %399 {offsets = [0, 96], sizes = [8, 32], strides = [1, 1]} : vector<8x128xf32> to vector<8x32xf32>
    %405 = arith.mulf %402, %376 : vector<8x32xf32>
    %406 = arith.mulf %401, %403 : vector<8x32xf32>
    %407 = arith.addf %405, %406 : vector<8x32xf32>
    %408 = math.tanh %407 : vector<8x32xf32>
    %409 = arith.mulf %404, %408 : vector<8x32xf32>
    %c0_131 = arith.constant 0 : index
    %c0_132 = arith.constant 0 : index
    %410 = vector.load %arg8[%c0_131, %c0_132] : memref<32x128xf32, #tpu.memory_space<vmem>>, vector<32x128xf32>
    %cst_133 = arith.constant dense<0.000000e+00> : vector<8x128xf32>
    %411 = tpu.matmul %409, %410, %cst_133 {dimension_numbers = #tpu.dot_dimension_numbers<[1], [0], [0], [1], [0, 0, 1, 1], [], []>} : vector<8x32xf32>, vector<32x128xf32>, vector<8x128xf32> -> vector<8x128xf32>
    %412 = arith.addf %411, %358 : vector<8x128xf32>
    %413 = arith.index_cast %c2_i32_126 : i32 to index
    %c0_134 = arith.constant 0 : index
    %c0_135 = arith.constant 0 : index
    %414 = vector.load %arg10[%413, %c0_134, %c0_135] : memref<8x8x128xf32, #tpu.memory_space<vmem>>, vector<1x8x128xf32>
    %415 = vector.shape_cast %414 : vector<1x8x128xf32> to vector<8x128xf32>
    %416 = vector.shape_cast %412 : vector<8x128xf32> to vector<1x8x128xf32>
    tpu.vector_store %arg10[%413, %c0_134, %c0_135], %416 {strides = array<i32>} : memref<8x8x128xf32, #tpu.memory_space<vmem>>, vector<1x8x128xf32>,
    %417 = arith.index_cast %c2_i32_126 : i32 to index
    %418 = memref.load %arg0[%417] : memref<8xi32, #tpu.memory_space<smem>>
    %c1_i32_136 = arith.constant 1 : i32
    %419 = arith.cmpi eq, %418, %c1_i32_136 : i32
    %420 = arith.extui %419 : i1 to i32
    %c0_i32_137 = arith.constant 0 : i32
    %421 = arith.cmpi ne, %420, %c0_i32_137 : i32
    %422 = scf.if %421 -> (vector<8x128xf32>) {
      %578 = arith.index_cast %c2_i32_126 : i32 to index
      %c0_199 = arith.constant 0 : index
      %c0_200 = arith.constant 0 : index
      %579 = vector.load %arg3[%578, %c0_199, %c0_200] : memref<8x8x128xf32, #tpu.memory_space<vmem>>, vector<1x8x128xf32>
      %580 = vector.shape_cast %579 : vector<1x8x128xf32> to vector<8x128xf32>
      scf.yield %580 : vector<8x128xf32>
    } else {
      %cst_199 = arith.constant dense<0xFF800000> : vector<8xf32>
      %578 = vector.multi_reduction <maximumf>, %412, %cst_199 [1] : vector<8x128xf32> to vector<8xf32>
      %579 = vector.shape_cast %578 : vector<8xf32> to vector<8x1xf32>
      %580 = vector.broadcast %579 : vector<8x1xf32> to vector<8x128xf32>
      %581 = arith.cmpf oeq, %412, %580 : vector<8x128xf32>
      %c128_i32 = arith.constant 128 : i32
      %582 = vector.broadcast %c128_i32 : i32 to vector<8x128xi32>
      %583 = arith.select %581, %355, %582 : vector<8x128xi1>, vector<8x128xi32>
      %cst_200 = arith.constant dense<2147483647> : vector<8xi32>
      %584 = vector.multi_reduction <minsi>, %583, %cst_200 [1] : vector<8x128xi32> to vector<8xi32>
      %585 = vector.shape_cast %584 : vector<8xi32> to vector<8x1xi32>
      %586 = vector.broadcast %585 : vector<8x1xi32> to vector<8x128xi32>
      %587 = arith.cmpi eq, %355, %586 : vector<8x128xi32>
      %588 = arith.extui %587 : vector<8x128xi1> to vector<8x128xi32>
      %589 = arith.sitofp %588 : vector<8x128xi32> to vector<8x128xf32>
      %c0_201 = arith.constant 0 : index
      %c0_202 = arith.constant 0 : index
      %590 = vector.load %arg4[%c0_201, %c0_202] : memref<128x128xf32, #tpu.memory_space<vmem>>, vector<128x128xf32>
      %cst_203 = arith.constant dense<0.000000e+00> : vector<8x128xf32>
      %591 = tpu.matmul %589, %590, %cst_203 {dimension_numbers = #tpu.dot_dimension_numbers<[1], [0], [0], [1], [0, 0, 1, 1], [], []>} : vector<8x128xf32>, vector<128x128xf32>, vector<8x128xf32> -> vector<8x128xf32>
      scf.yield %591 : vector<8x128xf32>
    }
    %c3_i32_138 = arith.constant 3 : i32
    %c0_139 = arith.constant 0 : index
    %c0_140 = arith.constant 0 : index
    %423 = vector.load %arg7[%c0_139, %c0_140] : memref<32x128xf32, #tpu.memory_space<vmem>>, vector<32x128xf32>
    %cst_141 = arith.constant dense<0.000000e+00> : vector<8x128xf32>
    %424 = tpu.matmul %409, %423, %cst_141 {dimension_numbers = #tpu.dot_dimension_numbers<[1], [0], [0], [1], [0, 0, 1, 1], [], []>} : vector<8x32xf32>, vector<32x128xf32>, vector<8x128xf32> -> vector<8x128xf32>
    %425 = arith.addf %422, %424 : vector<8x128xf32>
    %426 = arith.negf %425 : vector<8x128xf32>
    %427 = math.exp %426 : vector<8x128xf32>
    %cst_142 = arith.constant 1.000000e+00 : f32
    %428 = vector.broadcast %cst_142 : f32 to vector<8x128xf32>
    %429 = arith.addf %428, %427 : vector<8x128xf32>
    %430 = arith.divf %428, %429 : vector<8x128xf32>
    %431 = math.tanh %425 : vector<8x128xf32>
    %432 = vector.extract_strided_slice %430 {offsets = [0, 0], sizes = [8, 32], strides = [1, 1]} : vector<8x128xf32> to vector<8x32xf32>
    %433 = vector.extract_strided_slice %430 {offsets = [0, 32], sizes = [8, 32], strides = [1, 1]} : vector<8x128xf32> to vector<8x32xf32>
    %434 = vector.extract_strided_slice %431 {offsets = [0, 64], sizes = [8, 32], strides = [1, 1]} : vector<8x128xf32> to vector<8x32xf32>
    %435 = vector.extract_strided_slice %430 {offsets = [0, 96], sizes = [8, 32], strides = [1, 1]} : vector<8x128xf32> to vector<8x32xf32>
    %436 = arith.mulf %433, %407 : vector<8x32xf32>
    %437 = arith.mulf %432, %434 : vector<8x32xf32>
    %438 = arith.addf %436, %437 : vector<8x32xf32>
    %439 = math.tanh %438 : vector<8x32xf32>
    %440 = arith.mulf %435, %439 : vector<8x32xf32>
    %c0_143 = arith.constant 0 : index
    %c0_144 = arith.constant 0 : index
    %441 = vector.load %arg8[%c0_143, %c0_144] : memref<32x128xf32, #tpu.memory_space<vmem>>, vector<32x128xf32>
    %cst_145 = arith.constant dense<0.000000e+00> : vector<8x128xf32>
    %442 = tpu.matmul %440, %441, %cst_145 {dimension_numbers = #tpu.dot_dimension_numbers<[1], [0], [0], [1], [0, 0, 1, 1], [], []>} : vector<8x32xf32>, vector<32x128xf32>, vector<8x128xf32> -> vector<8x128xf32>
    %443 = arith.addf %442, %358 : vector<8x128xf32>
    %444 = arith.index_cast %c3_i32_138 : i32 to index
    %c0_146 = arith.constant 0 : index
    %c0_147 = arith.constant 0 : index
    %445 = vector.load %arg10[%444, %c0_146, %c0_147] : memref<8x8x128xf32, #tpu.memory_space<vmem>>, vector<1x8x128xf32>
    %446 = vector.shape_cast %445 : vector<1x8x128xf32> to vector<8x128xf32>
    %447 = vector.shape_cast %443 : vector<8x128xf32> to vector<1x8x128xf32>
    tpu.vector_store %arg10[%444, %c0_146, %c0_147], %447 {strides = array<i32>} : memref<8x8x128xf32, #tpu.memory_space<vmem>>, vector<1x8x128xf32>,
    %448 = arith.index_cast %c3_i32_138 : i32 to index
    %449 = memref.load %arg0[%448] : memref<8xi32, #tpu.memory_space<smem>>
    %c1_i32_148 = arith.constant 1 : i32
    %450 = arith.cmpi eq, %449, %c1_i32_148 : i32
    %451 = arith.extui %450 : i1 to i32
    %c0_i32_149 = arith.constant 0 : i32
    %452 = arith.cmpi ne, %451, %c0_i32_149 : i32
    %453 = scf.if %452 -> (vector<8x128xf32>) {
      %578 = arith.index_cast %c3_i32_138 : i32 to index
      %c0_199 = arith.constant 0 : index
      %c0_200 = arith.constant 0 : index
      %579 = vector.load %arg3[%578, %c0_199, %c0_200] : memref<8x8x128xf32, #tpu.memory_space<vmem>>, vector<1x8x128xf32>
      %580 = vector.shape_cast %579 : vector<1x8x128xf32> to vector<8x128xf32>
      scf.yield %580 : vector<8x128xf32>
    } else {
      %cst_199 = arith.constant dense<0xFF800000> : vector<8xf32>
      %578 = vector.multi_reduction <maximumf>, %443, %cst_199 [1] : vector<8x128xf32> to vector<8xf32>
      %579 = vector.shape_cast %578 : vector<8xf32> to vector<8x1xf32>
      %580 = vector.broadcast %579 : vector<8x1xf32> to vector<8x128xf32>
      %581 = arith.cmpf oeq, %443, %580 : vector<8x128xf32>
      %c128_i32 = arith.constant 128 : i32
      %582 = vector.broadcast %c128_i32 : i32 to vector<8x128xi32>
      %583 = arith.select %581, %355, %582 : vector<8x128xi1>, vector<8x128xi32>
      %cst_200 = arith.constant dense<2147483647> : vector<8xi32>
      %584 = vector.multi_reduction <minsi>, %583, %cst_200 [1] : vector<8x128xi32> to vector<8xi32>
      %585 = vector.shape_cast %584 : vector<8xi32> to vector<8x1xi32>
      %586 = vector.broadcast %585 : vector<8x1xi32> to vector<8x128xi32>
      %587 = arith.cmpi eq, %355, %586 : vector<8x128xi32>
      %588 = arith.extui %587 : vector<8x128xi1> to vector<8x128xi32>
      %589 = arith.sitofp %588 : vector<8x128xi32> to vector<8x128xf32>
      %c0_201 = arith.constant 0 : index
      %c0_202 = arith.constant 0 : index
      %590 = vector.load %arg4[%c0_201, %c0_202] : memref<128x128xf32, #tpu.memory_space<vmem>>, vector<128x128xf32>
      %cst_203 = arith.constant dense<0.000000e+00> : vector<8x128xf32>
      %591 = tpu.matmul %589, %590, %cst_203 {dimension_numbers = #tpu.dot_dimension_numbers<[1], [0], [0], [1], [0, 0, 1, 1], [], []>} : vector<8x128xf32>, vector<128x128xf32>, vector<8x128xf32> -> vector<8x128xf32>
      scf.yield %591 : vector<8x128xf32>
    }
    %c4_i32_150 = arith.constant 4 : i32
    %c0_151 = arith.constant 0 : index
    %c0_152 = arith.constant 0 : index
    %454 = vector.load %arg7[%c0_151, %c0_152] : memref<32x128xf32, #tpu.memory_space<vmem>>, vector<32x128xf32>
    %cst_153 = arith.constant dense<0.000000e+00> : vector<8x128xf32>
    %455 = tpu.matmul %440, %454, %cst_153 {dimension_numbers = #tpu.dot_dimension_numbers<[1], [0], [0], [1], [0, 0, 1, 1], [], []>} : vector<8x32xf32>, vector<32x128xf32>, vector<8x128xf32> -> vector<8x128xf32>
    %456 = arith.addf %453, %455 : vector<8x128xf32>
    %457 = arith.negf %456 : vector<8x128xf32>
    %458 = math.exp %457 : vector<8x128xf32>
    %cst_154 = arith.constant 1.000000e+00 : f32
    %459 = vector.broadcast %cst_154 : f32 to vector<8x128xf32>
    %460 = arith.addf %459, %458 : vector<8x128xf32>
    %461 = arith.divf %459, %460 : vector<8x128xf32>
    %462 = math.tanh %456 : vector<8x128xf32>
    %463 = vector.extract_strided_slice %461 {offsets = [0, 0], sizes = [8, 32], strides = [1, 1]} : vector<8x128xf32> to vector<8x32xf32>
    %464 = vector.extract_strided_slice %461 {offsets = [0, 32], sizes = [8, 32], strides = [1, 1]} : vector<8x128xf32> to vector<8x32xf32>
    %465 = vector.extract_strided_slice %462 {offsets = [0, 64], sizes = [8, 32], strides = [1, 1]} : vector<8x128xf32> to vector<8x32xf32>
    %466 = vector.extract_strided_slice %461 {offsets = [0, 96], sizes = [8, 32], strides = [1, 1]} : vector<8x128xf32> to vector<8x32xf32>
    %467 = arith.mulf %464, %438 : vector<8x32xf32>
    %468 = arith.mulf %463, %465 : vector<8x32xf32>
    %469 = arith.addf %467, %468 : vector<8x32xf32>
    %470 = math.tanh %469 : vector<8x32xf32>
    %471 = arith.mulf %466, %470 : vector<8x32xf32>
    %c0_155 = arith.constant 0 : index
    %c0_156 = arith.constant 0 : index
    %472 = vector.load %arg8[%c0_155, %c0_156] : memref<32x128xf32, #tpu.memory_space<vmem>>, vector<32x128xf32>
    %cst_157 = arith.constant dense<0.000000e+00> : vector<8x128xf32>
    %473 = tpu.matmul %471, %472, %cst_157 {dimension_numbers = #tpu.dot_dimension_numbers<[1], [0], [0], [1], [0, 0, 1, 1], [], []>} : vector<8x32xf32>, vector<32x128xf32>, vector<8x128xf32> -> vector<8x128xf32>
    %474 = arith.addf %473, %358 : vector<8x128xf32>
    %475 = arith.index_cast %c4_i32_150 : i32 to index
    %c0_158 = arith.constant 0 : index
    %c0_159 = arith.constant 0 : index
    %476 = vector.load %arg10[%475, %c0_158, %c0_159] : memref<8x8x128xf32, #tpu.memory_space<vmem>>, vector<1x8x128xf32>
    %477 = vector.shape_cast %476 : vector<1x8x128xf32> to vector<8x128xf32>
    %478 = vector.shape_cast %474 : vector<8x128xf32> to vector<1x8x128xf32>
    tpu.vector_store %arg10[%475, %c0_158, %c0_159], %478 {strides = array<i32>} : memref<8x8x128xf32, #tpu.memory_space<vmem>>, vector<1x8x128xf32>,
    %479 = arith.index_cast %c4_i32_150 : i32 to index
    %480 = memref.load %arg0[%479] : memref<8xi32, #tpu.memory_space<smem>>
    %c1_i32_160 = arith.constant 1 : i32
    %481 = arith.cmpi eq, %480, %c1_i32_160 : i32
    %482 = arith.extui %481 : i1 to i32
    %c0_i32_161 = arith.constant 0 : i32
    %483 = arith.cmpi ne, %482, %c0_i32_161 : i32
    %484 = scf.if %483 -> (vector<8x128xf32>) {
      %578 = arith.index_cast %c4_i32_150 : i32 to index
      %c0_199 = arith.constant 0 : index
      %c0_200 = arith.constant 0 : index
      %579 = vector.load %arg3[%578, %c0_199, %c0_200] : memref<8x8x128xf32, #tpu.memory_space<vmem>>, vector<1x8x128xf32>
      %580 = vector.shape_cast %579 : vector<1x8x128xf32> to vector<8x128xf32>
      scf.yield %580 : vector<8x128xf32>
    } else {
      %cst_199 = arith.constant dense<0xFF800000> : vector<8xf32>
      %578 = vector.multi_reduction <maximumf>, %474, %cst_199 [1] : vector<8x128xf32> to vector<8xf32>
      %579 = vector.shape_cast %578 : vector<8xf32> to vector<8x1xf32>
      %580 = vector.broadcast %579 : vector<8x1xf32> to vector<8x128xf32>
      %581 = arith.cmpf oeq, %474, %580 : vector<8x128xf32>
      %c128_i32 = arith.constant 128 : i32
      %582 = vector.broadcast %c128_i32 : i32 to vector<8x128xi32>
      %583 = arith.select %581, %355, %582 : vector<8x128xi1>, vector<8x128xi32>
      %cst_200 = arith.constant dense<2147483647> : vector<8xi32>
      %584 = vector.multi_reduction <minsi>, %583, %cst_200 [1] : vector<8x128xi32> to vector<8xi32>
      %585 = vector.shape_cast %584 : vector<8xi32> to vector<8x1xi32>
      %586 = vector.broadcast %585 : vector<8x1xi32> to vector<8x128xi32>
      %587 = arith.cmpi eq, %355, %586 : vector<8x128xi32>
      %588 = arith.extui %587 : vector<8x128xi1> to vector<8x128xi32>
      %589 = arith.sitofp %588 : vector<8x128xi32> to vector<8x128xf32>
      %c0_201 = arith.constant 0 : index
      %c0_202 = arith.constant 0 : index
      %590 = vector.load %arg4[%c0_201, %c0_202] : memref<128x128xf32, #tpu.memory_space<vmem>>, vector<128x128xf32>
      %cst_203 = arith.constant dense<0.000000e+00> : vector<8x128xf32>
      %591 = tpu.matmul %589, %590, %cst_203 {dimension_numbers = #tpu.dot_dimension_numbers<[1], [0], [0], [1], [0, 0, 1, 1], [], []>} : vector<8x128xf32>, vector<128x128xf32>, vector<8x128xf32> -> vector<8x128xf32>
      scf.yield %591 : vector<8x128xf32>
    }
    %c5_i32_162 = arith.constant 5 : i32
    %c0_163 = arith.constant 0 : index
    %c0_164 = arith.constant 0 : index
    %485 = vector.load %arg7[%c0_163, %c0_164] : memref<32x128xf32, #tpu.memory_space<vmem>>, vector<32x128xf32>
    %cst_165 = arith.constant dense<0.000000e+00> : vector<8x128xf32>
    %486 = tpu.matmul %471, %485, %cst_165 {dimension_numbers = #tpu.dot_dimension_numbers<[1], [0], [0], [1], [0, 0, 1, 1], [], []>} : vector<8x32xf32>, vector<32x128xf32>, vector<8x128xf32> -> vector<8x128xf32>
    %487 = arith.addf %484, %486 : vector<8x128xf32>
    %488 = arith.negf %487 : vector<8x128xf32>
    %489 = math.exp %488 : vector<8x128xf32>
    %cst_166 = arith.constant 1.000000e+00 : f32
    %490 = vector.broadcast %cst_166 : f32 to vector<8x128xf32>
    %491 = arith.addf %490, %489 : vector<8x128xf32>
    %492 = arith.divf %490, %491 : vector<8x128xf32>
    %493 = math.tanh %487 : vector<8x128xf32>
    %494 = vector.extract_strided_slice %492 {offsets = [0, 0], sizes = [8, 32], strides = [1, 1]} : vector<8x128xf32> to vector<8x32xf32>
    %495 = vector.extract_strided_slice %492 {offsets = [0, 32], sizes = [8, 32], strides = [1, 1]} : vector<8x128xf32> to vector<8x32xf32>
    %496 = vector.extract_strided_slice %493 {offsets = [0, 64], sizes = [8, 32], strides = [1, 1]} : vector<8x128xf32> to vector<8x32xf32>
    %497 = vector.extract_strided_slice %492 {offsets = [0, 96], sizes = [8, 32], strides = [1, 1]} : vector<8x128xf32> to vector<8x32xf32>
    %498 = arith.mulf %495, %469 : vector<8x32xf32>
    %499 = arith.mulf %494, %496 : vector<8x32xf32>
    %500 = arith.addf %498, %499 : vector<8x32xf32>
    %501 = math.tanh %500 : vector<8x32xf32>
    %502 = arith.mulf %497, %501 : vector<8x32xf32>
    %c0_167 = arith.constant 0 : index
    %c0_168 = arith.constant 0 : index
    %503 = vector.load %arg8[%c0_167, %c0_168] : memref<32x128xf32, #tpu.memory_space<vmem>>, vector<32x128xf32>
    %cst_169 = arith.constant dense<0.000000e+00> : vector<8x128xf32>
    %504 = tpu.matmul %502, %503, %cst_169 {dimension_numbers = #tpu.dot_dimension_numbers<[1], [0], [0], [1], [0, 0, 1, 1], [], []>} : vector<8x32xf32>, vector<32x128xf32>, vector<8x128xf32> -> vector<8x128xf32>
    %505 = arith.addf %504, %358 : vector<8x128xf32>
    %506 = arith.index_cast %c5_i32_162 : i32 to index
    %c0_170 = arith.constant 0 : index
    %c0_171 = arith.constant 0 : index
    %507 = vector.load %arg10[%506, %c0_170, %c0_171] : memref<8x8x128xf32, #tpu.memory_space<vmem>>, vector<1x8x128xf32>
    %508 = vector.shape_cast %507 : vector<1x8x128xf32> to vector<8x128xf32>
    %509 = vector.shape_cast %505 : vector<8x128xf32> to vector<1x8x128xf32>
    tpu.vector_store %arg10[%506, %c0_170, %c0_171], %509 {strides = array<i32>} : memref<8x8x128xf32, #tpu.memory_space<vmem>>, vector<1x8x128xf32>,
    %510 = arith.index_cast %c5_i32_162 : i32 to index
    %511 = memref.load %arg0[%510] : memref<8xi32, #tpu.memory_space<smem>>
    %c1_i32_172 = arith.constant 1 : i32
    %512 = arith.cmpi eq, %511, %c1_i32_172 : i32
    %513 = arith.extui %512 : i1 to i32
    %c0_i32_173 = arith.constant 0 : i32
    %514 = arith.cmpi ne, %513, %c0_i32_173 : i32
    %515 = scf.if %514 -> (vector<8x128xf32>) {
      %578 = arith.index_cast %c5_i32_162 : i32 to index
      %c0_199 = arith.constant 0 : index
      %c0_200 = arith.constant 0 : index
      %579 = vector.load %arg3[%578, %c0_199, %c0_200] : memref<8x8x128xf32, #tpu.memory_space<vmem>>, vector<1x8x128xf32>
      %580 = vector.shape_cast %579 : vector<1x8x128xf32> to vector<8x128xf32>
      scf.yield %580 : vector<8x128xf32>
    } else {
      %cst_199 = arith.constant dense<0xFF800000> : vector<8xf32>
      %578 = vector.multi_reduction <maximumf>, %505, %cst_199 [1] : vector<8x128xf32> to vector<8xf32>
      %579 = vector.shape_cast %578 : vector<8xf32> to vector<8x1xf32>
      %580 = vector.broadcast %579 : vector<8x1xf32> to vector<8x128xf32>
      %581 = arith.cmpf oeq, %505, %580 : vector<8x128xf32>
      %c128_i32 = arith.constant 128 : i32
      %582 = vector.broadcast %c128_i32 : i32 to vector<8x128xi32>
      %583 = arith.select %581, %355, %582 : vector<8x128xi1>, vector<8x128xi32>
      %cst_200 = arith.constant dense<2147483647> : vector<8xi32>
      %584 = vector.multi_reduction <minsi>, %583, %cst_200 [1] : vector<8x128xi32> to vector<8xi32>
      %585 = vector.shape_cast %584 : vector<8xi32> to vector<8x1xi32>
      %586 = vector.broadcast %585 : vector<8x1xi32> to vector<8x128xi32>
      %587 = arith.cmpi eq, %355, %586 : vector<8x128xi32>
      %588 = arith.extui %587 : vector<8x128xi1> to vector<8x128xi32>
      %589 = arith.sitofp %588 : vector<8x128xi32> to vector<8x128xf32>
      %c0_201 = arith.constant 0 : index
      %c0_202 = arith.constant 0 : index
      %590 = vector.load %arg4[%c0_201, %c0_202] : memref<128x128xf32, #tpu.memory_space<vmem>>, vector<128x128xf32>
      %cst_203 = arith.constant dense<0.000000e+00> : vector<8x128xf32>
      %591 = tpu.matmul %589, %590, %cst_203 {dimension_numbers = #tpu.dot_dimension_numbers<[1], [0], [0], [1], [0, 0, 1, 1], [], []>} : vector<8x128xf32>, vector<128x128xf32>, vector<8x128xf32> -> vector<8x128xf32>
      scf.yield %591 : vector<8x128xf32>
    }
    %c6_i32_174 = arith.constant 6 : i32
    %c0_175 = arith.constant 0 : index
    %c0_176 = arith.constant 0 : index
    %516 = vector.load %arg7[%c0_175, %c0_176] : memref<32x128xf32, #tpu.memory_space<vmem>>, vector<32x128xf32>
    %cst_177 = arith.constant dense<0.000000e+00> : vector<8x128xf32>
    %517 = tpu.matmul %502, %516, %cst_177 {dimension_numbers = #tpu.dot_dimension_numbers<[1], [0], [0], [1], [0, 0, 1, 1], [], []>} : vector<8x32xf32>, vector<32x128xf32>, vector<8x128xf32> -> vector<8x128xf32>
    %518 = arith.addf %515, %517 : vector<8x128xf32>
    %519 = arith.negf %518 : vector<8x128xf32>
    %520 = math.exp %519 : vector<8x128xf32>
    %cst_178 = arith.constant 1.000000e+00 : f32
    %521 = vector.broadcast %cst_178 : f32 to vector<8x128xf32>
    %522 = arith.addf %521, %520 : vector<8x128xf32>
    %523 = arith.divf %521, %522 : vector<8x128xf32>
    %524 = math.tanh %518 : vector<8x128xf32>
    %525 = vector.extract_strided_slice %523 {offsets = [0, 0], sizes = [8, 32], strides = [1, 1]} : vector<8x128xf32> to vector<8x32xf32>
    %526 = vector.extract_strided_slice %523 {offsets = [0, 32], sizes = [8, 32], strides = [1, 1]} : vector<8x128xf32> to vector<8x32xf32>
    %527 = vector.extract_strided_slice %524 {offsets = [0, 64], sizes = [8, 32], strides = [1, 1]} : vector<8x128xf32> to vector<8x32xf32>
    %528 = vector.extract_strided_slice %523 {offsets = [0, 96], sizes = [8, 32], strides = [1, 1]} : vector<8x128xf32> to vector<8x32xf32>
    %529 = arith.mulf %526, %500 : vector<8x32xf32>
    %530 = arith.mulf %525, %527 : vector<8x32xf32>
    %531 = arith.addf %529, %530 : vector<8x32xf32>
    %532 = math.tanh %531 : vector<8x32xf32>
    %533 = arith.mulf %528, %532 : vector<8x32xf32>
    %c0_179 = arith.constant 0 : index
    %c0_180 = arith.constant 0 : index
    %534 = vector.load %arg8[%c0_179, %c0_180] : memref<32x128xf32, #tpu.memory_space<vmem>>, vector<32x128xf32>
    %cst_181 = arith.constant dense<0.000000e+00> : vector<8x128xf32>
    %535 = tpu.matmul %533, %534, %cst_181 {dimension_numbers = #tpu.dot_dimension_numbers<[1], [0], [0], [1], [0, 0, 1, 1], [], []>} : vector<8x32xf32>, vector<32x128xf32>, vector<8x128xf32> -> vector<8x128xf32>
    %536 = arith.addf %535, %358 : vector<8x128xf32>
    %537 = arith.index_cast %c6_i32_174 : i32 to index
    %c0_182 = arith.constant 0 : index
    %c0_183 = arith.constant 0 : index
    %538 = vector.load %arg10[%537, %c0_182, %c0_183] : memref<8x8x128xf32, #tpu.memory_space<vmem>>, vector<1x8x128xf32>
    %539 = vector.shape_cast %538 : vector<1x8x128xf32> to vector<8x128xf32>
    %540 = vector.shape_cast %536 : vector<8x128xf32> to vector<1x8x128xf32>
    tpu.vector_store %arg10[%537, %c0_182, %c0_183], %540 {strides = array<i32>} : memref<8x8x128xf32, #tpu.memory_space<vmem>>, vector<1x8x128xf32>,
    %541 = arith.index_cast %c6_i32_174 : i32 to index
    %542 = memref.load %arg0[%541] : memref<8xi32, #tpu.memory_space<smem>>
    %c1_i32_184 = arith.constant 1 : i32
    %543 = arith.cmpi eq, %542, %c1_i32_184 : i32
    %544 = arith.extui %543 : i1 to i32
    %c0_i32_185 = arith.constant 0 : i32
    %545 = arith.cmpi ne, %544, %c0_i32_185 : i32
    %546 = scf.if %545 -> (vector<8x128xf32>) {
      %578 = arith.index_cast %c6_i32_174 : i32 to index
      %c0_199 = arith.constant 0 : index
      %c0_200 = arith.constant 0 : index
      %579 = vector.load %arg3[%578, %c0_199, %c0_200] : memref<8x8x128xf32, #tpu.memory_space<vmem>>, vector<1x8x128xf32>
      %580 = vector.shape_cast %579 : vector<1x8x128xf32> to vector<8x128xf32>
      scf.yield %580 : vector<8x128xf32>
    } else {
      %cst_199 = arith.constant dense<0xFF800000> : vector<8xf32>
      %578 = vector.multi_reduction <maximumf>, %536, %cst_199 [1] : vector<8x128xf32> to vector<8xf32>
      %579 = vector.shape_cast %578 : vector<8xf32> to vector<8x1xf32>
      %580 = vector.broadcast %579 : vector<8x1xf32> to vector<8x128xf32>
      %581 = arith.cmpf oeq, %536, %580 : vector<8x128xf32>
      %c128_i32 = arith.constant 128 : i32
      %582 = vector.broadcast %c128_i32 : i32 to vector<8x128xi32>
      %583 = arith.select %581, %355, %582 : vector<8x128xi1>, vector<8x128xi32>
      %cst_200 = arith.constant dense<2147483647> : vector<8xi32>
      %584 = vector.multi_reduction <minsi>, %583, %cst_200 [1] : vector<8x128xi32> to vector<8xi32>
      %585 = vector.shape_cast %584 : vector<8xi32> to vector<8x1xi32>
      %586 = vector.broadcast %585 : vector<8x1xi32> to vector<8x128xi32>
      %587 = arith.cmpi eq, %355, %586 : vector<8x128xi32>
      %588 = arith.extui %587 : vector<8x128xi1> to vector<8x128xi32>
      %589 = arith.sitofp %588 : vector<8x128xi32> to vector<8x128xf32>
      %c0_201 = arith.constant 0 : index
      %c0_202 = arith.constant 0 : index
      %590 = vector.load %arg4[%c0_201, %c0_202] : memref<128x128xf32, #tpu.memory_space<vmem>>, vector<128x128xf32>
      %cst_203 = arith.constant dense<0.000000e+00> : vector<8x128xf32>
      %591 = tpu.matmul %589, %590, %cst_203 {dimension_numbers = #tpu.dot_dimension_numbers<[1], [0], [0], [1], [0, 0, 1, 1], [], []>} : vector<8x128xf32>, vector<128x128xf32>, vector<8x128xf32> -> vector<8x128xf32>
      scf.yield %591 : vector<8x128xf32>
    }
    %c7_i32_186 = arith.constant 7 : i32
    %c0_187 = arith.constant 0 : index
    %c0_188 = arith.constant 0 : index
    %547 = vector.load %arg7[%c0_187, %c0_188] : memref<32x128xf32, #tpu.memory_space<vmem>>, vector<32x128xf32>
    %cst_189 = arith.constant dense<0.000000e+00> : vector<8x128xf32>
    %548 = tpu.matmul %533, %547, %cst_189 {dimension_numbers = #tpu.dot_dimension_numbers<[1], [0], [0], [1], [0, 0, 1, 1], [], []>} : vector<8x32xf32>, vector<32x128xf32>, vector<8x128xf32> -> vector<8x128xf32>
    %549 = arith.addf %546, %548 : vector<8x128xf32>
    %550 = arith.negf %549 : vector<8x128xf32>
    %551 = math.exp %550 : vector<8x128xf32>
    %cst_190 = arith.constant 1.000000e+00 : f32
    %552 = vector.broadcast %cst_190 : f32 to vector<8x128xf32>
    %553 = arith.addf %552, %551 : vector<8x128xf32>
    %554 = arith.divf %552, %553 : vector<8x128xf32>
    %555 = math.tanh %549 : vector<8x128xf32>
    %556 = vector.extract_strided_slice %554 {offsets = [0, 0], sizes = [8, 32], strides = [1, 1]} : vector<8x128xf32> to vector<8x32xf32>
    %557 = vector.extract_strided_slice %554 {offsets = [0, 32], sizes = [8, 32], strides = [1, 1]} : vector<8x128xf32> to vector<8x32xf32>
    %558 = vector.extract_strided_slice %555 {offsets = [0, 64], sizes = [8, 32], strides = [1, 1]} : vector<8x128xf32> to vector<8x32xf32>
    %559 = vector.extract_strided_slice %554 {offsets = [0, 96], sizes = [8, 32], strides = [1, 1]} : vector<8x128xf32> to vector<8x32xf32>
    %560 = arith.mulf %557, %531 : vector<8x32xf32>
    %561 = arith.mulf %556, %558 : vector<8x32xf32>
    %562 = arith.addf %560, %561 : vector<8x32xf32>
    %563 = math.tanh %562 : vector<8x32xf32>
    %564 = arith.mulf %559, %563 : vector<8x32xf32>
    %c0_191 = arith.constant 0 : index
    %c0_192 = arith.constant 0 : index
    %565 = vector.load %arg8[%c0_191, %c0_192] : memref<32x128xf32, #tpu.memory_space<vmem>>, vector<32x128xf32>
    %cst_193 = arith.constant dense<0.000000e+00> : vector<8x128xf32>
    %566 = tpu.matmul %564, %565, %cst_193 {dimension_numbers = #tpu.dot_dimension_numbers<[1], [0], [0], [1], [0, 0, 1, 1], [], []>} : vector<8x32xf32>, vector<32x128xf32>, vector<8x128xf32> -> vector<8x128xf32>
    %567 = arith.addf %566, %358 : vector<8x128xf32>
    %568 = arith.index_cast %c7_i32_186 : i32 to index
    %c0_194 = arith.constant 0 : index
    %c0_195 = arith.constant 0 : index
    %569 = vector.load %arg10[%568, %c0_194, %c0_195] : memref<8x8x128xf32, #tpu.memory_space<vmem>>, vector<1x8x128xf32>
    %570 = vector.shape_cast %569 : vector<1x8x128xf32> to vector<8x128xf32>
    %571 = vector.shape_cast %567 : vector<8x128xf32> to vector<1x8x128xf32>
    tpu.vector_store %arg10[%568, %c0_194, %c0_195], %571 {strides = array<i32>} : memref<8x8x128xf32, #tpu.memory_space<vmem>>, vector<1x8x128xf32>,
    %572 = arith.index_cast %c7_i32_186 : i32 to index
    %573 = memref.load %arg0[%572] : memref<8xi32, #tpu.memory_space<smem>>
    %c1_i32_196 = arith.constant 1 : i32
    %574 = arith.cmpi eq, %573, %c1_i32_196 : i32
    %575 = arith.extui %574 : i1 to i32
    %c0_i32_197 = arith.constant 0 : i32
    %576 = arith.cmpi ne, %575, %c0_i32_197 : i32
    %577 = scf.if %576 -> (vector<8x128xf32>) {
      %578 = arith.index_cast %c7_i32_186 : i32 to index
      %c0_199 = arith.constant 0 : index
      %c0_200 = arith.constant 0 : index
      %579 = vector.load %arg3[%578, %c0_199, %c0_200] : memref<8x8x128xf32, #tpu.memory_space<vmem>>, vector<1x8x128xf32>
      %580 = vector.shape_cast %579 : vector<1x8x128xf32> to vector<8x128xf32>
      scf.yield %580 : vector<8x128xf32>
    } else {
      %cst_199 = arith.constant dense<0xFF800000> : vector<8xf32>
      %578 = vector.multi_reduction <maximumf>, %567, %cst_199 [1] : vector<8x128xf32> to vector<8xf32>
      %579 = vector.shape_cast %578 : vector<8xf32> to vector<8x1xf32>
      %580 = vector.broadcast %579 : vector<8x1xf32> to vector<8x128xf32>
      %581 = arith.cmpf oeq, %567, %580 : vector<8x128xf32>
      %c128_i32 = arith.constant 128 : i32
      %582 = vector.broadcast %c128_i32 : i32 to vector<8x128xi32>
      %583 = arith.select %581, %355, %582 : vector<8x128xi1>, vector<8x128xi32>
      %cst_200 = arith.constant dense<2147483647> : vector<8xi32>
      %584 = vector.multi_reduction <minsi>, %583, %cst_200 [1] : vector<8x128xi32> to vector<8xi32>
      %585 = vector.shape_cast %584 : vector<8xi32> to vector<8x1xi32>
      %586 = vector.broadcast %585 : vector<8x1xi32> to vector<8x128xi32>
      %587 = arith.cmpi eq, %355, %586 : vector<8x128xi32>
      %588 = arith.extui %587 : vector<8x128xi1> to vector<8x128xi32>
      %589 = arith.sitofp %588 : vector<8x128xi32> to vector<8x128xf32>
      %c0_201 = arith.constant 0 : index
      %c0_202 = arith.constant 0 : index
      %590 = vector.load %arg4[%c0_201, %c0_202] : memref<128x128xf32, #tpu.memory_space<vmem>>, vector<128x128xf32>
      %cst_203 = arith.constant dense<0.000000e+00> : vector<8x128xf32>
      %591 = tpu.matmul %589, %590, %cst_203 {dimension_numbers = #tpu.dot_dimension_numbers<[1], [0], [0], [1], [0, 0, 1, 1], [], []>} : vector<8x128xf32>, vector<128x128xf32>, vector<8x128xf32> -> vector<8x128xf32>
      scf.yield %591 : vector<8x128xf32>
    }
    %c7_i32_198 = arith.constant 7 : i32
    return
  }
}

</mosaic_0001>

<llo_original>
// kernel: seq2seq_forward.1
$region0: #{seq2seq_forward.1}
  #allocation0 [shape = 'u32[]', space=smem, size = 0x4, offset = 0x4, fixed_abs, tag = 'smem constant byte address 0x4 - core index']
  #allocation1 [shape = 'u32[144,128]{1,0:T(1,128)}', space=vmem, size = 0x12000, scoped, tag = 'internal scratch']
  %s0 = inlined_call_operand.vmem [shape: s32[8], index: 0, kind: input, shape index: {}]
  %s1 = inlined_call_operand.vmem [shape: f32[8,8,128], index: 1, kind: input, shape index: {}]
  %s2 = inlined_call_operand.vmem [shape: f32[8,8,128], index: 2, kind: input, shape index: {}]
  %s3 = inlined_call_operand.vmem [shape: f32[8,8,128], index: 3, kind: input, shape index: {}]
  %s4 = inlined_call_operand.vmem [shape: f32[128,128], index: 4, kind: input, shape index: {}]
  %s5 = inlined_call_operand.vmem [shape: f32[32,128], index: 5, kind: input, shape index: {}]
  %s6 = inlined_call_operand.vmem [shape: f32[32,128], index: 6, kind: input, shape index: {}]
  %s7 = inlined_call_operand.vmem [shape: f32[32,128], index: 7, kind: input, shape index: {}]
  %s8 = inlined_call_operand.vmem [shape: f32[32,128], index: 8, kind: input, shape index: {}]
  %s9 = inlined_call_operand.vmem [shape: f32[1,128], index: 9, kind: input, shape index: {}]
  %s10 = inlined_call_operand.hbm [shape: f32[8,8,128], index: 10, kind: output, shape index: {}]
  %s11 = sld [smem:[#allocation0]]
  $region102: #{seq2seq_forward.1} parent=0
    _
  %s13 = ssub.s32 1, %s11
  %s14 = scalar_select 0, %s13, %s11
  $region1: #{seq2seq_forward.1} parent=0
    #allocation2 [shape = 'u8[512]{0}', space=smem, size = 0x200, scoped, tag = 'input window, operand 0, single buffered']
    #allocation3 [shape = 's32[1]{0}', space=sflag, size = 0x4, scoped, tag = 'scoped memory for seq2seq_forward.1']
    #allocation4 [shape = 's32[1]{0}', space=sflag, size = 0x4, scoped, tag = 'scoped memory for seq2seq_forward.1']
    #allocation5 [shape = 'u8[32768]{0}', space=vmem, size = 0x8000, scoped, tag = 'output window, operand 0, single buffered']
    %15 = vsyncpa [#allocation4], 0
    %16 = vsyncpa [#allocation3], 0
    // Predicated region
    $region2: #{seq2seq_forward.1} parent=1 // pred_check
      _
    $region3: #{seq2seq_forward.1} parent=1 // pred_check_branch
      %18 = sbr.rel (0) target = $region5
    $region4: #{seq2seq_forward.1} parent=1 // pred_region
      %s20 = ssub.s32 16, 16
      %21 = vsyncadd [#allocation4], %s20
      %s23 = sshll.u32 %s0, 4
      %s24 = int_to_ptr.vmem [resolvable:$true] %s23
      %26 = dma.vmem_to_smem %s24, 16, [#allocation2], [#allocation4]
    $region5: #{seq2seq_forward.1} parent=1 // pred_fallthru
      _
    // Predicated region
    $region6: #{seq2seq_forward.1} parent=1 // pred_check
      _
    $region7: #{seq2seq_forward.1} parent=1 // pred_check_branch
      %28 = sbr.rel (0) target = $region9
    $region8: #{seq2seq_forward.1} parent=1 // pred_region
      _
    $region9: #{seq2seq_forward.1} parent=1 // pred_fallthru
      _
    // Predicated region
    $region10: #{seq2seq_forward.1} parent=1 // pred_check
      _
    $region11: #{seq2seq_forward.1} parent=1 // pred_check_branch
      %30 = sbr.rel (0) target = $region13
    $region12: #{seq2seq_forward.1} parent=1 // pred_region
      _
    $region13: #{seq2seq_forward.1} parent=1 // pred_fallthru
      _
    // Predicated region
    $region14: #{seq2seq_forward.1} parent=1 // pred_check
      _
    $region15: #{seq2seq_forward.1} parent=1 // pred_check_branch
      %32 = sbr.rel (0) target = $region17
    $region16: #{seq2seq_forward.1} parent=1 // pred_region
      _
    $region17: #{seq2seq_forward.1} parent=1 // pred_fallthru
      _
    // Predicated region
    $region18: #{seq2seq_forward.1} parent=1 // pred_check
      _
    $region19: #{seq2seq_forward.1} parent=1 // pred_check_branch
      %34 = sbr.rel (0) target = $region21
    $region20: #{seq2seq_forward.1} parent=1 // pred_region
      _
    $region21: #{seq2seq_forward.1} parent=1 // pred_fallthru
      _
    // Predicated region
    $region22: #{seq2seq_forward.1} parent=1 // pred_check
      _
    $region23: #{seq2seq_forward.1} parent=1 // pred_check_branch
      %36 = sbr.rel (0) target = $region25
    $region24: #{seq2seq_forward.1} parent=1 // pred_region
      _
    $region25: #{seq2seq_forward.1} parent=1 // pred_fallthru
      _
    // Predicated region
    $region26: #{seq2seq_forward.1} parent=1 // pred_check
      _
    $region27: #{seq2seq_forward.1} parent=1 // pred_check_branch
      %38 = sbr.rel (0) target = $region29
    $region28: #{seq2seq_forward.1} parent=1 // pred_region
      _
    $region29: #{seq2seq_forward.1} parent=1 // pred_fallthru
      _
    // Predicated region
    $region30: #{seq2seq_forward.1} parent=1 // pred_check
      _
    $region31: #{seq2seq_forward.1} parent=1 // pred_check_branch
      %40 = sbr.rel (0) target = $region33
    $region32: #{seq2seq_forward.1} parent=1 // pred_region
      _
    $region33: #{seq2seq_forward.1} parent=1 // pred_fallthru
      _
    // Predicated region
    $region34: #{seq2seq_forward.1} parent=1 // pred_check
      _
    $region35: #{seq2seq_forward.1} parent=1 // pred_check_branch
      %42 = sbr.rel (0) target = $region37
    $region36: #{seq2seq_forward.1} parent=1 // pred_region
      _
    $region37: #{seq2seq_forward.1} parent=1 // pred_fallthru
      _
    // Predicated region
    $region38: #{seq2seq_forward.1} parent=1 // pred_check
      _
    $region39: #{seq2seq_forward.1} parent=1 // pred_check_branch
      %44 = sbr.rel (0) target = $region41
    $region40: #{seq2seq_forward.1} parent=1 // pred_region
      _
    $region41: #{seq2seq_forward.1} parent=1 // pred_fallthru
      _
    // Predicated region
    $region42: #{seq2seq_forward.1} parent=1 // pred_check
      _
    $region43: #{seq2seq_forward.1} parent=1 // pred_check_branch
      %46 = sbr.rel (0) target = $region45
    $region44: #{seq2seq_forward.1} parent=1 // pred_region
      %47 = dma.done [#allocation4], 16
    $region45: #{seq2seq_forward.1} parent=1 // pred_fallthru
      _
    %48 = sfence
    %v49 = vld [vmem:[%s1] sm:$0xff]
    %v50 = vld [vmem:[%s5] sm:$0xff]
    %v51 = vld [vmem:[%s5 + $0x8] sm:$0xff]
    %v52 = vld [vmem:[%s5 + $0x10] sm:$0xff]
    %v53 = vld [vmem:[%s5 + $0x18] sm:$0xff]
    %vm54 = vcmask 261120
    %v56 = vsel %vm54, 0.0, 0
    %58 = vmatprep.subr.mxu0 0.0
    %59 = vmatpush1.msra.mxu0 0.0
    %60 = vmatprep.subr.mxu0 0.0
    %61 = vmatpush1.msra.mxu0 0.0
    %62 = vmatprep.subr.mxu0 0.0
    %63 = vmatpush1.msra.mxu0 0.0
    %64 = vmatprep.subr.mxu0 0.0
    %65 = vmatpush1.msra.mxu0 0.0
    %66 = vmatprep.subr.mxu0 0.0
    %67 = vmatpush1.msra.mxu0 0.0
    %68 = vmatprep.subr.mxu0 0.0
    %69 = vmatpush1.msra.mxu0 0.0
    %70 = vmatprep.subr.mxu0 0.0
    %71 = vmatpush1.msra.mxu0 0.0
    %72 = vmatprep.subr.mxu0 0.0
    %73 = vmatpush1.msra.mxu0 0.0
    %74 = vmatprep.subr.mxu0 0.0
    %75 = vmatpush1.msra.mxu0 0.0
    %76 = vmatprep.subr.mxu0 0.0
    %77 = vmatpush1.msra.mxu0 0.0
    %78 = vmatprep.subr.mxu0 0.0
    %79 = vmatpush1.msra.mxu0 0.0
    %80 = vmatprep.subr.mxu0 0.0
    %81 = vmatpush1.msra.mxu0 0.0
    %82 = vmatprep.subr.mxu0 0.0
    %83 = vmatpush1.msra.mxu0 %v53
    %84 = vmatprep.subr.mxu0 0.0
    %85 = vmatpush1.msra.mxu0 %v52
    %86 = vmatprep.subr.mxu0 0.0
    %87 = vmatpush1.msra.mxu0 %v51
    %88 = vmatprep.subr.mxu0 0.0
    %89 = vmatpush1.msra.mxu0 %v50
    %90 = vmatprep.subr.mxu0 0.0
    %91 = vmatpush2.msra.mxu0 0.0
    %92 = vmatprep.subr.mxu0 0.0
    %93 = vmatpush2.msra.mxu0 0.0
    %94 = vmatprep.subr.mxu0 0.0
    %95 = vmatpush2.msra.mxu0 0.0
    %96 = vmatprep.subr.mxu0 0.0
    %97 = vmatpush2.msra.mxu0 0.0
    %98 = vmatprep.subr.mxu0 0.0
    %99 = vmatpush2.msra.mxu0 0.0
    %100 = vmatprep.subr.mxu0 0.0
    %101 = vmatpush2.msra.mxu0 0.0
    %102 = vmatprep.subr.mxu0 0.0
    %103 = vmatpush2.msra.mxu0 0.0
    %104 = vmatprep.subr.mxu0 0.0
    %105 = vmatpush2.msra.mxu0 0.0
    %106 = vmatprep.subr.mxu0 0.0
    %107 = vmatpush2.msra.mxu0 0.0
    %108 = vmatprep.subr.mxu0 0.0
    %109 = vmatpush2.msra.mxu0 0.0
    %110 = vmatprep.subr.mxu0 0.0
    %111 = vmatpush2.msra.mxu0 0.0
    %112 = vmatprep.subr.mxu0 0.0
    %113 = vmatpush2.msra.mxu0 0.0
    %114 = vmatprep.subr.mxu0 0.0
    %115 = vmatpush2.msra.mxu0 0.0
    %116 = vmatprep.subr.mxu0 0.0
    %117 = vmatpush2.msra.mxu0 0.0
    %118 = vmatprep.subr.mxu0 0.0
    %119 = vmatpush2.msra.mxu0 0.0
    %120 = vmatprep.subr.mxu0 0.0
    %121 = vmatpush2.msra.mxu0 0.0
    %122 = vmatprep.mubr.f32.mxu0 0.0
    %123 = vmatmul.mubr.f32.gmra.mxu0 %v56
    %v124 = vpop.f32.mrf.mxu0
    %v125 = vadd.f32 0.0, %v124
    %v126 = vpop.f32.mrf.mxu0
    %127 = vdwg.mxu0
    %v128 = vadd.f32 %v49, %v125
    %v129 = vxor.u32 %v128, 2147483648
    %v130 = vmul.f32 %v129, 1.442695
    %v131 = vpow.pop %v130
    %v132 = vadd.f32 %v131, 1.0
    %v133 = vrcp.pop %v132
    %v134 = vmul.f32 1.0, %v133
    %v135 = vtanh.pop %v128
    %v136 = vmul.f32 %v134, 0.0
    %138 = vrot.lane.b32.xlu0 %v135, 64
    %v139 = vpop.permute.xlu0 %138
    %v141 = vmul.f32 %v134, %v139
    %143 = vrot.lane.b32.xlu0 %v141, 32
    %v144 = vpop.permute.xlu0 %143
    %v146 = vadd.f32 %v136, %v144
    %v147 = vtanh.pop %v146
    %149 = vrot.lane.b32.xlu0 %v147, 64
    %v150 = vpop.permute.xlu0 %149
    %v152 = vmul.f32 %v134, %v150
    %s153 = scalar_lea.vmem %s2, 56
    %v154 = vld [vmem:[%s153] sm:$0xff]
    %v155 = vld [vmem:[%s6] sm:$0xff]
    %v156 = vld [vmem:[%s6 + $0x8] sm:$0xff]
    %v157 = vld [vmem:[%s6 + $0x10] sm:$0xff]
    %v158 = vld [vmem:[%s6 + $0x18] sm:$0xff]
    %159 = vmatprep.subr.mxu0 0.0
    %160 = vmatpush1.msra.mxu0 0.0
    %161 = vmatprep.subr.mxu0 0.0
    %162 = vmatpush1.msra.mxu0 0.0
    %163 = vmatprep.subr.mxu0 0.0
    %164 = vmatpush1.msra.mxu0 0.0
    %165 = vmatprep.subr.mxu0 0.0
    %166 = vmatpush1.msra.mxu0 0.0
    %167 = vmatprep.subr.mxu0 0.0
    %168 = vmatpush1.msra.mxu0 0.0
    %169 = vmatprep.subr.mxu0 0.0
    %170 = vmatpush1.msra.mxu0 0.0
    %171 = vmatprep.subr.mxu0 0.0
    %172 = vmatpush1.msra.mxu0 0.0
    %173 = vmatprep.subr.mxu0 0.0
    %174 = vmatpush1.msra.mxu0 0.0
    %175 = vmatprep.subr.mxu0 0.0
    %176 = vmatpush1.msra.mxu0 0.0
    %177 = vmatprep.subr.mxu0 0.0
    %178 = vmatpush1.msra.mxu0 0.0
    %179 = vmatprep.subr.mxu0 0.0
    %180 = vmatpush1.msra.mxu0 0.0
    %181 = vmatprep.subr.mxu0 0.0
    %182 = vmatpush1.msra.mxu0 0.0
    %183 = vmatprep.subr.mxu0 0.0
    %184 = vmatpush1.msra.mxu0 %v158
    %185 = vmatprep.subr.mxu0 0.0
    %186 = vmatpush1.msra.mxu0 %v157
    %187 = vmatprep.subr.mxu0 0.0
    %188 = vmatpush1.msra.mxu0 %v156
    %189 = vmatprep.subr.mxu0 0.0
    %190 = vmatpush1.msra.mxu0 %v155
    %191 = vmatprep.subr.mxu0 0.0
    %192 = vmatpush2.msra.mxu0 0.0
    %193 = vmatprep.subr.mxu0 0.0
    %194 = vmatpush2.msra.mxu0 0.0
    %195 = vmatprep.subr.mxu0 0.0
    %196 = vmatpush2.msra.mxu0 0.0
    %197 = vmatprep.subr.mxu0 0.0
    %198 = vmatpush2.msra.mxu0 0.0
    %199 = vmatprep.subr.mxu0 0.0
    %200 = vmatpush2.msra.mxu0 0.0
    %201 = vmatprep.subr.mxu0 0.0
    %202 = vmatpush2.msra.mxu0 0.0
    %203 = vmatprep.subr.mxu0 0.0
    %204 = vmatpush2.msra.mxu0 0.0
    %205 = vmatprep.subr.mxu0 0.0
    %206 = vmatpush2.msra.mxu0 0.0
    %207 = vmatprep.subr.mxu0 0.0
    %208 = vmatpush2.msra.mxu0 0.0
    %209 = vmatprep.subr.mxu0 0.0
    %210 = vmatpush2.msra.mxu0 0.0
    %211 = vmatprep.subr.mxu0 0.0
    %212 = vmatpush2.msra.mxu0 0.0
    %213 = vmatprep.subr.mxu0 0.0
    %214 = vmatpush2.msra.mxu0 0.0
    %215 = vmatprep.subr.mxu0 0.0
    %216 = vmatpush2.msra.mxu0 0.0
    %217 = vmatprep.subr.mxu0 0.0
    %218 = vmatpush2.msra.mxu0 0.0
    %219 = vmatprep.subr.mxu0 0.0
    %220 = vmatpush2.msra.mxu0 0.0
    %221 = vmatprep.subr.mxu0 0.0
    %222 = vmatpush2.msra.mxu0 0.0
    %223 = vmatprep.mubr.f32.mxu0 0.0
    %224 = vmatmul.mubr.f32.gmra.mxu0 %v56
    %v225 = vpop.f32.mrf.mxu0
    %v226 = vadd.f32 0.0, %v225
    %v227 = vpop.f32.mrf.mxu0
    %228 = vdwg.mxu0
    %v229 = vadd.f32 %v154, %v226
    %v230 = vxor.u32 %v229, 2147483648
    %v231 = vmul.f32 %v230, 1.442695
    %v232 = vpow.pop %v231
    %v233 = vadd.f32 %v232, 1.0
    %v234 = vrcp.pop %v233
    %v235 = vmul.f32 1.0, %v234
    %v236 = vtanh.pop %v229
    %v237 = vmul.f32 %v235, 0.0
    %239 = vrot.lane.b32.xlu0 %v236, 64
    %v240 = vpop.permute.xlu0 %239
    %v242 = vmul.f32 %v235, %v240
    %244 = vrot.lane.b32.xlu0 %v242, 32
    %v245 = vpop.permute.xlu0 %244
    %v247 = vadd.f32 %v237, %v245
    %v248 = vtanh.pop %v247
    %250 = vrot.lane.b32.xlu0 %v248, 64
    %v251 = vpop.permute.xlu0 %250
    %v253 = vmul.f32 %v235, %v251
    %s254 = scalar_lea.vmem %s1, 8
    %v255 = vld [vmem:[%s254] sm:$0xff]
    %257 = vrot.lane.b32.xlu0 %v152, 32
    %v258 = vpop.permute.xlu0 %257
    %v259 = vsel %vm54, %v258, 0
    %261 = vmatprep.subr.mxu0 0.0
    %262 = vmatpush1.msra.mxu0 0.0
    %263 = vmatprep.subr.mxu0 0.0
    %264 = vmatpush1.msra.mxu0 0.0
    %265 = vmatprep.subr.mxu0 0.0
    %266 = vmatpush1.msra.mxu0 0.0
    %267 = vmatprep.subr.mxu0 0.0
    %268 = vmatpush1.msra.mxu0 0.0
    %269 = vmatprep.subr.mxu0 0.0
    %270 = vmatpush1.msra.mxu0 0.0
    %271 = vmatprep.subr.mxu0 0.0
    %272 = vmatpush1.msra.mxu0 0.0
    %273 = vmatprep.subr.mxu0 0.0
    %274 = vmatpush1.msra.mxu0 0.0
    %275 = vmatprep.subr.mxu0 0.0
    %276 = vmatpush1.msra.mxu0 0.0
    %277 = vmatprep.subr.mxu0 0.0
    %278 = vmatpush1.msra.mxu0 0.0
    %279 = vmatprep.subr.mxu0 0.0
    %280 = vmatpush1.msra.mxu0 0.0
    %281 = vmatprep.subr.mxu0 0.0
    %282 = vmatpush1.msra.mxu0 0.0
    %283 = vmatprep.subr.mxu0 0.0
    %284 = vmatpush1.msra.mxu0 0.0
    %285 = vmatprep.subr.mxu0 0.0
    %286 = vmatpush1.msra.mxu0 %v53
    %287 = vmatprep.subr.mxu0 0.0
    %288 = vmatpush1.msra.mxu0 %v52
    %289 = vmatprep.subr.mxu0 0.0
    %290 = vmatpush1.msra.mxu0 %v51
    %291 = vmatprep.subr.mxu0 0.0
    %292 = vmatpush1.msra.mxu0 %v50
    %293 = vmatprep.subr.mxu0 0.0
    %294 = vmatpush2.msra.mxu0 0.0
    %295 = vmatprep.subr.mxu0 0.0
    %296 = vmatpush2.msra.mxu0 0.0
    %297 = vmatprep.subr.mxu0 0.0
    %298 = vmatpush2.msra.mxu0 0.0
    %299 = vmatprep.subr.mxu0 0.0
    %300 = vmatpush2.msra.mxu0 0.0
    %301 = vmatprep.subr.mxu0 0.0
    %302 = vmatpush2.msra.mxu0 0.0
    %303 = vmatprep.subr.mxu0 0.0
    %304 = vmatpush2.msra.mxu0 0.0
    %305 = vmatprep.subr.mxu0 0.0
    %306 = vmatpush2.msra.mxu0 0.0
    %307 = vmatprep.subr.mxu0 0.0
    %308 = vmatpush2.msra.mxu0 0.0
    %309 = vmatprep.subr.mxu0 0.0
    %310 = vmatpush2.msra.mxu0 0.0
    %311 = vmatprep.subr.mxu0 0.0
    %312 = vmatpush2.msra.mxu0 0.0
    %313 = vmatprep.subr.mxu0 0.0
    %314 = vmatpush2.msra.mxu0 0.0
    %315 = vmatprep.subr.mxu0 0.0
    %316 = vmatpush2.msra.mxu0 0.0
    %317 = vmatprep.subr.mxu0 0.0
    %318 = vmatpush2.msra.mxu0 0.0
    %319 = vmatprep.subr.mxu0 0.0
    %320 = vmatpush2.msra.mxu0 0.0
    %321 = vmatprep.subr.mxu0 0.0
    %322 = vmatpush2.msra.mxu0 0.0
    %323 = vmatprep.subr.mxu0 0.0
    %324 = vmatpush2.msra.mxu0 0.0
    %325 = vmatprep.mubr.f32.mxu0 0.0
    %326 = vmatmul.mubr.f32.gmra.mxu0 %v259
    %v327 = vpop.f32.mrf.mxu0
    %v328 = vadd.f32 0.0, %v327
    %v329 = vpop.f32.mrf.mxu0
    %330 = vdwg.mxu0
    %v331 = vadd.f32 %v255, %v328
    %v332 = vxor.u32 %v331, 2147483648
    %v333 = vmul.f32 %v332, 1.442695
    %v334 = vpow.pop %v333
    %v335 = vadd.f32 %v334, 1.0
    %v336 = vrcp.pop %v335
    %v337 = vmul.f32 1.0, %v336
    %v338 = vtanh.pop %v331
    %v339 = vmul.f32 %v337, %v146
    %341 = vrot.lane.b32.xlu0 %v338, 64
    %v342 = vpop.permute.xlu0 %341
    %v344 = vmul.f32 %v337, %v342
    %346 = vrot.lane.b32.xlu0 %v344, 32
    %v347 = vpop.permute.xlu0 %346
    %v349 = vadd.f32 %v339, %v347
    %v350 = vtanh.pop %v349
    %352 = vrot.lane.b32.xlu0 %v350, 64
    %v353 = vpop.permute.xlu0 %352
    %v355 = vmul.f32 %v337, %v353
    %s356 = scalar_lea.vmem %s2, 48
    %v357 = vld [vmem:[%s356] sm:$0xff]
    %359 = vrot.lane.b32.xlu0 %v253, 32
    %v360 = vpop.permute.xlu0 %359
    %v361 = vsel %vm54, %v360, 0
    %363 = vmatprep.subr.mxu0 0.0
    %364 = vmatpush1.msra.mxu0 0.0
    %365 = vmatprep.subr.mxu0 0.0
    %366 = vmatpush1.msra.mxu0 0.0
    %367 = vmatprep.subr.mxu0 0.0
    %368 = vmatpush1.msra.mxu0 0.0
    %369 = vmatprep.subr.mxu0 0.0
    %370 = vmatpush1.msra.mxu0 0.0
    %371 = vmatprep.subr.mxu0 0.0
    %372 = vmatpush1.msra.mxu0 0.0
    %373 = vmatprep.subr.mxu0 0.0
    %374 = vmatpush1.msra.mxu0 0.0
    %375 = vmatprep.subr.mxu0 0.0
    %376 = vmatpush1.msra.mxu0 0.0
    %377 = vmatprep.subr.mxu0 0.0
    %378 = vmatpush1.msra.mxu0 0.0
    %379 = vmatprep.subr.mxu0 0.0
    %380 = vmatpush1.msra.mxu0 0.0
    %381 = vmatprep.subr.mxu0 0.0
    %382 = vmatpush1.msra.mxu0 0.0
    %383 = vmatprep.subr.mxu0 0.0
    %384 = vmatpush1.msra.mxu0 0.0
    %385 = vmatprep.subr.mxu0 0.0
    %386 = vmatpush1.msra.mxu0 0.0
    %387 = vmatprep.subr.mxu0 0.0
    %388 = vmatpush1.msra.mxu0 %v158
    %389 = vmatprep.subr.mxu0 0.0
    %390 = vmatpush1.msra.mxu0 %v157
    %391 = vmatprep.subr.mxu0 0.0
    %392 = vmatpush1.msra.mxu0 %v156
    %393 = vmatprep.subr.mxu0 0.0
    %394 = vmatpush1.msra.mxu0 %v155
    %395 = vmatprep.subr.mxu0 0.0
    %396 = vmatpush2.msra.mxu0 0.0
    %397 = vmatprep.subr.mxu0 0.0
    %398 = vmatpush2.msra.mxu0 0.0
    %399 = vmatprep.subr.mxu0 0.0
    %400 = vmatpush2.msra.mxu0 0.0
    %401 = vmatprep.subr.mxu0 0.0
    %402 = vmatpush2.msra.mxu0 0.0
    %403 = vmatprep.subr.mxu0 0.0
    %404 = vmatpush2.msra.mxu0 0.0
    %405 = vmatprep.subr.mxu0 0.0
    %406 = vmatpush2.msra.mxu0 0.0
    %407 = vmatprep.subr.mxu0 0.0
    %408 = vmatpush2.msra.mxu0 0.0
    %409 = vmatprep.subr.mxu0 0.0
    %410 = vmatpush2.msra.mxu0 0.0
    %411 = vmatprep.subr.mxu0 0.0
    %412 = vmatpush2.msra.mxu0 0.0
    %413 = vmatprep.subr.mxu0 0.0
    %414 = vmatpush2.msra.mxu0 0.0
    %415 = vmatprep.subr.mxu0 0.0
    %416 = vmatpush2.msra.mxu0 0.0
    %417 = vmatprep.subr.mxu0 0.0
    %418 = vmatpush2.msra.mxu0 0.0
    %419 = vmatprep.subr.mxu0 0.0
    %420 = vmatpush2.msra.mxu0 0.0
    %421 = vmatprep.subr.mxu0 0.0
    %422 = vmatpush2.msra.mxu0 0.0
    %423 = vmatprep.subr.mxu0 0.0
    %424 = vmatpush2.msra.mxu0 0.0
    %425 = vmatprep.subr.mxu0 0.0
    %426 = vmatpush2.msra.mxu0 0.0
    %427 = vmatprep.mubr.f32.mxu0 0.0
    %428 = vmatmul.mubr.f32.gmra.mxu0 %v361
    %v429 = vpop.f32.mrf.mxu0
    %v430 = vadd.f32 0.0, %v429
    %v431 = vpop.f32.mrf.mxu0
    %432 = vdwg.mxu0
    %v433 = vadd.f32 %v357, %v430
    %v434 = vxor.u32 %v433, 2147483648
    %v435 = vmul.f32 %v434, 1.442695
    %v436 = vpow.pop %v435
    %v437 = vadd.f32 %v436, 1.0
    %v438 = vrcp.pop %v437
    %v439 = vmul.f32 1.0, %v438
    %v440 = vtanh.pop %v433
    %v441 = vmul.f32 %v439, %v247
    %443 = vrot.lane.b32.xlu0 %v440, 64
    %v444 = vpop.permute.xlu0 %443
    %v446 = vmul.f32 %v439, %v444
    %448 = vrot.lane.b32.xlu0 %v446, 32
    %v449 = vpop.permute.xlu0 %448
    %v451 = vadd.f32 %v441, %v449
    %v452 = vtanh.pop %v451
    %454 = vrot.lane.b32.xlu0 %v452, 64
    %v455 = vpop.permute.xlu0 %454
    %v457 = vmul.f32 %v439, %v455
    %s458 = scalar_lea.vmem %s1, 16
    %v459 = vld [vmem:[%s458] sm:$0xff]
    %461 = vrot.lane.b32.xlu0 %v355, 32
    %v462 = vpop.permute.xlu0 %461
    %v463 = vsel %vm54, %v462, 0
    %465 = vmatprep.subr.mxu0 0.0
    %466 = vmatpush1.msra.mxu0 0.0
    %467 = vmatprep.subr.mxu0 0.0
    %468 = vmatpush1.msra.mxu0 0.0
    %469 = vmatprep.subr.mxu0 0.0
    %470 = vmatpush1.msra.mxu0 0.0
    %471 = vmatprep.subr.mxu0 0.0
    %472 = vmatpush1.msra.mxu0 0.0
    %473 = vmatprep.subr.mxu0 0.0
    %474 = vmatpush1.msra.mxu0 0.0
    %475 = vmatprep.subr.mxu0 0.0
    %476 = vmatpush1.msra.mxu0 0.0
    %477 = vmatprep.subr.mxu0 0.0
    %478 = vmatpush1.msra.mxu0 0.0
    %479 = vmatprep.subr.mxu0 0.0
    %480 = vmatpush1.msra.mxu0 0.0
    %481 = vmatprep.subr.mxu0 0.0
    %482 = vmatpush1.msra.mxu0 0.0
    %483 = vmatprep.subr.mxu0 0.0
    %484 = vmatpush1.msra.mxu0 0.0
    %485 = vmatprep.subr.mxu0 0.0
    %486 = vmatpush1.msra.mxu0 0.0
    %487 = vmatprep.subr.mxu0 0.0
    %488 = vmatpush1.msra.mxu0 0.0
    %489 = vmatprep.subr.mxu0 0.0
    %490 = vmatpush1.msra.mxu0 %v53
    %491 = vmatprep.subr.mxu0 0.0
    %492 = vmatpush1.msra.mxu0 %v52
    %493 = vmatprep.subr.mxu0 0.0
    %494 = vmatpush1.msra.mxu0 %v51
    %495 = vmatprep.subr.mxu0 0.0
    %496 = vmatpush1.msra.mxu0 %v50
    %497 = vmatprep.subr.mxu0 0.0
    %498 = vmatpush2.msra.mxu0 0.0
    %499 = vmatprep.subr.mxu0 0.0
    %500 = vmatpush2.msra.mxu0 0.0
    %501 = vmatprep.subr.mxu0 0.0
    %502 = vmatpush2.msra.mxu0 0.0
    %503 = vmatprep.subr.mxu0 0.0
    %504 = vmatpush2.msra.mxu0 0.0
    %505 = vmatprep.subr.mxu0 0.0
    %506 = vmatpush2.msra.mxu0 0.0
    %507 = vmatprep.subr.mxu0 0.0
    %508 = vmatpush2.msra.mxu0 0.0
    %509 = vmatprep.subr.mxu0 0.0
    %510 = vmatpush2.msra.mxu0 0.0
    %511 = vmatprep.subr.mxu0 0.0
    %512 = vmatpush2.msra.mxu0 0.0
    %513 = vmatprep.subr.mxu0 0.0
    %514 = vmatpush2.msra.mxu0 0.0
    %515 = vmatprep.subr.mxu0 0.0
    %516 = vmatpush2.msra.mxu0 0.0
    %517 = vmatprep.subr.mxu0 0.0
    %518 = vmatpush2.msra.mxu0 0.0
    %519 = vmatprep.subr.mxu0 0.0
    %520 = vmatpush2.msra.mxu0 0.0
    %521 = vmatprep.subr.mxu0 0.0
    %522 = vmatpush2.msra.mxu0 0.0
    %523 = vmatprep.subr.mxu0 0.0
    %524 = vmatpush2.msra.mxu0 0.0
    %525 = vmatprep.subr.mxu0 0.0
    %526 = vmatpush2.msra.mxu0 0.0
    %527 = vmatprep.subr.mxu0 0.0
    %528 = vmatpush2.msra.mxu0 0.0
    %529 = vmatprep.mubr.f32.mxu0 0.0
    %530 = vmatmul.mubr.f32.gmra.mxu0 %v463
    %v531 = vpop.f32.mrf.mxu0
    %v532 = vadd.f32 0.0, %v531
    %v533 = vpop.f32.mrf.mxu0
    %534 = vdwg.mxu0
    %v535 = vadd.f32 %v459, %v532
    %v536 = vxor.u32 %v535, 2147483648
    %v537 = vmul.f32 %v536, 1.442695
    %v538 = vpow.pop %v537
    %v539 = vadd.f32 %v538, 1.0
    %v540 = vrcp.pop %v539
    %v541 = vmul.f32 1.0, %v540
    %v542 = vtanh.pop %v535
    %v543 = vmul.f32 %v541, %v349
    %545 = vrot.lane.b32.xlu0 %v542, 64
    %v546 = vpop.permute.xlu0 %545
    %v548 = vmul.f32 %v541, %v546
    %550 = vrot.lane.b32.xlu0 %v548, 32
    %v551 = vpop.permute.xlu0 %550
    %v553 = vadd.f32 %v543, %v551
    %v554 = vtanh.pop %v553
    %556 = vrot.lane.b32.xlu0 %v554, 64
    %v557 = vpop.permute.xlu0 %556
    %v559 = vmul.f32 %v541, %v557
    %s560 = scalar_lea.vmem %s2, 40
    %v561 = vld [vmem:[%s560] sm:$0xff]
    %563 = vrot.lane.b32.xlu0 %v457, 32
    %v564 = vpop.permute.xlu0 %563
    %v565 = vsel %vm54, %v564, 0
    %567 = vmatprep.subr.mxu0 0.0
    %568 = vmatpush1.msra.mxu0 0.0
    %569 = vmatprep.subr.mxu0 0.0
    %570 = vmatpush1.msra.mxu0 0.0
    %571 = vmatprep.subr.mxu0 0.0
    %572 = vmatpush1.msra.mxu0 0.0
    %573 = vmatprep.subr.mxu0 0.0
    %574 = vmatpush1.msra.mxu0 0.0
    %575 = vmatprep.subr.mxu0 0.0
    %576 = vmatpush1.msra.mxu0 0.0
    %577 = vmatprep.subr.mxu0 0.0
    %578 = vmatpush1.msra.mxu0 0.0
    %579 = vmatprep.subr.mxu0 0.0
    %580 = vmatpush1.msra.mxu0 0.0
    %581 = vmatprep.subr.mxu0 0.0
    %582 = vmatpush1.msra.mxu0 0.0
    %583 = vmatprep.subr.mxu0 0.0
    %584 = vmatpush1.msra.mxu0 0.0
    %585 = vmatprep.subr.mxu0 0.0
    %586 = vmatpush1.msra.mxu0 0.0
    %587 = vmatprep.subr.mxu0 0.0
    %588 = vmatpush1.msra.mxu0 0.0
    %589 = vmatprep.subr.mxu0 0.0
    %590 = vmatpush1.msra.mxu0 0.0
    %591 = vmatprep.subr.mxu0 0.0
    %592 = vmatpush1.msra.mxu0 %v158
    %593 = vmatprep.subr.mxu0 0.0
    %594 = vmatpush1.msra.mxu0 %v157
    %595 = vmatprep.subr.mxu0 0.0
    %596 = vmatpush1.msra.mxu0 %v156
    %597 = vmatprep.subr.mxu0 0.0
    %598 = vmatpush1.msra.mxu0 %v155
    %599 = vmatprep.subr.mxu0 0.0
    %600 = vmatpush2.msra.mxu0 0.0
    %601 = vmatprep.subr.mxu0 0.0
    %602 = vmatpush2.msra.mxu0 0.0
    %603 = vmatprep.subr.mxu0 0.0
    %604 = vmatpush2.msra.mxu0 0.0
    %605 = vmatprep.subr.mxu0 0.0
    %606 = vmatpush2.msra.mxu0 0.0
    %607 = vmatprep.subr.mxu0 0.0
    %608 = vmatpush2.msra.mxu0 0.0
    %609 = vmatprep.subr.mxu0 0.0
    %610 = vmatpush2.msra.mxu0 0.0
    %611 = vmatprep.subr.mxu0 0.0
    %612 = vmatpush2.msra.mxu0 0.0
    %613 = vmatprep.subr.mxu0 0.0
    %614 = vmatpush2.msra.mxu0 0.0
    %615 = vmatprep.subr.mxu0 0.0
    %616 = vmatpush2.msra.mxu0 0.0
    %617 = vmatprep.subr.mxu0 0.0
    %618 = vmatpush2.msra.mxu0 0.0
    %619 = vmatprep.subr.mxu0 0.0
    %620 = vmatpush2.msra.mxu0 0.0
    %621 = vmatprep.subr.mxu0 0.0
    %622 = vmatpush2.msra.mxu0 0.0
    %623 = vmatprep.subr.mxu0 0.0
    %624 = vmatpush2.msra.mxu0 0.0
    %625 = vmatprep.subr.mxu0 0.0
    %626 = vmatpush2.msra.mxu0 0.0
    %627 = vmatprep.subr.mxu0 0.0
    %628 = vmatpush2.msra.mxu0 0.0
    %629 = vmatprep.subr.mxu0 0.0
    %630 = vmatpush2.msra.mxu0 0.0
    %631 = vmatprep.mubr.f32.mxu0 0.0
    %632 = vmatmul.mubr.f32.gmra.mxu0 %v565
    %v633 = vpop.f32.mrf.mxu0
    %v634 = vadd.f32 0.0, %v633
    %v635 = vpop.f32.mrf.mxu0
    %636 = vdwg.mxu0
    %v637 = vadd.f32 %v561, %v634
    %v638 = vxor.u32 %v637, 2147483648
    %v639 = vmul.f32 %v638, 1.442695
    %v640 = vpow.pop %v639
    %v641 = vadd.f32 %v640, 1.0
    %v642 = vrcp.pop %v641
    %v643 = vmul.f32 1.0, %v642
    %v644 = vtanh.pop %v637
    %v645 = vmul.f32 %v643, %v451
    %647 = vrot.lane.b32.xlu0 %v644, 64
    %v648 = vpop.permute.xlu0 %647
    %v650 = vmul.f32 %v643, %v648
    %652 = vrot.lane.b32.xlu0 %v650, 32
    %v653 = vpop.permute.xlu0 %652
    %v655 = vadd.f32 %v645, %v653
    %v656 = vtanh.pop %v655
    %658 = vrot.lane.b32.xlu0 %v656, 64
    %v659 = vpop.permute.xlu0 %658
    %v661 = vmul.f32 %v643, %v659
    %s662 = scalar_lea.vmem %s1, 24
    %v663 = vld [vmem:[%s662] sm:$0xff]
    %665 = vrot.lane.b32.xlu0 %v559, 32
    %v666 = vpop.permute.xlu0 %665
    %v667 = vsel %vm54, %v666, 0
    %669 = vmatprep.subr.mxu0 0.0
    %670 = vmatpush1.msra.mxu0 0.0
    %671 = vmatprep.subr.mxu0 0.0
    %672 = vmatpush1.msra.mxu0 0.0
    %673 = vmatprep.subr.mxu0 0.0
    %674 = vmatpush1.msra.mxu0 0.0
    %675 = vmatprep.subr.mxu0 0.0
    %676 = vmatpush1.msra.mxu0 0.0
    %677 = vmatprep.subr.mxu0 0.0
    %678 = vmatpush1.msra.mxu0 0.0
    %679 = vmatprep.subr.mxu0 0.0
    %680 = vmatpush1.msra.mxu0 0.0
    %681 = vmatprep.subr.mxu0 0.0
    %682 = vmatpush1.msra.mxu0 0.0
    %683 = vmatprep.subr.mxu0 0.0
    %684 = vmatpush1.msra.mxu0 0.0
    %685 = vmatprep.subr.mxu0 0.0
    %686 = vmatpush1.msra.mxu0 0.0
    %687 = vmatprep.subr.mxu0 0.0
    %688 = vmatpush1.msra.mxu0 0.0
    %689 = vmatprep.subr.mxu0 0.0
    %690 = vmatpush1.msra.mxu0 0.0
    %691 = vmatprep.subr.mxu0 0.0
    %692 = vmatpush1.msra.mxu0 0.0
    %693 = vmatprep.subr.mxu0 0.0
    %694 = vmatpush1.msra.mxu0 %v53
    %695 = vmatprep.subr.mxu0 0.0
    %696 = vmatpush1.msra.mxu0 %v52
    %697 = vmatprep.subr.mxu0 0.0
    %698 = vmatpush1.msra.mxu0 %v51
    %699 = vmatprep.subr.mxu0 0.0
    %700 = vmatpush1.msra.mxu0 %v50
    %701 = vmatprep.subr.mxu0 0.0
    %702 = vmatpush2.msra.mxu0 0.0
    %703 = vmatprep.subr.mxu0 0.0
    %704 = vmatpush2.msra.mxu0 0.0
    %705 = vmatprep.subr.mxu0 0.0
    %706 = vmatpush2.msra.mxu0 0.0
    %707 = vmatprep.subr.mxu0 0.0
    %708 = vmatpush2.msra.mxu0 0.0
    %709 = vmatprep.subr.mxu0 0.0
    %710 = vmatpush2.msra.mxu0 0.0
    %711 = vmatprep.subr.mxu0 0.0
    %712 = vmatpush2.msra.mxu0 0.0
    %713 = vmatprep.subr.mxu0 0.0
    %714 = vmatpush2.msra.mxu0 0.0
    %715 = vmatprep.subr.mxu0 0.0
    %716 = vmatpush2.msra.mxu0 0.0
    %717 = vmatprep.subr.mxu0 0.0
    %718 = vmatpush2.msra.mxu0 0.0
    %719 = vmatprep.subr.mxu0 0.0
    %720 = vmatpush2.msra.mxu0 0.0
    %721 = vmatprep.subr.mxu0 0.0
    %722 = vmatpush2.msra.mxu0 0.0
    %723 = vmatprep.subr.mxu0 0.0
    %724 = vmatpush2.msra.mxu0 0.0
    %725 = vmatprep.subr.mxu0 0.0
    %726 = vmatpush2.msra.mxu0 0.0
    %727 = vmatprep.subr.mxu0 0.0
    %728 = vmatpush2.msra.mxu0 0.0
    %729 = vmatprep.subr.mxu0 0.0
    %730 = vmatpush2.msra.mxu0 0.0
    %731 = vmatprep.subr.mxu0 0.0
    %732 = vmatpush2.msra.mxu0 0.0
    %733 = vmatprep.mubr.f32.mxu0 0.0
    %734 = vmatmul.mubr.f32.gmra.mxu0 %v667
    %v735 = vpop.f32.mrf.mxu0
    %v736 = vadd.f32 0.0, %v735
    %v737 = vpop.f32.mrf.mxu0
    %738 = vdwg.mxu0
    %v739 = vadd.f32 %v663, %v736
    %v740 = vxor.u32 %v739, 2147483648
    %v741 = vmul.f32 %v740, 1.442695
    %v742 = vpow.pop %v741
    %v743 = vadd.f32 %v742, 1.0
    %v744 = vrcp.pop %v743
    %v745 = vmul.f32 1.0, %v744
    %v746 = vtanh.pop %v739
    %v747 = vmul.f32 %v745, %v553
    %749 = vrot.lane.b32.xlu0 %v746, 64
    %v750 = vpop.permute.xlu0 %749
    %v752 = vmul.f32 %v745, %v750
    %754 = vrot.lane.b32.xlu0 %v752, 32
    %v755 = vpop.permute.xlu0 %754
    %v757 = vadd.f32 %v747, %v755
    %v758 = vtanh.pop %v757
    %760 = vrot.lane.b32.xlu0 %v758, 64
    %v761 = vpop.permute.xlu0 %760
    %v763 = vmul.f32 %v745, %v761
    %s764 = scalar_lea.vmem %s2, 32
    %v765 = vld [vmem:[%s764] sm:$0xff]
    %767 = vrot.lane.b32.xlu0 %v661, 32
    %v768 = vpop.permute.xlu0 %767
    %v769 = vsel %vm54, %v768, 0
    %771 = vmatprep.subr.mxu0 0.0
    %772 = vmatpush1.msra.mxu0 0.0
    %773 = vmatprep.subr.mxu0 0.0
    %774 = vmatpush1.msra.mxu0 0.0
    %775 = vmatprep.subr.mxu0 0.0
    %776 = vmatpush1.msra.mxu0 0.0
    %777 = vmatprep.subr.mxu0 0.0
    %778 = vmatpush1.msra.mxu0 0.0
    %779 = vmatprep.subr.mxu0 0.0
    %780 = vmatpush1.msra.mxu0 0.0
    %781 = vmatprep.subr.mxu0 0.0
    %782 = vmatpush1.msra.mxu0 0.0
    %783 = vmatprep.subr.mxu0 0.0
    %784 = vmatpush1.msra.mxu0 0.0
    %785 = vmatprep.subr.mxu0 0.0
    %786 = vmatpush1.msra.mxu0 0.0
    %787 = vmatprep.subr.mxu0 0.0
    %788 = vmatpush1.msra.mxu0 0.0
    %789 = vmatprep.subr.mxu0 0.0
    %790 = vmatpush1.msra.mxu0 0.0
    %791 = vmatprep.subr.mxu0 0.0
    %792 = vmatpush1.msra.mxu0 0.0
    %793 = vmatprep.subr.mxu0 0.0
    %794 = vmatpush1.msra.mxu0 0.0
    %795 = vmatprep.subr.mxu0 0.0
    %796 = vmatpush1.msra.mxu0 %v158
    %797 = vmatprep.subr.mxu0 0.0
    %798 = vmatpush1.msra.mxu0 %v157
    %799 = vmatprep.subr.mxu0 0.0
    %800 = vmatpush1.msra.mxu0 %v156
    %801 = vmatprep.subr.mxu0 0.0
    %802 = vmatpush1.msra.mxu0 %v155
    %803 = vmatprep.subr.mxu0 0.0
    %804 = vmatpush2.msra.mxu0 0.0
    %805 = vmatprep.subr.mxu0 0.0
    %806 = vmatpush2.msra.mxu0 0.0
    %807 = vmatprep.subr.mxu0 0.0
    %808 = vmatpush2.msra.mxu0 0.0
    %809 = vmatprep.subr.mxu0 0.0
    %810 = vmatpush2.msra.mxu0 0.0
    %811 = vmatprep.subr.mxu0 0.0
    %812 = vmatpush2.msra.mxu0 0.0
    %813 = vmatprep.subr.mxu0 0.0
    %814 = vmatpush2.msra.mxu0 0.0
    %815 = vmatprep.subr.mxu0 0.0
    %816 = vmatpush2.msra.mxu0 0.0
    %817 = vmatprep.subr.mxu0 0.0
    %818 = vmatpush2.msra.mxu0 0.0
    %819 = vmatprep.subr.mxu0 0.0
    %820 = vmatpush2.msra.mxu0 0.0
    %821 = vmatprep.subr.mxu0 0.0
    %822 = vmatpush2.msra.mxu0 0.0
    %823 = vmatprep.subr.mxu0 0.0
    %824 = vmatpush2.msra.mxu0 0.0
    %825 = vmatprep.subr.mxu0 0.0
    %826 = vmatpush2.msra.mxu0 0.0
    %827 = vmatprep.subr.mxu0 0.0
    %828 = vmatpush2.msra.mxu0 0.0
    %829 = vmatprep.subr.mxu0 0.0
    %830 = vmatpush2.msra.mxu0 0.0
    %831 = vmatprep.subr.mxu0 0.0
    %832 = vmatpush2.msra.mxu0 0.0
    %833 = vmatprep.subr.mxu0 0.0
    %834 = vmatpush2.msra.mxu0 0.0
    %835 = vmatprep.mubr.f32.mxu0 0.0
    %836 = vmatmul.mubr.f32.gmra.mxu0 %v769
    %v837 = vpop.f32.mrf.mxu0
    %v838 = vadd.f32 0.0, %v837
    %v839 = vpop.f32.mrf.mxu0
    %840 = vdwg.mxu0
    %v841 = vadd.f32 %v765, %v838
    %v842 = vxor.u32 %v841, 2147483648
    %v843 = vmul.f32 %v842, 1.442695
    %v844 = vpow.pop %v843
    %v845 = vadd.f32 %v844, 1.0
    %v846 = vrcp.pop %v845
    %v847 = vmul.f32 1.0, %v846
    %v848 = vtanh.pop %v841
    %v849 = vmul.f32 %v847, %v655
    %851 = vrot.lane.b32.xlu0 %v848, 64
    %v852 = vpop.permute.xlu0 %851
    %v854 = vmul.f32 %v847, %v852
    %856 = vrot.lane.b32.xlu0 %v854, 32
    %v857 = vpop.permute.xlu0 %856
    %v859 = vadd.f32 %v849, %v857
    %v860 = vtanh.pop %v859
    %862 = vrot.lane.b32.xlu0 %v860, 64
    %v863 = vpop.permute.xlu0 %862
    %v865 = vmul.f32 %v847, %v863
    %s866 = scalar_lea.vmem %s1, 32
    %v867 = vld [vmem:[%s866] sm:$0xff]
    %869 = vrot.lane.b32.xlu0 %v763, 32
    %v870 = vpop.permute.xlu0 %869
    %v871 = vsel %vm54, %v870, 0
    %873 = vmatprep.subr.mxu0 0.0
    %874 = vmatpush1.msra.mxu0 0.0
    %875 = vmatprep.subr.mxu0 0.0
    %876 = vmatpush1.msra.mxu0 0.0
    %877 = vmatprep.subr.mxu0 0.0
    %878 = vmatpush1.msra.mxu0 0.0
    %879 = vmatprep.subr.mxu0 0.0
    %880 = vmatpush1.msra.mxu0 0.0
    %881 = vmatprep.subr.mxu0 0.0
    %882 = vmatpush1.msra.mxu0 0.0
    %883 = vmatprep.subr.mxu0 0.0
    %884 = vmatpush1.msra.mxu0 0.0
    %885 = vmatprep.subr.mxu0 0.0
    %886 = vmatpush1.msra.mxu0 0.0
    %887 = vmatprep.subr.mxu0 0.0
    %888 = vmatpush1.msra.mxu0 0.0
    %889 = vmatprep.subr.mxu0 0.0
    %890 = vmatpush1.msra.mxu0 0.0
    %891 = vmatprep.subr.mxu0 0.0
    %892 = vmatpush1.msra.mxu0 0.0
    %893 = vmatprep.subr.mxu0 0.0
    %894 = vmatpush1.msra.mxu0 0.0
    %895 = vmatprep.subr.mxu0 0.0
    %896 = vmatpush1.msra.mxu0 0.0
    %897 = vmatprep.subr.mxu0 0.0
    %898 = vmatpush1.msra.mxu0 %v53
    %899 = vmatprep.subr.mxu0 0.0
    %900 = vmatpush1.msra.mxu0 %v52
    %901 = vmatprep.subr.mxu0 0.0
    %902 = vmatpush1.msra.mxu0 %v51
    %903 = vmatprep.subr.mxu0 0.0
    %904 = vmatpush1.msra.mxu0 %v50
    %905 = vmatprep.subr.mxu0 0.0
    %906 = vmatpush2.msra.mxu0 0.0
    %907 = vmatprep.subr.mxu0 0.0
    %908 = vmatpush2.msra.mxu0 0.0
    %909 = vmatprep.subr.mxu0 0.0
    %910 = vmatpush2.msra.mxu0 0.0
    %911 = vmatprep.subr.mxu0 0.0
    %912 = vmatpush2.msra.mxu0 0.0
    %913 = vmatprep.subr.mxu0 0.0
    %914 = vmatpush2.msra.mxu0 0.0
    %915 = vmatprep.subr.mxu0 0.0
    %916 = vmatpush2.msra.mxu0 0.0
    %917 = vmatprep.subr.mxu0 0.0
    %918 = vmatpush2.msra.mxu0 0.0
    %919 = vmatprep.subr.mxu0 0.0
    %920 = vmatpush2.msra.mxu0 0.0
    %921 = vmatprep.subr.mxu0 0.0
    %922 = vmatpush2.msra.mxu0 0.0
    %923 = vmatprep.subr.mxu0 0.0
    %924 = vmatpush2.msra.mxu0 0.0
    %925 = vmatprep.subr.mxu0 0.0
    %926 = vmatpush2.msra.mxu0 0.0
    %927 = vmatprep.subr.mxu0 0.0
    %928 = vmatpush2.msra.mxu0 0.0
    %929 = vmatprep.subr.mxu0 0.0
    %930 = vmatpush2.msra.mxu0 0.0
    %931 = vmatprep.subr.mxu0 0.0
    %932 = vmatpush2.msra.mxu0 0.0
    %933 = vmatprep.subr.mxu0 0.0
    %934 = vmatpush2.msra.mxu0 0.0
    %935 = vmatprep.subr.mxu0 0.0
    %936 = vmatpush2.msra.mxu0 0.0
    %937 = vmatprep.mubr.f32.mxu0 0.0
    %938 = vmatmul.mubr.f32.gmra.mxu0 %v871
    %v939 = vpop.f32.mrf.mxu0
    %v940 = vadd.f32 0.0, %v939
    %v941 = vpop.f32.mrf.mxu0
    %942 = vdwg.mxu0
    %v943 = vadd.f32 %v867, %v940
    %v944 = vxor.u32 %v943, 2147483648
    %v945 = vmul.f32 %v944, 1.442695
    %v946 = vpow.pop %v945
    %v947 = vadd.f32 %v946, 1.0
    %v948 = vrcp.pop %v947
    %v949 = vmul.f32 1.0, %v948
    %v950 = vtanh.pop %v943
    %v951 = vmul.f32 %v949, %v757
    %953 = vrot.lane.b32.xlu0 %v950, 64
    %v954 = vpop.permute.xlu0 %953
    %v956 = vmul.f32 %v949, %v954
    %958 = vrot.lane.b32.xlu0 %v956, 32
    %v959 = vpop.permute.xlu0 %958
    %v961 = vadd.f32 %v951, %v959
    %v962 = vtanh.pop %v961
    %964 = vrot.lane.b32.xlu0 %v962, 64
    %v965 = vpop.permute.xlu0 %964
    %v967 = vmul.f32 %v949, %v965
    %s968 = scalar_lea.vmem %s2, 24
    %v969 = vld [vmem:[%s968] sm:$0xff]
    %971 = vrot.lane.b32.xlu0 %v865, 32
    %v972 = vpop.permute.xlu0 %971
    %v973 = vsel %vm54, %v972, 0
    %975 = vmatprep.subr.mxu0 0.0
    %976 = vmatpush1.msra.mxu0 0.0
    %977 = vmatprep.subr.mxu0 0.0
    %978 = vmatpush1.msra.mxu0 0.0
    %979 = vmatprep.subr.mxu0 0.0
    %980 = vmatpush1.msra.mxu0 0.0
    %981 = vmatprep.subr.mxu0 0.0
    %982 = vmatpush1.msra.mxu0 0.0
    %983 = vmatprep.subr.mxu0 0.0
    %984 = vmatpush1.msra.mxu0 0.0
    %985 = vmatprep.subr.mxu0 0.0
    %986 = vmatpush1.msra.mxu0 0.0
    %987 = vmatprep.subr.mxu0 0.0
    %988 = vmatpush1.msra.mxu0 0.0
    %989 = vmatprep.subr.mxu0 0.0
    %990 = vmatpush1.msra.mxu0 0.0
    %991 = vmatprep.subr.mxu0 0.0
    %992 = vmatpush1.msra.mxu0 0.0
    %993 = vmatprep.subr.mxu0 0.0
    %994 = vmatpush1.msra.mxu0 0.0
    %995 = vmatprep.subr.mxu0 0.0
    %996 = vmatpush1.msra.mxu0 0.0
    %997 = vmatprep.subr.mxu0 0.0
    %998 = vmatpush1.msra.mxu0 0.0
    %999 = vmatprep.subr.mxu0 0.0
    %1000 = vmatpush1.msra.mxu0 %v158
    %1001 = vmatprep.subr.mxu0 0.0
    %1002 = vmatpush1.msra.mxu0 %v157
    %1003 = vmatprep.subr.mxu0 0.0
    %1004 = vmatpush1.msra.mxu0 %v156
    %1005 = vmatprep.subr.mxu0 0.0
    %1006 = vmatpush1.msra.mxu0 %v155
    %1007 = vmatprep.subr.mxu0 0.0
    %1008 = vmatpush2.msra.mxu0 0.0
    %1009 = vmatprep.subr.mxu0 0.0
    %1010 = vmatpush2.msra.mxu0 0.0
    %1011 = vmatprep.subr.mxu0 0.0
    %1012 = vmatpush2.msra.mxu0 0.0
    %1013 = vmatprep.subr.mxu0 0.0
    %1014 = vmatpush2.msra.mxu0 0.0
    %1015 = vmatprep.subr.mxu0 0.0
    %1016 = vmatpush2.msra.mxu0 0.0
    %1017 = vmatprep.subr.mxu0 0.0
    %1018 = vmatpush2.msra.mxu0 0.0
    %1019 = vmatprep.subr.mxu0 0.0
    %1020 = vmatpush2.msra.mxu0 0.0
    %1021 = vmatprep.subr.mxu0 0.0
    %1022 = vmatpush2.msra.mxu0 0.0
    %1023 = vmatprep.subr.mxu0 0.0
    %1024 = vmatpush2.msra.mxu0 0.0
    %1025 = vmatprep.subr.mxu0 0.0
    %1026 = vmatpush2.msra.mxu0 0.0
    %1027 = vmatprep.subr.mxu0 0.0
    %1028 = vmatpush2.msra.mxu0 0.0
    %1029 = vmatprep.subr.mxu0 0.0
    %1030 = vmatpush2.msra.mxu0 0.0
    %1031 = vmatprep.subr.mxu0 0.0
    %1032 = vmatpush2.msra.mxu0 0.0
    %1033 = vmatprep.subr.mxu0 0.0
    %1034 = vmatpush2.msra.mxu0 0.0
    %1035 = vmatprep.subr.mxu0 0.0
    %1036 = vmatpush2.msra.mxu0 0.0
    %1037 = vmatprep.subr.mxu0 0.0
    %1038 = vmatpush2.msra.mxu0 0.0
    %1039 = vmatprep.mubr.f32.mxu0 0.0
    %1040 = vmatmul.mubr.f32.gmra.mxu0 %v973
    %v1041 = vpop.f32.mrf.mxu0
    %v1042 = vadd.f32 0.0, %v1041
    %v1043 = vpop.f32.mrf.mxu0
    %1044 = vdwg.mxu0
    %v1045 = vadd.f32 %v969, %v1042
    %v1046 = vxor.u32 %v1045, 2147483648
    %v1047 = vmul.f32 %v1046, 1.442695
    %v1048 = vpow.pop %v1047
    %v1049 = vadd.f32 %v1048, 1.0
    %v1050 = vrcp.pop %v1049
    %v1051 = vmul.f32 1.0, %v1050
    %v1052 = vtanh.pop %v1045
    %v1053 = vmul.f32 %v1051, %v859
    %1055 = vrot.lane.b32.xlu0 %v1052, 64
    %v1056 = vpop.permute.xlu0 %1055
    %v1058 = vmul.f32 %v1051, %v1056
    %1060 = vrot.lane.b32.xlu0 %v1058, 32
    %v1061 = vpop.permute.xlu0 %1060
    %v1063 = vadd.f32 %v1053, %v1061
    %v1064 = vtanh.pop %v1063
    %1066 = vrot.lane.b32.xlu0 %v1064, 64
    %v1067 = vpop.permute.xlu0 %1066
    %v1069 = vmul.f32 %v1051, %v1067
    %s1070 = scalar_lea.vmem %s1, 40
    %v1071 = vld [vmem:[%s1070] sm:$0xff]
    %1073 = vrot.lane.b32.xlu0 %v967, 32
    %v1074 = vpop.permute.xlu0 %1073
    %v1075 = vsel %vm54, %v1074, 0
    %1077 = vmatprep.subr.mxu0 0.0
    %1078 = vmatpush1.msra.mxu0 0.0
    %1079 = vmatprep.subr.mxu0 0.0
    %1080 = vmatpush1.msra.mxu0 0.0
    %1081 = vmatprep.subr.mxu0 0.0
    %1082 = vmatpush1.msra.mxu0 0.0
    %1083 = vmatprep.subr.mxu0 0.0
    %1084 = vmatpush1.msra.mxu0 0.0
    %1085 = vmatprep.subr.mxu0 0.0
    %1086 = vmatpush1.msra.mxu0 0.0
    %1087 = vmatprep.subr.mxu0 0.0
    %1088 = vmatpush1.msra.mxu0 0.0
    %1089 = vmatprep.subr.mxu0 0.0
    %1090 = vmatpush1.msra.mxu0 0.0
    %1091 = vmatprep.subr.mxu0 0.0
    %1092 = vmatpush1.msra.mxu0 0.0
    %1093 = vmatprep.subr.mxu0 0.0
    %1094 = vmatpush1.msra.mxu0 0.0
    %1095 = vmatprep.subr.mxu0 0.0
    %1096 = vmatpush1.msra.mxu0 0.0
    %1097 = vmatprep.subr.mxu0 0.0
    %1098 = vmatpush1.msra.mxu0 0.0
    %1099 = vmatprep.subr.mxu0 0.0
    %1100 = vmatpush1.msra.mxu0 0.0
    %1101 = vmatprep.subr.mxu0 0.0
    %1102 = vmatpush1.msra.mxu0 %v53
    %1103 = vmatprep.subr.mxu0 0.0
    %1104 = vmatpush1.msra.mxu0 %v52
    %1105 = vmatprep.subr.mxu0 0.0
    %1106 = vmatpush1.msra.mxu0 %v51
    %1107 = vmatprep.subr.mxu0 0.0
    %1108 = vmatpush1.msra.mxu0 %v50
    %1109 = vmatprep.subr.mxu0 0.0
    %1110 = vmatpush2.msra.mxu0 0.0
    %1111 = vmatprep.subr.mxu0 0.0
    %1112 = vmatpush2.msra.mxu0 0.0
    %1113 = vmatprep.subr.mxu0 0.0
    %1114 = vmatpush2.msra.mxu0 0.0
    %1115 = vmatprep.subr.mxu0 0.0
    %1116 = vmatpush2.msra.mxu0 0.0
    %1117 = vmatprep.subr.mxu0 0.0
    %1118 = vmatpush2.msra.mxu0 0.0
    %1119 = vmatprep.subr.mxu0 0.0
    %1120 = vmatpush2.msra.mxu0 0.0
    %1121 = vmatprep.subr.mxu0 0.0
    %1122 = vmatpush2.msra.mxu0 0.0
    %1123 = vmatprep.subr.mxu0 0.0
    %1124 = vmatpush2.msra.mxu0 0.0
    %1125 = vmatprep.subr.mxu0 0.0
    %1126 = vmatpush2.msra.mxu0 0.0
    %1127 = vmatprep.subr.mxu0 0.0
    %1128 = vmatpush2.msra.mxu0 0.0
    %1129 = vmatprep.subr.mxu0 0.0
    %1130 = vmatpush2.msra.mxu0 0.0
    %1131 = vmatprep.subr.mxu0 0.0
    %1132 = vmatpush2.msra.mxu0 0.0
    %1133 = vmatprep.subr.mxu0 0.0
    %1134 = vmatpush2.msra.mxu0 0.0
    %1135 = vmatprep.subr.mxu0 0.0
    %1136 = vmatpush2.msra.mxu0 0.0
    %1137 = vmatprep.subr.mxu0 0.0
    %1138 = vmatpush2.msra.mxu0 0.0
    %1139 = vmatprep.subr.mxu0 0.0
    %1140 = vmatpush2.msra.mxu0 0.0
    %1141 = vmatprep.mubr.f32.mxu0 0.0
    %1142 = vmatmul.mubr.f32.gmra.mxu0 %v1075
    %v1143 = vpop.f32.mrf.mxu0
    %v1144 = vadd.f32 0.0, %v1143
    %v1145 = vpop.f32.mrf.mxu0
    %1146 = vdwg.mxu0
    %v1147 = vadd.f32 %v1071, %v1144
    %v1148 = vxor.u32 %v1147, 2147483648
    %v1149 = vmul.f32 %v1148, 1.442695
    %v1150 = vpow.pop %v1149
    %v1151 = vadd.f32 %v1150, 1.0
    %v1152 = vrcp.pop %v1151
    %v1153 = vmul.f32 1.0, %v1152
    %v1154 = vtanh.pop %v1147
    %v1155 = vmul.f32 %v1153, %v961
    %1157 = vrot.lane.b32.xlu0 %v1154, 64
    %v1158 = vpop.permute.xlu0 %1157
    %v1160 = vmul.f32 %v1153, %v1158
    %1162 = vrot.lane.b32.xlu0 %v1160, 32
    %v1163 = vpop.permute.xlu0 %1162
    %v1165 = vadd.f32 %v1155, %v1163
    %v1166 = vtanh.pop %v1165
    %1168 = vrot.lane.b32.xlu0 %v1166, 64
    %v1169 = vpop.permute.xlu0 %1168
    %v1171 = vmul.f32 %v1153, %v1169
    %s1172 = scalar_lea.vmem %s2, 16
    %v1173 = vld [vmem:[%s1172] sm:$0xff]
    %1175 = vrot.lane.b32.xlu0 %v1069, 32
    %v1176 = vpop.permute.xlu0 %1175
    %v1177 = vsel %vm54, %v1176, 0
    %1179 = vmatprep.subr.mxu0 0.0
    %1180 = vmatpush1.msra.mxu0 0.0
    %1181 = vmatprep.subr.mxu0 0.0
    %1182 = vmatpush1.msra.mxu0 0.0
    %1183 = vmatprep.subr.mxu0 0.0
    %1184 = vmatpush1.msra.mxu0 0.0
    %1185 = vmatprep.subr.mxu0 0.0
    %1186 = vmatpush1.msra.mxu0 0.0
    %1187 = vmatprep.subr.mxu0 0.0
    %1188 = vmatpush1.msra.mxu0 0.0
    %1189 = vmatprep.subr.mxu0 0.0
    %1190 = vmatpush1.msra.mxu0 0.0
    %1191 = vmatprep.subr.mxu0 0.0
    %1192 = vmatpush1.msra.mxu0 0.0
    %1193 = vmatprep.subr.mxu0 0.0
    %1194 = vmatpush1.msra.mxu0 0.0
    %1195 = vmatprep.subr.mxu0 0.0
    %1196 = vmatpush1.msra.mxu0 0.0
    %1197 = vmatprep.subr.mxu0 0.0
    %1198 = vmatpush1.msra.mxu0 0.0
    %1199 = vmatprep.subr.mxu0 0.0
    %1200 = vmatpush1.msra.mxu0 0.0
    %1201 = vmatprep.subr.mxu0 0.0
    %1202 = vmatpush1.msra.mxu0 0.0
    %1203 = vmatprep.subr.mxu0 0.0
    %1204 = vmatpush1.msra.mxu0 %v158
    %1205 = vmatprep.subr.mxu0 0.0
    %1206 = vmatpush1.msra.mxu0 %v157
    %1207 = vmatprep.subr.mxu0 0.0
    %1208 = vmatpush1.msra.mxu0 %v156
    %1209 = vmatprep.subr.mxu0 0.0
    %1210 = vmatpush1.msra.mxu0 %v155
    %1211 = vmatprep.subr.mxu0 0.0
    %1212 = vmatpush2.msra.mxu0 0.0
    %1213 = vmatprep.subr.mxu0 0.0
    %1214 = vmatpush2.msra.mxu0 0.0
    %1215 = vmatprep.subr.mxu0 0.0
    %1216 = vmatpush2.msra.mxu0 0.0
    %1217 = vmatprep.subr.mxu0 0.0
    %1218 = vmatpush2.msra.mxu0 0.0
    %1219 = vmatprep.subr.mxu0 0.0
    %1220 = vmatpush2.msra.mxu0 0.0
    %1221 = vmatprep.subr.mxu0 0.0
    %1222 = vmatpush2.msra.mxu0 0.0
    %1223 = vmatprep.subr.mxu0 0.0
    %1224 = vmatpush2.msra.mxu0 0.0
    %1225 = vmatprep.subr.mxu0 0.0
    %1226 = vmatpush2.msra.mxu0 0.0
    %1227 = vmatprep.subr.mxu0 0.0
    %1228 = vmatpush2.msra.mxu0 0.0
    %1229 = vmatprep.subr.mxu0 0.0
    %1230 = vmatpush2.msra.mxu0 0.0
    %1231 = vmatprep.subr.mxu0 0.0
    %1232 = vmatpush2.msra.mxu0 0.0
    %1233 = vmatprep.subr.mxu0 0.0
    %1234 = vmatpush2.msra.mxu0 0.0
    %1235 = vmatprep.subr.mxu0 0.0
    %1236 = vmatpush2.msra.mxu0 0.0
    %1237 = vmatprep.subr.mxu0 0.0
    %1238 = vmatpush2.msra.mxu0 0.0
    %1239 = vmatprep.subr.mxu0 0.0
    %1240 = vmatpush2.msra.mxu0 0.0
    %1241 = vmatprep.subr.mxu0 0.0
    %1242 = vmatpush2.msra.mxu0 0.0
    %1243 = vmatprep.mubr.f32.mxu0 0.0
    %1244 = vmatmul.mubr.f32.gmra.mxu0 %v1177
    %v1245 = vpop.f32.mrf.mxu0
    %v1246 = vadd.f32 0.0, %v1245
    %v1247 = vpop.f32.mrf.mxu0
    %1248 = vdwg.mxu0
    %v1249 = vadd.f32 %v1173, %v1246
    %v1250 = vxor.u32 %v1249, 2147483648
    %v1251 = vmul.f32 %v1250, 1.442695
    %v1252 = vpow.pop %v1251
    %v1253 = vadd.f32 %v1252, 1.0
    %v1254 = vrcp.pop %v1253
    %v1255 = vmul.f32 1.0, %v1254
    %v1256 = vtanh.pop %v1249
    %v1257 = vmul.f32 %v1255, %v1063
    %1259 = vrot.lane.b32.xlu0 %v1256, 64
    %v1260 = vpop.permute.xlu0 %1259
    %v1262 = vmul.f32 %v1255, %v1260
    %1264 = vrot.lane.b32.xlu0 %v1262, 32
    %v1265 = vpop.permute.xlu0 %1264
    %v1267 = vadd.f32 %v1257, %v1265
    %v1268 = vtanh.pop %v1267
    %1270 = vrot.lane.b32.xlu0 %v1268, 64
    %v1271 = vpop.permute.xlu0 %1270
    %v1273 = vmul.f32 %v1255, %v1271
    %s1274 = scalar_lea.vmem %s1, 48
    %v1275 = vld [vmem:[%s1274] sm:$0xff]
    %1277 = vrot.lane.b32.xlu0 %v1171, 32
    %v1278 = vpop.permute.xlu0 %1277
    %v1279 = vsel %vm54, %v1278, 0
    %1281 = vmatprep.subr.mxu0 0.0
    %1282 = vmatpush1.msra.mxu0 0.0
    %1283 = vmatprep.subr.mxu0 0.0
    %1284 = vmatpush1.msra.mxu0 0.0
    %1285 = vmatprep.subr.mxu0 0.0
    %1286 = vmatpush1.msra.mxu0 0.0
    %1287 = vmatprep.subr.mxu0 0.0
    %1288 = vmatpush1.msra.mxu0 0.0
    %1289 = vmatprep.subr.mxu0 0.0
    %1290 = vmatpush1.msra.mxu0 0.0
    %1291 = vmatprep.subr.mxu0 0.0
    %1292 = vmatpush1.msra.mxu0 0.0
    %1293 = vmatprep.subr.mxu0 0.0
    %1294 = vmatpush1.msra.mxu0 0.0
    %1295 = vmatprep.subr.mxu0 0.0
    %1296 = vmatpush1.msra.mxu0 0.0
    %1297 = vmatprep.subr.mxu0 0.0
    %1298 = vmatpush1.msra.mxu0 0.0
    %1299 = vmatprep.subr.mxu0 0.0
    %1300 = vmatpush1.msra.mxu0 0.0
    %1301 = vmatprep.subr.mxu0 0.0
    %1302 = vmatpush1.msra.mxu0 0.0
    %1303 = vmatprep.subr.mxu0 0.0
    %1304 = vmatpush1.msra.mxu0 0.0
    %1305 = vmatprep.subr.mxu0 0.0
    %1306 = vmatpush1.msra.mxu0 %v53
    %1307 = vmatprep.subr.mxu0 0.0
    %1308 = vmatpush1.msra.mxu0 %v52
    %1309 = vmatprep.subr.mxu0 0.0
    %1310 = vmatpush1.msra.mxu0 %v51
    %1311 = vmatprep.subr.mxu0 0.0
    %1312 = vmatpush1.msra.mxu0 %v50
    %1313 = vmatprep.subr.mxu0 0.0
    %1314 = vmatpush2.msra.mxu0 0.0
    %1315 = vmatprep.subr.mxu0 0.0
    %1316 = vmatpush2.msra.mxu0 0.0
    %1317 = vmatprep.subr.mxu0 0.0
    %1318 = vmatpush2.msra.mxu0 0.0
    %1319 = vmatprep.subr.mxu0 0.0
    %1320 = vmatpush2.msra.mxu0 0.0
    %1321 = vmatprep.subr.mxu0 0.0
    %1322 = vmatpush2.msra.mxu0 0.0
    %1323 = vmatprep.subr.mxu0 0.0
    %1324 = vmatpush2.msra.mxu0 0.0
    %1325 = vmatprep.subr.mxu0 0.0
    %1326 = vmatpush2.msra.mxu0 0.0
    %1327 = vmatprep.subr.mxu0 0.0
    %1328 = vmatpush2.msra.mxu0 0.0
    %1329 = vmatprep.subr.mxu0 0.0
    %1330 = vmatpush2.msra.mxu0 0.0
    %1331 = vmatprep.subr.mxu0 0.0
    %1332 = vmatpush2.msra.mxu0 0.0
    %1333 = vmatprep.subr.mxu0 0.0
    %1334 = vmatpush2.msra.mxu0 0.0
    %1335 = vmatprep.subr.mxu0 0.0
    %1336 = vmatpush2.msra.mxu0 0.0
    %1337 = vmatprep.subr.mxu0 0.0
    %1338 = vmatpush2.msra.mxu0 0.0
    %1339 = vmatprep.subr.mxu0 0.0
    %1340 = vmatpush2.msra.mxu0 0.0
    %1341 = vmatprep.subr.mxu0 0.0
    %1342 = vmatpush2.msra.mxu0 0.0
    %1343 = vmatprep.subr.mxu0 0.0
    %1344 = vmatpush2.msra.mxu0 0.0
    %1345 = vmatprep.mubr.f32.mxu0 0.0
    %1346 = vmatmul.mubr.f32.gmra.mxu0 %v1279
    %v1347 = vpop.f32.mrf.mxu0
    %v1348 = vadd.f32 0.0, %v1347
    %v1349 = vpop.f32.mrf.mxu0
    %1350 = vdwg.mxu0
    %v1351 = vadd.f32 %v1275, %v1348
    %v1352 = vxor.u32 %v1351, 2147483648
    %v1353 = vmul.f32 %v1352, 1.442695
    %v1354 = vpow.pop %v1353
    %v1355 = vadd.f32 %v1354, 1.0
    %v1356 = vrcp.pop %v1355
    %v1357 = vmul.f32 1.0, %v1356
    %v1358 = vtanh.pop %v1351
    %v1359 = vmul.f32 %v1357, %v1165
    %1361 = vrot.lane.b32.xlu0 %v1358, 64
    %v1362 = vpop.permute.xlu0 %1361
    %v1364 = vmul.f32 %v1357, %v1362
    %1366 = vrot.lane.b32.xlu0 %v1364, 32
    %v1367 = vpop.permute.xlu0 %1366
    %v1369 = vadd.f32 %v1359, %v1367
    %v1370 = vtanh.pop %v1369
    %1372 = vrot.lane.b32.xlu0 %v1370, 64
    %v1373 = vpop.permute.xlu0 %1372
    %v1375 = vmul.f32 %v1357, %v1373
    %s1376 = scalar_lea.vmem %s2, 8
    %v1377 = vld [vmem:[%s1376] sm:$0xff]
    %1379 = vrot.lane.b32.xlu0 %v1273, 32
    %v1380 = vpop.permute.xlu0 %1379
    %v1381 = vsel %vm54, %v1380, 0
    %1383 = vmatprep.subr.mxu0 0.0
    %1384 = vmatpush1.msra.mxu0 0.0
    %1385 = vmatprep.subr.mxu0 0.0
    %1386 = vmatpush1.msra.mxu0 0.0
    %1387 = vmatprep.subr.mxu0 0.0
    %1388 = vmatpush1.msra.mxu0 0.0
    %1389 = vmatprep.subr.mxu0 0.0
    %1390 = vmatpush1.msra.mxu0 0.0
    %1391 = vmatprep.subr.mxu0 0.0
    %1392 = vmatpush1.msra.mxu0 0.0
    %1393 = vmatprep.subr.mxu0 0.0
    %1394 = vmatpush1.msra.mxu0 0.0
    %1395 = vmatprep.subr.mxu0 0.0
    %1396 = vmatpush1.msra.mxu0 0.0
    %1397 = vmatprep.subr.mxu0 0.0
    %1398 = vmatpush1.msra.mxu0 0.0
    %1399 = vmatprep.subr.mxu0 0.0
    %1400 = vmatpush1.msra.mxu0 0.0
    %1401 = vmatprep.subr.mxu0 0.0
    %1402 = vmatpush1.msra.mxu0 0.0
    %1403 = vmatprep.subr.mxu0 0.0
    %1404 = vmatpush1.msra.mxu0 0.0
    %1405 = vmatprep.subr.mxu0 0.0
    %1406 = vmatpush1.msra.mxu0 0.0
    %1407 = vmatprep.subr.mxu0 0.0
    %1408 = vmatpush1.msra.mxu0 %v158
    %1409 = vmatprep.subr.mxu0 0.0
    %1410 = vmatpush1.msra.mxu0 %v157
    %1411 = vmatprep.subr.mxu0 0.0
    %1412 = vmatpush1.msra.mxu0 %v156
    %1413 = vmatprep.subr.mxu0 0.0
    %1414 = vmatpush1.msra.mxu0 %v155
    %1415 = vmatprep.subr.mxu0 0.0
    %1416 = vmatpush2.msra.mxu0 0.0
    %1417 = vmatprep.subr.mxu0 0.0
    %1418 = vmatpush2.msra.mxu0 0.0
    %1419 = vmatprep.subr.mxu0 0.0
    %1420 = vmatpush2.msra.mxu0 0.0
    %1421 = vmatprep.subr.mxu0 0.0
    %1422 = vmatpush2.msra.mxu0 0.0
    %1423 = vmatprep.subr.mxu0 0.0
    %1424 = vmatpush2.msra.mxu0 0.0
    %1425 = vmatprep.subr.mxu0 0.0
    %1426 = vmatpush2.msra.mxu0 0.0
    %1427 = vmatprep.subr.mxu0 0.0
    %1428 = vmatpush2.msra.mxu0 0.0
    %1429 = vmatprep.subr.mxu0 0.0
    %1430 = vmatpush2.msra.mxu0 0.0
    %1431 = vmatprep.subr.mxu0 0.0
    %1432 = vmatpush2.msra.mxu0 0.0
    %1433 = vmatprep.subr.mxu0 0.0
    %1434 = vmatpush2.msra.mxu0 0.0
    %1435 = vmatprep.subr.mxu0 0.0
    %1436 = vmatpush2.msra.mxu0 0.0
    %1437 = vmatprep.subr.mxu0 0.0
    %1438 = vmatpush2.msra.mxu0 0.0
    %1439 = vmatprep.subr.mxu0 0.0
    %1440 = vmatpush2.msra.mxu0 0.0
    %1441 = vmatprep.subr.mxu0 0.0
    %1442 = vmatpush2.msra.mxu0 0.0
    %1443 = vmatprep.subr.mxu0 0.0
    %1444 = vmatpush2.msra.mxu0 0.0
    %1445 = vmatprep.subr.mxu0 0.0
    %1446 = vmatpush2.msra.mxu0 0.0
    %1447 = vmatprep.mubr.f32.mxu0 0.0
    %1448 = vmatmul.mubr.f32.gmra.mxu0 %v1381
    %v1449 = vpop.f32.mrf.mxu0
    %v1450 = vadd.f32 0.0, %v1449
    %v1451 = vpop.f32.mrf.mxu0
    %1452 = vdwg.mxu0
    %v1453 = vadd.f32 %v1377, %v1450
    %v1454 = vxor.u32 %v1453, 2147483648
    %v1455 = vmul.f32 %v1454, 1.442695
    %v1456 = vpow.pop %v1455
    %v1457 = vadd.f32 %v1456, 1.0
    %v1458 = vrcp.pop %v1457
    %v1459 = vmul.f32 1.0, %v1458
    %v1460 = vtanh.pop %v1453
    %v1461 = vmul.f32 %v1459, %v1267
    %1463 = vrot.lane.b32.xlu0 %v1460, 64
    %v1464 = vpop.permute.xlu0 %1463
    %v1466 = vmul.f32 %v1459, %v1464
    %1468 = vrot.lane.b32.xlu0 %v1466, 32
    %v1469 = vpop.permute.xlu0 %1468
    %v1471 = vadd.f32 %v1461, %v1469
    %v1472 = vtanh.pop %v1471
    %1474 = vrot.lane.b32.xlu0 %v1472, 64
    %v1475 = vpop.permute.xlu0 %1474
    %v1477 = vmul.f32 %v1459, %v1475
    %s1478 = scalar_lea.vmem %s1, 56
    %v1479 = vld [vmem:[%s1478] sm:$0xff]
    %1481 = vrot.lane.b32.xlu0 %v1375, 32
    %v1482 = vpop.permute.xlu0 %1481
    %v1483 = vsel %vm54, %v1482, 0
    %1485 = vmatprep.subr.mxu0 0.0
    %1486 = vmatpush1.msra.mxu0 0.0
    %1487 = vmatprep.subr.mxu0 0.0
    %1488 = vmatpush1.msra.mxu0 0.0
    %1489 = vmatprep.subr.mxu0 0.0
    %1490 = vmatpush1.msra.mxu0 0.0
    %1491 = vmatprep.subr.mxu0 0.0
    %1492 = vmatpush1.msra.mxu0 0.0
    %1493 = vmatprep.subr.mxu0 0.0
    %1494 = vmatpush1.msra.mxu0 0.0
    %1495 = vmatprep.subr.mxu0 0.0
    %1496 = vmatpush1.msra.mxu0 0.0
    %1497 = vmatprep.subr.mxu0 0.0
    %1498 = vmatpush1.msra.mxu0 0.0
    %1499 = vmatprep.subr.mxu0 0.0
    %1500 = vmatpush1.msra.mxu0 0.0
    %1501 = vmatprep.subr.mxu0 0.0
    %1502 = vmatpush1.msra.mxu0 0.0
    %1503 = vmatprep.subr.mxu0 0.0
    %1504 = vmatpush1.msra.mxu0 0.0
    %1505 = vmatprep.subr.mxu0 0.0
    %1506 = vmatpush1.msra.mxu0 0.0
    %1507 = vmatprep.subr.mxu0 0.0
    %1508 = vmatpush1.msra.mxu0 0.0
    %1509 = vmatprep.subr.mxu0 0.0
    %1510 = vmatpush1.msra.mxu0 %v53
    %1511 = vmatprep.subr.mxu0 0.0
    %1512 = vmatpush1.msra.mxu0 %v52
    %1513 = vmatprep.subr.mxu0 0.0
    %1514 = vmatpush1.msra.mxu0 %v51
    %1515 = vmatprep.subr.mxu0 0.0
    %1516 = vmatpush1.msra.mxu0 %v50
    %1517 = vmatprep.subr.mxu0 0.0
    %1518 = vmatpush2.msra.mxu0 0.0
    %1519 = vmatprep.subr.mxu0 0.0
    %1520 = vmatpush2.msra.mxu0 0.0
    %1521 = vmatprep.subr.mxu0 0.0
    %1522 = vmatpush2.msra.mxu0 0.0
    %1523 = vmatprep.subr.mxu0 0.0
    %1524 = vmatpush2.msra.mxu0 0.0
    %1525 = vmatprep.subr.mxu0 0.0
    %1526 = vmatpush2.msra.mxu0 0.0
    %1527 = vmatprep.subr.mxu0 0.0
    %1528 = vmatpush2.msra.mxu0 0.0
    %1529 = vmatprep.subr.mxu0 0.0
    %1530 = vmatpush2.msra.mxu0 0.0
    %1531 = vmatprep.subr.mxu0 0.0
    %1532 = vmatpush2.msra.mxu0 0.0
    %1533 = vmatprep.subr.mxu0 0.0
    %1534 = vmatpush2.msra.mxu0 0.0
    %1535 = vmatprep.subr.mxu0 0.0
    %1536 = vmatpush2.msra.mxu0 0.0
    %1537 = vmatprep.subr.mxu0 0.0
    %1538 = vmatpush2.msra.mxu0 0.0
    %1539 = vmatprep.subr.mxu0 0.0
    %1540 = vmatpush2.msra.mxu0 0.0
    %1541 = vmatprep.subr.mxu0 0.0
    %1542 = vmatpush2.msra.mxu0 0.0
    %1543 = vmatprep.subr.mxu0 0.0
    %1544 = vmatpush2.msra.mxu0 0.0
    %1545 = vmatprep.subr.mxu0 0.0
    %1546 = vmatpush2.msra.mxu0 0.0
    %1547 = vmatprep.subr.mxu0 0.0
    %1548 = vmatpush2.msra.mxu0 0.0
    %1549 = vmatprep.mubr.f32.mxu0 0.0
    %1550 = vmatmul.mubr.f32.gmra.mxu0 %v1483
    %v1551 = vpop.f32.mrf.mxu0
    %v1552 = vadd.f32 0.0, %v1551
    %v1553 = vpop.f32.mrf.mxu0
    %1554 = vdwg.mxu0
    %v1555 = vadd.f32 %v1479, %v1552
    %v1556 = vxor.u32 %v1555, 2147483648
    %v1557 = vmul.f32 %v1556, 1.442695
    %v1558 = vpow.pop %v1557
    %v1559 = vadd.f32 %v1558, 1.0
    %v1560 = vrcp.pop %v1559
    %v1561 = vmul.f32 1.0, %v1560
    %v1562 = vtanh.pop %v1555
    %v1563 = vmul.f32 %v1561, %v1369
    %1565 = vrot.lane.b32.xlu0 %v1562, 64
    %v1566 = vpop.permute.xlu0 %1565
    %v1568 = vmul.f32 %v1561, %v1566
    %1570 = vrot.lane.b32.xlu0 %v1568, 32
    %v1571 = vpop.permute.xlu0 %1570
    %v1573 = vadd.f32 %v1563, %v1571
    %v1574 = vtanh.pop %v1573
    %1576 = vrot.lane.b32.xlu0 %v1574, 64
    %v1577 = vpop.permute.xlu0 %1576
    %v1579 = vmul.f32 %v1561, %v1577
    %v1580 = vld [vmem:[%s2] sm:$0xff]
    %1582 = vrot.lane.b32.xlu0 %v1477, 32
    %v1583 = vpop.permute.xlu0 %1582
    %v1584 = vsel %vm54, %v1583, 0
    %1586 = vmatprep.subr.mxu0 0.0
    %1587 = vmatpush1.msra.mxu0 0.0
    %1588 = vmatprep.subr.mxu0 0.0
    %1589 = vmatpush1.msra.mxu0 0.0
    %1590 = vmatprep.subr.mxu0 0.0
    %1591 = vmatpush1.msra.mxu0 0.0
    %1592 = vmatprep.subr.mxu0 0.0
    %1593 = vmatpush1.msra.mxu0 0.0
    %1594 = vmatprep.subr.mxu0 0.0
    %1595 = vmatpush1.msra.mxu0 0.0
    %1596 = vmatprep.subr.mxu0 0.0
    %1597 = vmatpush1.msra.mxu0 0.0
    %1598 = vmatprep.subr.mxu0 0.0
    %1599 = vmatpush1.msra.mxu0 0.0
    %1600 = vmatprep.subr.mxu0 0.0
    %1601 = vmatpush1.msra.mxu0 0.0
    %1602 = vmatprep.subr.mxu0 0.0
    %1603 = vmatpush1.msra.mxu0 0.0
    %1604 = vmatprep.subr.mxu0 0.0
    %1605 = vmatpush1.msra.mxu0 0.0
    %1606 = vmatprep.subr.mxu0 0.0
    %1607 = vmatpush1.msra.mxu0 0.0
    %1608 = vmatprep.subr.mxu0 0.0
    %1609 = vmatpush1.msra.mxu0 0.0
    %1610 = vmatprep.subr.mxu0 0.0
    %1611 = vmatpush1.msra.mxu0 %v158
    %1612 = vmatprep.subr.mxu0 0.0
    %1613 = vmatpush1.msra.mxu0 %v157
    %1614 = vmatprep.subr.mxu0 0.0
    %1615 = vmatpush1.msra.mxu0 %v156
    %1616 = vmatprep.subr.mxu0 0.0
    %1617 = vmatpush1.msra.mxu0 %v155
    %1618 = vmatprep.subr.mxu0 0.0
    %1619 = vmatpush2.msra.mxu0 0.0
    %1620 = vmatprep.subr.mxu0 0.0
    %1621 = vmatpush2.msra.mxu0 0.0
    %1622 = vmatprep.subr.mxu0 0.0
    %1623 = vmatpush2.msra.mxu0 0.0
    %1624 = vmatprep.subr.mxu0 0.0
    %1625 = vmatpush2.msra.mxu0 0.0
    %1626 = vmatprep.subr.mxu0 0.0
    %1627 = vmatpush2.msra.mxu0 0.0
    %1628 = vmatprep.subr.mxu0 0.0
    %1629 = vmatpush2.msra.mxu0 0.0
    %1630 = vmatprep.subr.mxu0 0.0
    %1631 = vmatpush2.msra.mxu0 0.0
    %1632 = vmatprep.subr.mxu0 0.0
    %1633 = vmatpush2.msra.mxu0 0.0
    %1634 = vmatprep.subr.mxu0 0.0
    %1635 = vmatpush2.msra.mxu0 0.0
    %1636 = vmatprep.subr.mxu0 0.0
    %1637 = vmatpush2.msra.mxu0 0.0
    %1638 = vmatprep.subr.mxu0 0.0
    %1639 = vmatpush2.msra.mxu0 0.0
    %1640 = vmatprep.subr.mxu0 0.0
    %1641 = vmatpush2.msra.mxu0 0.0
    %1642 = vmatprep.subr.mxu0 0.0
    %1643 = vmatpush2.msra.mxu0 0.0
    %1644 = vmatprep.subr.mxu0 0.0
    %1645 = vmatpush2.msra.mxu0 0.0
    %1646 = vmatprep.subr.mxu0 0.0
    %1647 = vmatpush2.msra.mxu0 0.0
    %1648 = vmatprep.subr.mxu0 0.0
    %1649 = vmatpush2.msra.mxu0 0.0
    %1650 = vmatprep.mubr.f32.mxu0 0.0
    %1651 = vmatmul.mubr.f32.gmra.mxu0 %v1584
    %v1652 = vpop.f32.mrf.mxu0
    %v1653 = vadd.f32 0.0, %v1652
    %v1654 = vpop.f32.mrf.mxu0
    %1655 = vdwg.mxu0
    %v1656 = vadd.f32 %v1580, %v1653
    %v1657 = vxor.u32 %v1656, 2147483648
    %v1658 = vmul.f32 %v1657, 1.442695
    %v1659 = vpow.pop %v1658
    %v1660 = vadd.f32 %v1659, 1.0
    %v1661 = vrcp.pop %v1660
    %v1662 = vmul.f32 1.0, %v1661
    %v1663 = vtanh.pop %v1656
    %v1664 = vmul.f32 %v1662, %v1471
    %1666 = vrot.lane.b32.xlu0 %v1663, 64
    %v1667 = vpop.permute.xlu0 %1666
    %v1669 = vmul.f32 %v1662, %v1667
    %1671 = vrot.lane.b32.xlu0 %v1669, 32
    %v1672 = vpop.permute.xlu0 %1671
    %v1674 = vadd.f32 %v1664, %v1672
    %v1675 = vtanh.pop %v1674
    %1677 = vrot.lane.b32.xlu0 %v1675, 64
    %v1678 = vpop.permute.xlu0 %1677
    %v1680 = vmul.f32 %v1662, %v1678
    %v1681 = vadd.f32 %v1579, %v1680
    %v1682 = vmul.f32 %v1681, 0.5
    %v1683 = vadd.f32 %v1573, %v1674
    %v1684 = vmul.f32 %v1683, 0.5
    %1685 = vst [vmem:[#allocation5] sm:$0xff] 0.0
    %v1686 = vlaneseq
    %v1687 = vand.u32 %v1686, 127
    %v1688 = vld [vmem:[%s9] sm:$0x1]
    %v1690 = vlaneseq
    %v1691 = vshrl.u32 %v1690, 7
    %v1692 = vsub.s32 0, %v1691
    %v1693 = vrot.slane %v1688, %v1692
    %v1695 = vld [vmem:[%s3] sm:$0xff]
    %v1696 = vld [vmem:[%s7] sm:$0xff]
    %v1697 = vld [vmem:[%s7 + $0x8] sm:$0xff]
    %v1698 = vld [vmem:[%s7 + $0x10] sm:$0xff]
    %v1699 = vld [vmem:[%s7 + $0x18] sm:$0xff]
    %1701 = vrot.lane.b32.xlu0 %v1682, 32
    %v1702 = vpop.permute.xlu0 %1701
    %v1703 = vsel %vm54, %v1702, 0
    %1705 = vmatprep.subr.mxu0 0.0
    %1706 = vmatpush1.msra.mxu0 0.0
    %1707 = vmatprep.subr.mxu0 0.0
    %1708 = vmatpush1.msra.mxu0 0.0
    %1709 = vmatprep.subr.mxu0 0.0
    %1710 = vmatpush1.msra.mxu0 0.0
    %1711 = vmatprep.subr.mxu0 0.0
    %1712 = vmatpush1.msra.mxu0 0.0
    %1713 = vmatprep.subr.mxu0 0.0
    %1714 = vmatpush1.msra.mxu0 0.0
    %1715 = vmatprep.subr.mxu0 0.0
    %1716 = vmatpush1.msra.mxu0 0.0
    %1717 = vmatprep.subr.mxu0 0.0
    %1718 = vmatpush1.msra.mxu0 0.0
    %1719 = vmatprep.subr.mxu0 0.0
    %1720 = vmatpush1.msra.mxu0 0.0
    %1721 = vmatprep.subr.mxu0 0.0
    %1722 = vmatpush1.msra.mxu0 0.0
    %1723 = vmatprep.subr.mxu0 0.0
    %1724 = vmatpush1.msra.mxu0 0.0
    %1725 = vmatprep.subr.mxu0 0.0
    %1726 = vmatpush1.msra.mxu0 0.0
    %1727 = vmatprep.subr.mxu0 0.0
    %1728 = vmatpush1.msra.mxu0 0.0
    %1729 = vmatprep.subr.mxu0 0.0
    %1730 = vmatpush1.msra.mxu0 %v1699
    %1731 = vmatprep.subr.mxu0 0.0
    %1732 = vmatpush1.msra.mxu0 %v1698
    %1733 = vmatprep.subr.mxu0 0.0
    %1734 = vmatpush1.msra.mxu0 %v1697
    %1735 = vmatprep.subr.mxu0 0.0
    %1736 = vmatpush1.msra.mxu0 %v1696
    %1737 = vmatprep.subr.mxu0 0.0
    %1738 = vmatpush2.msra.mxu0 0.0
    %1739 = vmatprep.subr.mxu0 0.0
    %1740 = vmatpush2.msra.mxu0 0.0
    %1741 = vmatprep.subr.mxu0 0.0
    %1742 = vmatpush2.msra.mxu0 0.0
    %1743 = vmatprep.subr.mxu0 0.0
    %1744 = vmatpush2.msra.mxu0 0.0
    %1745 = vmatprep.subr.mxu0 0.0
    %1746 = vmatpush2.msra.mxu0 0.0
    %1747 = vmatprep.subr.mxu0 0.0
    %1748 = vmatpush2.msra.mxu0 0.0
    %1749 = vmatprep.subr.mxu0 0.0
    %1750 = vmatpush2.msra.mxu0 0.0
    %1751 = vmatprep.subr.mxu0 0.0
    %1752 = vmatpush2.msra.mxu0 0.0
    %1753 = vmatprep.subr.mxu0 0.0
    %1754 = vmatpush2.msra.mxu0 0.0
    %1755 = vmatprep.subr.mxu0 0.0
    %1756 = vmatpush2.msra.mxu0 0.0
    %1757 = vmatprep.subr.mxu0 0.0
    %1758 = vmatpush2.msra.mxu0 0.0
    %1759 = vmatprep.subr.mxu0 0.0
    %1760 = vmatpush2.msra.mxu0 0.0
    %1761 = vmatprep.subr.mxu0 0.0
    %1762 = vmatpush2.msra.mxu0 0.0
    %1763 = vmatprep.subr.mxu0 0.0
    %1764 = vmatpush2.msra.mxu0 0.0
    %1765 = vmatprep.subr.mxu0 0.0
    %1766 = vmatpush2.msra.mxu0 0.0
    %1767 = vmatprep.subr.mxu0 0.0
    %1768 = vmatpush2.msra.mxu0 0.0
    %1769 = vmatprep.mubr.f32.mxu0 0.0
    %1770 = vmatmul.mubr.f32.gmra.mxu0 %v1703
    %v1771 = vpop.f32.mrf.mxu0
    %v1772 = vadd.f32 0.0, %v1771
    %v1773 = vpop.f32.mrf.mxu0
    %1774 = vdwg.mxu0
    %v1775 = vadd.f32 %v1695, %v1772
    %v1776 = vxor.u32 %v1775, 2147483648
    %v1777 = vmul.f32 %v1776, 1.442695
    %v1778 = vpow.pop %v1777
    %v1779 = vadd.f32 %v1778, 1.0
    %v1780 = vrcp.pop %v1779
    %v1781 = vmul.f32 1.0, %v1780
    %v1782 = vtanh.pop %v1775
    %v1783 = vmul.f32 %v1781, %v1684
    %1785 = vrot.lane.b32.xlu0 %v1782, 64
    %v1786 = vpop.permute.xlu0 %1785
    %v1788 = vmul.f32 %v1781, %v1786
    %1790 = vrot.lane.b32.xlu0 %v1788, 32
    %v1791 = vpop.permute.xlu0 %1790
    %v1793 = vadd.f32 %v1783, %v1791
    %v1794 = vtanh.pop %v1793
    %1796 = vrot.lane.b32.xlu0 %v1794, 64
    %v1797 = vpop.permute.xlu0 %1796
    %v1799 = vmul.f32 %v1781, %v1797
    %v1800 = vld [vmem:[%s8] sm:$0xff]
    %v1801 = vld [vmem:[%s8 + $0x8] sm:$0xff]
    %v1802 = vld [vmem:[%s8 + $0x10] sm:$0xff]
    %v1803 = vld [vmem:[%s8 + $0x18] sm:$0xff]
    %1805 = vrot.lane.b32.xlu0 %v1799, 32
    %v1806 = vpop.permute.xlu0 %1805
    %v1807 = vsel %vm54, %v1806, 0
    %1809 = vmatprep.subr.mxu0 0.0
    %1810 = vmatpush1.msra.mxu0 0.0
    %1811 = vmatprep.subr.mxu0 0.0
    %1812 = vmatpush1.msra.mxu0 0.0
    %1813 = vmatprep.subr.mxu0 0.0
    %1814 = vmatpush1.msra.mxu0 0.0
    %1815 = vmatprep.subr.mxu0 0.0
    %1816 = vmatpush1.msra.mxu0 0.0
    %1817 = vmatprep.subr.mxu0 0.0
    %1818 = vmatpush1.msra.mxu0 0.0
    %1819 = vmatprep.subr.mxu0 0.0
    %1820 = vmatpush1.msra.mxu0 0.0
    %1821 = vmatprep.subr.mxu0 0.0
    %1822 = vmatpush1.msra.mxu0 0.0
    %1823 = vmatprep.subr.mxu0 0.0
    %1824 = vmatpush1.msra.mxu0 0.0
    %1825 = vmatprep.subr.mxu0 0.0
    %1826 = vmatpush1.msra.mxu0 0.0
    %1827 = vmatprep.subr.mxu0 0.0
    %1828 = vmatpush1.msra.mxu0 0.0
    %1829 = vmatprep.subr.mxu0 0.0
    %1830 = vmatpush1.msra.mxu0 0.0
    %1831 = vmatprep.subr.mxu0 0.0
    %1832 = vmatpush1.msra.mxu0 0.0
    %1833 = vmatprep.subr.mxu0 0.0
    %1834 = vmatpush1.msra.mxu0 %v1803
    %1835 = vmatprep.subr.mxu0 0.0
    %1836 = vmatpush1.msra.mxu0 %v1802
    %1837 = vmatprep.subr.mxu0 0.0
    %1838 = vmatpush1.msra.mxu0 %v1801
    %1839 = vmatprep.subr.mxu0 0.0
    %1840 = vmatpush1.msra.mxu0 %v1800
    %1841 = vmatprep.subr.mxu0 0.0
    %1842 = vmatpush2.msra.mxu0 0.0
    %1843 = vmatprep.subr.mxu0 0.0
    %1844 = vmatpush2.msra.mxu0 0.0
    %1845 = vmatprep.subr.mxu0 0.0
    %1846 = vmatpush2.msra.mxu0 0.0
    %1847 = vmatprep.subr.mxu0 0.0
    %1848 = vmatpush2.msra.mxu0 0.0
    %1849 = vmatprep.subr.mxu0 0.0
    %1850 = vmatpush2.msra.mxu0 0.0
    %1851 = vmatprep.subr.mxu0 0.0
    %1852 = vmatpush2.msra.mxu0 0.0
    %1853 = vmatprep.subr.mxu0 0.0
    %1854 = vmatpush2.msra.mxu0 0.0
    %1855 = vmatprep.subr.mxu0 0.0
    %1856 = vmatpush2.msra.mxu0 0.0
    %1857 = vmatprep.subr.mxu0 0.0
    %1858 = vmatpush2.msra.mxu0 0.0
    %1859 = vmatprep.subr.mxu0 0.0
    %1860 = vmatpush2.msra.mxu0 0.0
    %1861 = vmatprep.subr.mxu0 0.0
    %1862 = vmatpush2.msra.mxu0 0.0
    %1863 = vmatprep.subr.mxu0 0.0
    %1864 = vmatpush2.msra.mxu0 0.0
    %1865 = vmatprep.subr.mxu0 0.0
    %1866 = vmatpush2.msra.mxu0 0.0
    %1867 = vmatprep.subr.mxu0 0.0
    %1868 = vmatpush2.msra.mxu0 0.0
    %1869 = vmatprep.subr.mxu0 0.0
    %1870 = vmatpush2.msra.mxu0 0.0
    %1871 = vmatprep.subr.mxu0 0.0
    %1872 = vmatpush2.msra.mxu0 0.0
    %1873 = vmatprep.mubr.f32.mxu0 0.0
    %1874 = vmatmul.mubr.f32.gmra.mxu0 %v1807
    %v1875 = vpop.f32.mrf.mxu0
    %v1876 = vadd.f32 %v1693, %v1875
    %v1877 = vpop.f32.mrf.mxu0
    %1878 = vdwg.mxu0
    %s1879 = scalar_lea.vmem [#allocation5], 8
    %1880 = vst [vmem:[%s1879] sm:$0xff] %v1876
    %s1881 = sld [smem:[#allocation2 + $0x1]]
    %p1882 = scmp.eq.s32.totalorder %s1881, 1
    // Predicated region
    $region46: #{seq2seq_forward.1} parent=1 // pred_check
      %p1883 = pneg %p1882
    $region47: #{seq2seq_forward.1} parent=1 // pred_check_branch
      %1885 = sbr.rel (%p1883) target = $region49
    $region48: #{seq2seq_forward.1} parent=1 // pred_region
      %s1886 = scalar_lea.vmem %s3, 8
      %v1887 = vld [vmem:[%s1886] sm:$0xff]
    $region49: #{seq2seq_forward.1} parent=1 // pred_fallthru
      %v1888 = vphi 0, %v1887
    %p1889 = pneg %p1882
    // Predicated region
    $region50: #{seq2seq_forward.1} parent=1 // pred_check
      _
    $region51: #{seq2seq_forward.1} parent=1 // pred_check_branch
      %1891 = sbr.rel (%p1882) target = $region53
    $region52: #{seq2seq_forward.1} parent=1 // pred_region
      %1892 = vmax.xlane.f32.xlu0 %v1876
      %v1893 = vpop.xlane.xlu0 %1892
      %vm1894 = vcmp.eq.f32.partialorder %v1876, %v1893
      %v1895 = vsel %vm1894, %v1687, 128
      %v1896 = vand.u32 %v1895, 65535
      %v1897 = vshra.s32 %v1895, 16
      %v1898 = vcvt.s32.f32 %v1896
      %v1899 = vcvt.s32.f32 %v1897
      %1900 = vmin.xlane.f32.xlu0 %v1899
      %v1901 = vpop.xlane.xlu0 %1900
      %vm1902 = vcmp.eq.f32.partialorder %v1899, %v1901
      %v1903 = vsel %vm1902, %v1898, inf
      %1904 = vmin.xlane.f32.xlu0 %v1903
      %v1905 = vpop.xlane.xlu0 %1904
      %v1906 = vcvt.f32.s32 %v1905
      %v1907 = vcvt.f32.s32 %v1901
      %v1908 = vshll.u32 %v1907, 16
      %v1909 = vadd.s32 %v1908, %v1906
      %vm1910 = vcmp.eq.s32.totalorder %v1687, %v1909
      %v1911 = vsel %vm1910, 1, 0
      %v1912 = vcvt.s32.f32 %v1911
      %v1913 = vld [vmem:[%s4] sm:$0xff]
      %v1914 = vld [vmem:[%s4 + $0x8] sm:$0xff]
      %v1915 = vld [vmem:[%s4 + $0x10] sm:$0xff]
      %v1916 = vld [vmem:[%s4 + $0x18] sm:$0xff]
      %v1917 = vld [vmem:[%s4 + $0x20] sm:$0xff]
      %v1918 = vld [vmem:[%s4 + $0x28] sm:$0xff]
      %v1919 = vld [vmem:[%s4 + $0x30] sm:$0xff]
      %v1920 = vld [vmem:[%s4 + $0x38] sm:$0xff]
      %v1921 = vld [vmem:[%s4 + $0x40] sm:$0xff]
      %v1922 = vld [vmem:[%s4 + $0x48] sm:$0xff]
      %v1923 = vld [vmem:[%s4 + $0x50] sm:$0xff]
      %v1924 = vld [vmem:[%s4 + $0x58] sm:$0xff]
      %v1925 = vld [vmem:[%s4 + $0x60] sm:$0xff]
      %v1926 = vld [vmem:[%s4 + $0x68] sm:$0xff]
      %v1927 = vld [vmem:[%s4 + $0x70] sm:$0xff]
      %v1928 = vld [vmem:[%s4 + $0x78] sm:$0xff]
      %1929 = vmatprep.subr.mxu0 0.0
      %1930 = vmatpush1.msra.mxu0 %v1928
      %1931 = vmatprep.subr.mxu0 0.0
      %1932 = vmatpush1.msra.mxu0 %v1927
      %1933 = vmatprep.subr.mxu0 0.0
      %1934 = vmatpush1.msra.mxu0 %v1926
      %1935 = vmatprep.subr.mxu0 0.0
      %1936 = vmatpush1.msra.mxu0 %v1925
      %1937 = vmatprep.subr.mxu0 0.0
      %1938 = vmatpush1.msra.mxu0 %v1924
      %1939 = vmatprep.subr.mxu0 0.0
      %1940 = vmatpush1.msra.mxu0 %v1923
      %1941 = vmatprep.subr.mxu0 0.0
      %1942 = vmatpush1.msra.mxu0 %v1922
      %1943 = vmatprep.subr.mxu0 0.0
      %1944 = vmatpush1.msra.mxu0 %v1921
      %1945 = vmatprep.subr.mxu0 0.0
      %1946 = vmatpush1.msra.mxu0 %v1920
      %1947 = vmatprep.subr.mxu0 0.0
      %1948 = vmatpush1.msra.mxu0 %v1919
      %1949 = vmatprep.subr.mxu0 0.0
      %1950 = vmatpush1.msra.mxu0 %v1918
      %1951 = vmatprep.subr.mxu0 0.0
      %1952 = vmatpush1.msra.mxu0 %v1917
      %1953 = vmatprep.subr.mxu0 0.0
      %1954 = vmatpush1.msra.mxu0 %v1916
      %1955 = vmatprep.subr.mxu0 0.0
      %1956 = vmatpush1.msra.mxu0 %v1915
      %1957 = vmatprep.subr.mxu0 0.0
      %1958 = vmatpush1.msra.mxu0 %v1914
      %1959 = vmatprep.subr.mxu0 0.0
      %1960 = vmatpush1.msra.mxu0 %v1913
      %1961 = vmatprep.subr.mxu0 0.0
      %1962 = vmatpush2.msra.mxu0 0.0
      %1963 = vmatprep.subr.mxu0 0.0
      %1964 = vmatpush2.msra.mxu0 0.0
      %1965 = vmatprep.subr.mxu0 0.0
      %1966 = vmatpush2.msra.mxu0 0.0
      %1967 = vmatprep.subr.mxu0 0.0
      %1968 = vmatpush2.msra.mxu0 0.0
      %1969 = vmatprep.subr.mxu0 0.0
      %1970 = vmatpush2.msra.mxu0 0.0
      %1971 = vmatprep.subr.mxu0 0.0
      %1972 = vmatpush2.msra.mxu0 0.0
      %1973 = vmatprep.subr.mxu0 0.0
      %1974 = vmatpush2.msra.mxu0 0.0
      %1975 = vmatprep.subr.mxu0 0.0
      %1976 = vmatpush2.msra.mxu0 0.0
      %1977 = vmatprep.subr.mxu0 0.0
      %1978 = vmatpush2.msra.mxu0 0.0
      %1979 = vmatprep.subr.mxu0 0.0
      %1980 = vmatpush2.msra.mxu0 0.0
      %1981 = vmatprep.subr.mxu0 0.0
      %1982 = vmatpush2.msra.mxu0 0.0
      %1983 = vmatprep.subr.mxu0 0.0
      %1984 = vmatpush2.msra.mxu0 0.0
      %1985 = vmatprep.subr.mxu0 0.0
      %1986 = vmatpush2.msra.mxu0 0.0
      %1987 = vmatprep.subr.mxu0 0.0
      %1988 = vmatpush2.msra.mxu0 0.0
      %1989 = vmatprep.subr.mxu0 0.0
      %1990 = vmatpush2.msra.mxu0 0.0
      %1991 = vmatprep.subr.mxu0 0.0
      %1992 = vmatpush2.msra.mxu0 0.0
      %1993 = vmatprep.mubr.f32.mxu0 0.0
      %1994 = vmatmul.mubr.f32.gmra.mxu0 %v1912
      %v1995 = vpop.f32.mrf.mxu0
      %v1996 = vadd.f32 0.0, %v1995
      %v1997 = vpop.f32.mrf.mxu0
      %1998 = vdwg.mxu0
    $region53: #{seq2seq_forward.1} parent=1 // pred_fallthru
      %v1999 = vphi %v1888, %v1996
    %v2000 = vld [vmem:[%s7] sm:$0xff]
    %v2001 = vld [vmem:[%s7 + $0x8] sm:$0xff]
    %v2002 = vld [vmem:[%s7 + $0x10] sm:$0xff]
    %v2003 = vld [vmem:[%s7 + $0x18] sm:$0xff]
    %2004 = vmatprep.subr.mxu0 0.0
    %2005 = vmatpush1.msra.mxu0 0.0
    %2006 = vmatprep.subr.mxu0 0.0
    %2007 = vmatpush1.msra.mxu0 0.0
    %2008 = vmatprep.subr.mxu0 0.0
    %2009 = vmatpush1.msra.mxu0 0.0
    %2010 = vmatprep.subr.mxu0 0.0
    %2011 = vmatpush1.msra.mxu0 0.0
    %2012 = vmatprep.subr.mxu0 0.0
    %2013 = vmatpush1.msra.mxu0 0.0
    %2014 = vmatprep.subr.mxu0 0.0
    %2015 = vmatpush1.msra.mxu0 0.0
    %2016 = vmatprep.subr.mxu0 0.0
    %2017 = vmatpush1.msra.mxu0 0.0
    %2018 = vmatprep.subr.mxu0 0.0
    %2019 = vmatpush1.msra.mxu0 0.0
    %2020 = vmatprep.subr.mxu0 0.0
    %2021 = vmatpush1.msra.mxu0 0.0
    %2022 = vmatprep.subr.mxu0 0.0
    %2023 = vmatpush1.msra.mxu0 0.0
    %2024 = vmatprep.subr.mxu0 0.0
    %2025 = vmatpush1.msra.mxu0 0.0
    %2026 = vmatprep.subr.mxu0 0.0
    %2027 = vmatpush1.msra.mxu0 0.0
    %2028 = vmatprep.subr.mxu0 0.0
    %2029 = vmatpush1.msra.mxu0 %v2003
    %2030 = vmatprep.subr.mxu0 0.0
    %2031 = vmatpush1.msra.mxu0 %v2002
    %2032 = vmatprep.subr.mxu0 0.0
    %2033 = vmatpush1.msra.mxu0 %v2001
    %2034 = vmatprep.subr.mxu0 0.0
    %2035 = vmatpush1.msra.mxu0 %v2000
    %2036 = vmatprep.subr.mxu0 0.0
    %2037 = vmatpush2.msra.mxu0 0.0
    %2038 = vmatprep.subr.mxu0 0.0
    %2039 = vmatpush2.msra.mxu0 0.0
    %2040 = vmatprep.subr.mxu0 0.0
    %2041 = vmatpush2.msra.mxu0 0.0
    %2042 = vmatprep.subr.mxu0 0.0
    %2043 = vmatpush2.msra.mxu0 0.0
    %2044 = vmatprep.subr.mxu0 0.0
    %2045 = vmatpush2.msra.mxu0 0.0
    %2046 = vmatprep.subr.mxu0 0.0
    %2047 = vmatpush2.msra.mxu0 0.0
    %2048 = vmatprep.subr.mxu0 0.0
    %2049 = vmatpush2.msra.mxu0 0.0
    %2050 = vmatprep.subr.mxu0 0.0
    %2051 = vmatpush2.msra.mxu0 0.0
    %2052 = vmatprep.subr.mxu0 0.0
    %2053 = vmatpush2.msra.mxu0 0.0
    %2054 = vmatprep.subr.mxu0 0.0
    %2055 = vmatpush2.msra.mxu0 0.0
    %2056 = vmatprep.subr.mxu0 0.0
    %2057 = vmatpush2.msra.mxu0 0.0
    %2058 = vmatprep.subr.mxu0 0.0
    %2059 = vmatpush2.msra.mxu0 0.0
    %2060 = vmatprep.subr.mxu0 0.0
    %2061 = vmatpush2.msra.mxu0 0.0
    %2062 = vmatprep.subr.mxu0 0.0
    %2063 = vmatpush2.msra.mxu0 0.0
    %2064 = vmatprep.subr.mxu0 0.0
    %2065 = vmatpush2.msra.mxu0 0.0
    %2066 = vmatprep.subr.mxu0 0.0
    %2067 = vmatpush2.msra.mxu0 0.0
    %2068 = vmatprep.mubr.f32.mxu0 0.0
    %2069 = vmatmul.mubr.f32.gmra.mxu0 %v1807
    %v2070 = vpop.f32.mrf.mxu0
    %v2071 = vadd.f32 0.0, %v2070
    %v2072 = vpop.f32.mrf.mxu0
    %2073 = vdwg.mxu0
    %v2074 = vadd.f32 %v1999, %v2071
    %v2075 = vxor.u32 %v2074, 2147483648
    %v2076 = vmul.f32 %v2075, 1.442695
    %v2077 = vpow.pop %v2076
    %v2078 = vadd.f32 %v2077, 1.0
    %v2079 = vrcp.pop %v2078
    %v2080 = vmul.f32 1.0, %v2079
    %v2081 = vtanh.pop %v2074
    %v2082 = vmul.f32 %v2080, %v1793
    %2084 = vrot.lane.b32.xlu0 %v2081, 64
    %v2085 = vpop.permute.xlu0 %2084
    %v2087 = vmul.f32 %v2080, %v2085
    %2089 = vrot.lane.b32.xlu0 %v2087, 32
    %v2090 = vpop.permute.xlu0 %2089
    %v2092 = vadd.f32 %v2082, %v2090
    %v2093 = vtanh.pop %v2092
    %2095 = vrot.lane.b32.xlu0 %v2093, 64
    %v2096 = vpop.permute.xlu0 %2095
    %v2098 = vmul.f32 %v2080, %v2096
    %v2099 = vld [vmem:[%s8] sm:$0xff]
    %v2100 = vld [vmem:[%s8 + $0x8] sm:$0xff]
    %v2101 = vld [vmem:[%s8 + $0x10] sm:$0xff]
    %v2102 = vld [vmem:[%s8 + $0x18] sm:$0xff]
    %2104 = vrot.lane.b32.xlu0 %v2098, 32
    %v2105 = vpop.permute.xlu0 %2104
    %v2106 = vsel %vm54, %v2105, 0
    %2108 = vmatprep.subr.mxu0 0.0
    %2109 = vmatpush1.msra.mxu0 0.0
    %2110 = vmatprep.subr.mxu0 0.0
    %2111 = vmatpush1.msra.mxu0 0.0
    %2112 = vmatprep.subr.mxu0 0.0
    %2113 = vmatpush1.msra.mxu0 0.0
    %2114 = vmatprep.subr.mxu0 0.0
    %2115 = vmatpush1.msra.mxu0 0.0
    %2116 = vmatprep.subr.mxu0 0.0
    %2117 = vmatpush1.msra.mxu0 0.0
    %2118 = vmatprep.subr.mxu0 0.0
    %2119 = vmatpush1.msra.mxu0 0.0
    %2120 = vmatprep.subr.mxu0 0.0
    %2121 = vmatpush1.msra.mxu0 0.0
    %2122 = vmatprep.subr.mxu0 0.0
    %2123 = vmatpush1.msra.mxu0 0.0
    %2124 = vmatprep.subr.mxu0 0.0
    %2125 = vmatpush1.msra.mxu0 0.0
    %2126 = vmatprep.subr.mxu0 0.0
    %2127 = vmatpush1.msra.mxu0 0.0
    %2128 = vmatprep.subr.mxu0 0.0
    %2129 = vmatpush1.msra.mxu0 0.0
    %2130 = vmatprep.subr.mxu0 0.0
    %2131 = vmatpush1.msra.mxu0 0.0
    %2132 = vmatprep.subr.mxu0 0.0
    %2133 = vmatpush1.msra.mxu0 %v2102
    %2134 = vmatprep.subr.mxu0 0.0
    %2135 = vmatpush1.msra.mxu0 %v2101
    %2136 = vmatprep.subr.mxu0 0.0
    %2137 = vmatpush1.msra.mxu0 %v2100
    %2138 = vmatprep.subr.mxu0 0.0
    %2139 = vmatpush1.msra.mxu0 %v2099
    %2140 = vmatprep.subr.mxu0 0.0
    %2141 = vmatpush2.msra.mxu0 0.0
    %2142 = vmatprep.subr.mxu0 0.0
    %2143 = vmatpush2.msra.mxu0 0.0
    %2144 = vmatprep.subr.mxu0 0.0
    %2145 = vmatpush2.msra.mxu0 0.0
    %2146 = vmatprep.subr.mxu0 0.0
    %2147 = vmatpush2.msra.mxu0 0.0
    %2148 = vmatprep.subr.mxu0 0.0
    %2149 = vmatpush2.msra.mxu0 0.0
    %2150 = vmatprep.subr.mxu0 0.0
    %2151 = vmatpush2.msra.mxu0 0.0
    %2152 = vmatprep.subr.mxu0 0.0
    %2153 = vmatpush2.msra.mxu0 0.0
    %2154 = vmatprep.subr.mxu0 0.0
    %2155 = vmatpush2.msra.mxu0 0.0
    %2156 = vmatprep.subr.mxu0 0.0
    %2157 = vmatpush2.msra.mxu0 0.0
    %2158 = vmatprep.subr.mxu0 0.0
    %2159 = vmatpush2.msra.mxu0 0.0
    %2160 = vmatprep.subr.mxu0 0.0
    %2161 = vmatpush2.msra.mxu0 0.0
    %2162 = vmatprep.subr.mxu0 0.0
    %2163 = vmatpush2.msra.mxu0 0.0
    %2164 = vmatprep.subr.mxu0 0.0
    %2165 = vmatpush2.msra.mxu0 0.0
    %2166 = vmatprep.subr.mxu0 0.0
    %2167 = vmatpush2.msra.mxu0 0.0
    %2168 = vmatprep.subr.mxu0 0.0
    %2169 = vmatpush2.msra.mxu0 0.0
    %2170 = vmatprep.subr.mxu0 0.0
    %2171 = vmatpush2.msra.mxu0 0.0
    %2172 = vmatprep.mubr.f32.mxu0 0.0
    %2173 = vmatmul.mubr.f32.gmra.mxu0 %v2106
    %v2174 = vpop.f32.mrf.mxu0
    %v2175 = vadd.f32 %v1693, %v2174
    %v2176 = vpop.f32.mrf.mxu0
    %2177 = vdwg.mxu0
    %s2178 = scalar_lea.vmem [#allocation5], 16
    %2179 = vst [vmem:[%s2178] sm:$0xff] %v2175
    %s2180 = sld [smem:[#allocation2 + $0x2]]
    %p2181 = scmp.eq.s32.totalorder %s2180, 1
    // Predicated region
    $region54: #{seq2seq_forward.1} parent=1 // pred_check
      %p2182 = pneg %p2181
    $region55: #{seq2seq_forward.1} parent=1 // pred_check_branch
      %2184 = sbr.rel (%p2182) target = $region57
    $region56: #{seq2seq_forward.1} parent=1 // pred_region
      %s2185 = scalar_lea.vmem %s3, 16
      %v2186 = vld [vmem:[%s2185] sm:$0xff]
    $region57: #{seq2seq_forward.1} parent=1 // pred_fallthru
      %v2187 = vphi 0, %v2186
    %p2188 = pneg %p2181
    // Predicated region
    $region58: #{seq2seq_forward.1} parent=1 // pred_check
      _
    $region59: #{seq2seq_forward.1} parent=1 // pred_check_branch
      %2190 = sbr.rel (%p2181) target = $region61
    $region60: #{seq2seq_forward.1} parent=1 // pred_region
      %2191 = vmax.xlane.f32.xlu0 %v2175
      %v2192 = vpop.xlane.xlu0 %2191
      %vm2193 = vcmp.eq.f32.partialorder %v2175, %v2192
      %v2194 = vsel %vm2193, %v1687, 128
      %v2195 = vand.u32 %v2194, 65535
      %v2196 = vshra.s32 %v2194, 16
      %v2197 = vcvt.s32.f32 %v2195
      %v2198 = vcvt.s32.f32 %v2196
      %2199 = vmin.xlane.f32.xlu0 %v2198
      %v2200 = vpop.xlane.xlu0 %2199
      %vm2201 = vcmp.eq.f32.partialorder %v2198, %v2200
      %v2202 = vsel %vm2201, %v2197, inf
      %2203 = vmin.xlane.f32.xlu0 %v2202
      %v2204 = vpop.xlane.xlu0 %2203
      %v2205 = vcvt.f32.s32 %v2204
      %v2206 = vcvt.f32.s32 %v2200
      %v2207 = vshll.u32 %v2206, 16
      %v2208 = vadd.s32 %v2207, %v2205
      %vm2209 = vcmp.eq.s32.totalorder %v1687, %v2208
      %v2210 = vsel %vm2209, 1, 0
      %v2211 = vcvt.s32.f32 %v2210
      %v2212 = vld [vmem:[%s4] sm:$0xff]
      %v2213 = vld [vmem:[%s4 + $0x8] sm:$0xff]
      %v2214 = vld [vmem:[%s4 + $0x10] sm:$0xff]
      %v2215 = vld [vmem:[%s4 + $0x18] sm:$0xff]
      %v2216 = vld [vmem:[%s4 + $0x20] sm:$0xff]
      %v2217 = vld [vmem:[%s4 + $0x28] sm:$0xff]
      %v2218 = vld [vmem:[%s4 + $0x30] sm:$0xff]
      %v2219 = vld [vmem:[%s4 + $0x38] sm:$0xff]
      %v2220 = vld [vmem:[%s4 + $0x40] sm:$0xff]
      %v2221 = vld [vmem:[%s4 + $0x48] sm:$0xff]
      %v2222 = vld [vmem:[%s4 + $0x50] sm:$0xff]
      %v2223 = vld [vmem:[%s4 + $0x58] sm:$0xff]
      %v2224 = vld [vmem:[%s4 + $0x60] sm:$0xff]
      %v2225 = vld [vmem:[%s4 + $0x68] sm:$0xff]
      %v2226 = vld [vmem:[%s4 + $0x70] sm:$0xff]
      %v2227 = vld [vmem:[%s4 + $0x78] sm:$0xff]
      %2228 = vmatprep.subr.mxu0 0.0
      %2229 = vmatpush1.msra.mxu0 %v2227
      %2230 = vmatprep.subr.mxu0 0.0
      %2231 = vmatpush1.msra.mxu0 %v2226
      %2232 = vmatprep.subr.mxu0 0.0
      %2233 = vmatpush1.msra.mxu0 %v2225
      %2234 = vmatprep.subr.mxu0 0.0
      %2235 = vmatpush1.msra.mxu0 %v2224
      %2236 = vmatprep.subr.mxu0 0.0
      %2237 = vmatpush1.msra.mxu0 %v2223
      %2238 = vmatprep.subr.mxu0 0.0
      %2239 = vmatpush1.msra.mxu0 %v2222
      %2240 = vmatprep.subr.mxu0 0.0
      %2241 = vmatpush1.msra.mxu0 %v2221
      %2242 = vmatprep.subr.mxu0 0.0
      %2243 = vmatpush1.msra.mxu0 %v2220
      %2244 = vmatprep.subr.mxu0 0.0
      %2245 = vmatpush1.msra.mxu0 %v2219
      %2246 = vmatprep.subr.mxu0 0.0
      %2247 = vmatpush1.msra.mxu0 %v2218
      %2248 = vmatprep.subr.mxu0 0.0
      %2249 = vmatpush1.msra.mxu0 %v2217
      %2250 = vmatprep.subr.mxu0 0.0
      %2251 = vmatpush1.msra.mxu0 %v2216
      %2252 = vmatprep.subr.mxu0 0.0
      %2253 = vmatpush1.msra.mxu0 %v2215
      %2254 = vmatprep.subr.mxu0 0.0
      %2255 = vmatpush1.msra.mxu0 %v2214
      %2256 = vmatprep.subr.mxu0 0.0
      %2257 = vmatpush1.msra.mxu0 %v2213
      %2258 = vmatprep.subr.mxu0 0.0
      %2259 = vmatpush1.msra.mxu0 %v2212
      %2260 = vmatprep.subr.mxu0 0.0
      %2261 = vmatpush2.msra.mxu0 0.0
      %2262 = vmatprep.subr.mxu0 0.0
      %2263 = vmatpush2.msra.mxu0 0.0
      %2264 = vmatprep.subr.mxu0 0.0
      %2265 = vmatpush2.msra.mxu0 0.0
      %2266 = vmatprep.subr.mxu0 0.0
      %2267 = vmatpush2.msra.mxu0 0.0
      %2268 = vmatprep.subr.mxu0 0.0
      %2269 = vmatpush2.msra.mxu0 0.0
      %2270 = vmatprep.subr.mxu0 0.0
      %2271 = vmatpush2.msra.mxu0 0.0
      %2272 = vmatprep.subr.mxu0 0.0
      %2273 = vmatpush2.msra.mxu0 0.0
      %2274 = vmatprep.subr.mxu0 0.0
      %2275 = vmatpush2.msra.mxu0 0.0
      %2276 = vmatprep.subr.mxu0 0.0
      %2277 = vmatpush2.msra.mxu0 0.0
      %2278 = vmatprep.subr.mxu0 0.0
      %2279 = vmatpush2.msra.mxu0 0.0
      %2280 = vmatprep.subr.mxu0 0.0
      %2281 = vmatpush2.msra.mxu0 0.0
      %2282 = vmatprep.subr.mxu0 0.0
      %2283 = vmatpush2.msra.mxu0 0.0
      %2284 = vmatprep.subr.mxu0 0.0
      %2285 = vmatpush2.msra.mxu0 0.0
      %2286 = vmatprep.subr.mxu0 0.0
      %2287 = vmatpush2.msra.mxu0 0.0
      %2288 = vmatprep.subr.mxu0 0.0
      %2289 = vmatpush2.msra.mxu0 0.0
      %2290 = vmatprep.subr.mxu0 0.0
      %2291 = vmatpush2.msra.mxu0 0.0
      %2292 = vmatprep.mubr.f32.mxu0 0.0
      %2293 = vmatmul.mubr.f32.gmra.mxu0 %v2211
      %v2294 = vpop.f32.mrf.mxu0
      %v2295 = vadd.f32 0.0, %v2294
      %v2296 = vpop.f32.mrf.mxu0
      %2297 = vdwg.mxu0
    $region61: #{seq2seq_forward.1} parent=1 // pred_fallthru
      %v2298 = vphi %v2187, %v2295
    %v2299 = vld [vmem:[%s7] sm:$0xff]
    %v2300 = vld [vmem:[%s7 + $0x8] sm:$0xff]
    %v2301 = vld [vmem:[%s7 + $0x10] sm:$0xff]
    %v2302 = vld [vmem:[%s7 + $0x18] sm:$0xff]
    %2303 = vmatprep.subr.mxu0 0.0
    %2304 = vmatpush1.msra.mxu0 0.0
    %2305 = vmatprep.subr.mxu0 0.0
    %2306 = vmatpush1.msra.mxu0 0.0
    %2307 = vmatprep.subr.mxu0 0.0
    %2308 = vmatpush1.msra.mxu0 0.0
    %2309 = vmatprep.subr.mxu0 0.0
    %2310 = vmatpush1.msra.mxu0 0.0
    %2311 = vmatprep.subr.mxu0 0.0
    %2312 = vmatpush1.msra.mxu0 0.0
    %2313 = vmatprep.subr.mxu0 0.0
    %2314 = vmatpush1.msra.mxu0 0.0
    %2315 = vmatprep.subr.mxu0 0.0
    %2316 = vmatpush1.msra.mxu0 0.0
    %2317 = vmatprep.subr.mxu0 0.0
    %2318 = vmatpush1.msra.mxu0 0.0
    %2319 = vmatprep.subr.mxu0 0.0
    %2320 = vmatpush1.msra.mxu0 0.0
    %2321 = vmatprep.subr.mxu0 0.0
    %2322 = vmatpush1.msra.mxu0 0.0
    %2323 = vmatprep.subr.mxu0 0.0
    %2324 = vmatpush1.msra.mxu0 0.0
    %2325 = vmatprep.subr.mxu0 0.0
    %2326 = vmatpush1.msra.mxu0 0.0
    %2327 = vmatprep.subr.mxu0 0.0
    %2328 = vmatpush1.msra.mxu0 %v2302
    %2329 = vmatprep.subr.mxu0 0.0
    %2330 = vmatpush1.msra.mxu0 %v2301
    %2331 = vmatprep.subr.mxu0 0.0
    %2332 = vmatpush1.msra.mxu0 %v2300
    %2333 = vmatprep.subr.mxu0 0.0
    %2334 = vmatpush1.msra.mxu0 %v2299
    %2335 = vmatprep.subr.mxu0 0.0
    %2336 = vmatpush2.msra.mxu0 0.0
    %2337 = vmatprep.subr.mxu0 0.0
    %2338 = vmatpush2.msra.mxu0 0.0
    %2339 = vmatprep.subr.mxu0 0.0
    %2340 = vmatpush2.msra.mxu0 0.0
    %2341 = vmatprep.subr.mxu0 0.0
    %2342 = vmatpush2.msra.mxu0 0.0
    %2343 = vmatprep.subr.mxu0 0.0
    %2344 = vmatpush2.msra.mxu0 0.0
    %2345 = vmatprep.subr.mxu0 0.0
    %2346 = vmatpush2.msra.mxu0 0.0
    %2347 = vmatprep.subr.mxu0 0.0
    %2348 = vmatpush2.msra.mxu0 0.0
    %2349 = vmatprep.subr.mxu0 0.0
    %2350 = vmatpush2.msra.mxu0 0.0
    %2351 = vmatprep.subr.mxu0 0.0
    %2352 = vmatpush2.msra.mxu0 0.0
    %2353 = vmatprep.subr.mxu0 0.0
    %2354 = vmatpush2.msra.mxu0 0.0
    %2355 = vmatprep.subr.mxu0 0.0
    %2356 = vmatpush2.msra.mxu0 0.0
    %2357 = vmatprep.subr.mxu0 0.0
    %2358 = vmatpush2.msra.mxu0 0.0
    %2359 = vmatprep.subr.mxu0 0.0
    %2360 = vmatpush2.msra.mxu0 0.0
    %2361 = vmatprep.subr.mxu0 0.0
    %2362 = vmatpush2.msra.mxu0 0.0
    %2363 = vmatprep.subr.mxu0 0.0
    %2364 = vmatpush2.msra.mxu0 0.0
    %2365 = vmatprep.subr.mxu0 0.0
    %2366 = vmatpush2.msra.mxu0 0.0
    %2367 = vmatprep.mubr.f32.mxu0 0.0
    %2368 = vmatmul.mubr.f32.gmra.mxu0 %v2106
    %v2369 = vpop.f32.mrf.mxu0
    %v2370 = vadd.f32 0.0, %v2369
    %v2371 = vpop.f32.mrf.mxu0
    %2372 = vdwg.mxu0
    %v2373 = vadd.f32 %v2298, %v2370
    %v2374 = vxor.u32 %v2373, 2147483648
    %v2375 = vmul.f32 %v2374, 1.442695
    %v2376 = vpow.pop %v2375
    %v2377 = vadd.f32 %v2376, 1.0
    %v2378 = vrcp.pop %v2377
    %v2379 = vmul.f32 1.0, %v2378
    %v2380 = vtanh.pop %v2373
    %v2381 = vmul.f32 %v2379, %v2092
    %2383 = vrot.lane.b32.xlu0 %v2380, 64
    %v2384 = vpop.permute.xlu0 %2383
    %v2386 = vmul.f32 %v2379, %v2384
    %2388 = vrot.lane.b32.xlu0 %v2386, 32
    %v2389 = vpop.permute.xlu0 %2388
    %v2391 = vadd.f32 %v2381, %v2389
    %v2392 = vtanh.pop %v2391
    %2394 = vrot.lane.b32.xlu0 %v2392, 64
    %v2395 = vpop.permute.xlu0 %2394
    %v2397 = vmul.f32 %v2379, %v2395
    %v2398 = vld [vmem:[%s8] sm:$0xff]
    %v2399 = vld [vmem:[%s8 + $0x8] sm:$0xff]
    %v2400 = vld [vmem:[%s8 + $0x10] sm:$0xff]
    %v2401 = vld [vmem:[%s8 + $0x18] sm:$0xff]
    %2403 = vrot.lane.b32.xlu0 %v2397, 32
    %v2404 = vpop.permute.xlu0 %2403
    %v2405 = vsel %vm54, %v2404, 0
    %2407 = vmatprep.subr.mxu0 0.0
    %2408 = vmatpush1.msra.mxu0 0.0
    %2409 = vmatprep.subr.mxu0 0.0
    %2410 = vmatpush1.msra.mxu0 0.0
    %2411 = vmatprep.subr.mxu0 0.0
    %2412 = vmatpush1.msra.mxu0 0.0
    %2413 = vmatprep.subr.mxu0 0.0
    %2414 = vmatpush1.msra.mxu0 0.0
    %2415 = vmatprep.subr.mxu0 0.0
    %2416 = vmatpush1.msra.mxu0 0.0
    %2417 = vmatprep.subr.mxu0 0.0
    %2418 = vmatpush1.msra.mxu0 0.0
    %2419 = vmatprep.subr.mxu0 0.0
    %2420 = vmatpush1.msra.mxu0 0.0
    %2421 = vmatprep.subr.mxu0 0.0
    %2422 = vmatpush1.msra.mxu0 0.0
    %2423 = vmatprep.subr.mxu0 0.0
    %2424 = vmatpush1.msra.mxu0 0.0
    %2425 = vmatprep.subr.mxu0 0.0
    %2426 = vmatpush1.msra.mxu0 0.0
    %2427 = vmatprep.subr.mxu0 0.0
    %2428 = vmatpush1.msra.mxu0 0.0
    %2429 = vmatprep.subr.mxu0 0.0
    %2430 = vmatpush1.msra.mxu0 0.0
    %2431 = vmatprep.subr.mxu0 0.0
    %2432 = vmatpush1.msra.mxu0 %v2401
    %2433 = vmatprep.subr.mxu0 0.0
    %2434 = vmatpush1.msra.mxu0 %v2400
    %2435 = vmatprep.subr.mxu0 0.0
    %2436 = vmatpush1.msra.mxu0 %v2399
    %2437 = vmatprep.subr.mxu0 0.0
    %2438 = vmatpush1.msra.mxu0 %v2398
    %2439 = vmatprep.subr.mxu0 0.0
    %2440 = vmatpush2.msra.mxu0 0.0
    %2441 = vmatprep.subr.mxu0 0.0
    %2442 = vmatpush2.msra.mxu0 0.0
    %2443 = vmatprep.subr.mxu0 0.0
    %2444 = vmatpush2.msra.mxu0 0.0
    %2445 = vmatprep.subr.mxu0 0.0
    %2446 = vmatpush2.msra.mxu0 0.0
    %2447 = vmatprep.subr.mxu0 0.0
    %2448 = vmatpush2.msra.mxu0 0.0
    %2449 = vmatprep.subr.mxu0 0.0
    %2450 = vmatpush2.msra.mxu0 0.0
    %2451 = vmatprep.subr.mxu0 0.0
    %2452 = vmatpush2.msra.mxu0 0.0
    %2453 = vmatprep.subr.mxu0 0.0
    %2454 = vmatpush2.msra.mxu0 0.0
    %2455 = vmatprep.subr.mxu0 0.0
    %2456 = vmatpush2.msra.mxu0 0.0
    %2457 = vmatprep.subr.mxu0 0.0
    %2458 = vmatpush2.msra.mxu0 0.0
    %2459 = vmatprep.subr.mxu0 0.0
    %2460 = vmatpush2.msra.mxu0 0.0
    %2461 = vmatprep.subr.mxu0 0.0
    %2462 = vmatpush2.msra.mxu0 0.0
    %2463 = vmatprep.subr.mxu0 0.0
    %2464 = vmatpush2.msra.mxu0 0.0
    %2465 = vmatprep.subr.mxu0 0.0
    %2466 = vmatpush2.msra.mxu0 0.0
    %2467 = vmatprep.subr.mxu0 0.0
    %2468 = vmatpush2.msra.mxu0 0.0
    %2469 = vmatprep.subr.mxu0 0.0
    %2470 = vmatpush2.msra.mxu0 0.0
    %2471 = vmatprep.mubr.f32.mxu0 0.0
    %2472 = vmatmul.mubr.f32.gmra.mxu0 %v2405
    %v2473 = vpop.f32.mrf.mxu0
    %v2474 = vadd.f32 %v1693, %v2473
    %v2475 = vpop.f32.mrf.mxu0
    %2476 = vdwg.mxu0
    %s2477 = scalar_lea.vmem [#allocation5], 24
    %2478 = vst [vmem:[%s2477] sm:$0xff] %v2474
    %s2479 = sld [smem:[#allocation2 + $0x3]]
    %p2480 = scmp.eq.s32.totalorder %s2479, 1
    // Predicated region
    $region62: #{seq2seq_forward.1} parent=1 // pred_check
      %p2481 = pneg %p2480
    $region63: #{seq2seq_forward.1} parent=1 // pred_check_branch
      %2483 = sbr.rel (%p2481) target = $region65
    $region64: #{seq2seq_forward.1} parent=1 // pred_region
      %s2484 = scalar_lea.vmem %s3, 24
      %v2485 = vld [vmem:[%s2484] sm:$0xff]
    $region65: #{seq2seq_forward.1} parent=1 // pred_fallthru
      %v2486 = vphi 0, %v2485
    %p2487 = pneg %p2480
    // Predicated region
    $region66: #{seq2seq_forward.1} parent=1 // pred_check
      _
    $region67: #{seq2seq_forward.1} parent=1 // pred_check_branch
      %2489 = sbr.rel (%p2480) target = $region69
    $region68: #{seq2seq_forward.1} parent=1 // pred_region
      %2490 = vmax.xlane.f32.xlu0 %v2474
      %v2491 = vpop.xlane.xlu0 %2490
      %vm2492 = vcmp.eq.f32.partialorder %v2474, %v2491
      %v2493 = vsel %vm2492, %v1687, 128
      %v2494 = vand.u32 %v2493, 65535
      %v2495 = vshra.s32 %v2493, 16
      %v2496 = vcvt.s32.f32 %v2494
      %v2497 = vcvt.s32.f32 %v2495
      %2498 = vmin.xlane.f32.xlu0 %v2497
      %v2499 = vpop.xlane.xlu0 %2498
      %vm2500 = vcmp.eq.f32.partialorder %v2497, %v2499
      %v2501 = vsel %vm2500, %v2496, inf
      %2502 = vmin.xlane.f32.xlu0 %v2501
      %v2503 = vpop.xlane.xlu0 %2502
      %v2504 = vcvt.f32.s32 %v2503
      %v2505 = vcvt.f32.s32 %v2499
      %v2506 = vshll.u32 %v2505, 16
      %v2507 = vadd.s32 %v2506, %v2504
      %vm2508 = vcmp.eq.s32.totalorder %v1687, %v2507
      %v2509 = vsel %vm2508, 1, 0
      %v2510 = vcvt.s32.f32 %v2509
      %v2511 = vld [vmem:[%s4] sm:$0xff]
      %v2512 = vld [vmem:[%s4 + $0x8] sm:$0xff]
      %v2513 = vld [vmem:[%s4 + $0x10] sm:$0xff]
      %v2514 = vld [vmem:[%s4 + $0x18] sm:$0xff]
      %v2515 = vld [vmem:[%s4 + $0x20] sm:$0xff]
      %v2516 = vld [vmem:[%s4 + $0x28] sm:$0xff]
      %v2517 = vld [vmem:[%s4 + $0x30] sm:$0xff]
      %v2518 = vld [vmem:[%s4 + $0x38] sm:$0xff]
      %v2519 = vld [vmem:[%s4 + $0x40] sm:$0xff]
      %v2520 = vld [vmem:[%s4 + $0x48] sm:$0xff]
      %v2521 = vld [vmem:[%s4 + $0x50] sm:$0xff]
      %v2522 = vld [vmem:[%s4 + $0x58] sm:$0xff]
      %v2523 = vld [vmem:[%s4 + $0x60] sm:$0xff]
      %v2524 = vld [vmem:[%s4 + $0x68] sm:$0xff]
      %v2525 = vld [vmem:[%s4 + $0x70] sm:$0xff]
      %v2526 = vld [vmem:[%s4 + $0x78] sm:$0xff]
      %2527 = vmatprep.subr.mxu0 0.0
      %2528 = vmatpush1.msra.mxu0 %v2526
      %2529 = vmatprep.subr.mxu0 0.0
      %2530 = vmatpush1.msra.mxu0 %v2525
      %2531 = vmatprep.subr.mxu0 0.0
      %2532 = vmatpush1.msra.mxu0 %v2524
      %2533 = vmatprep.subr.mxu0 0.0
      %2534 = vmatpush1.msra.mxu0 %v2523
      %2535 = vmatprep.subr.mxu0 0.0
      %2536 = vmatpush1.msra.mxu0 %v2522
      %2537 = vmatprep.subr.mxu0 0.0
      %2538 = vmatpush1.msra.mxu0 %v2521
      %2539 = vmatprep.subr.mxu0 0.0
      %2540 = vmatpush1.msra.mxu0 %v2520
      %2541 = vmatprep.subr.mxu0 0.0
      %2542 = vmatpush1.msra.mxu0 %v2519
      %2543 = vmatprep.subr.mxu0 0.0
      %2544 = vmatpush1.msra.mxu0 %v2518
      %2545 = vmatprep.subr.mxu0 0.0
      %2546 = vmatpush1.msra.mxu0 %v2517
      %2547 = vmatprep.subr.mxu0 0.0
      %2548 = vmatpush1.msra.mxu0 %v2516
      %2549 = vmatprep.subr.mxu0 0.0
      %2550 = vmatpush1.msra.mxu0 %v2515
      %2551 = vmatprep.subr.mxu0 0.0
      %2552 = vmatpush1.msra.mxu0 %v2514
      %2553 = vmatprep.subr.mxu0 0.0
      %2554 = vmatpush1.msra.mxu0 %v2513
      %2555 = vmatprep.subr.mxu0 0.0
      %2556 = vmatpush1.msra.mxu0 %v2512
      %2557 = vmatprep.subr.mxu0 0.0
      %2558 = vmatpush1.msra.mxu0 %v2511
      %2559 = vmatprep.subr.mxu0 0.0
      %2560 = vmatpush2.msra.mxu0 0.0
      %2561 = vmatprep.subr.mxu0 0.0
      %2562 = vmatpush2.msra.mxu0 0.0
      %2563 = vmatprep.subr.mxu0 0.0
      %2564 = vmatpush2.msra.mxu0 0.0
      %2565 = vmatprep.subr.mxu0 0.0
      %2566 = vmatpush2.msra.mxu0 0.0
      %2567 = vmatprep.subr.mxu0 0.0
      %2568 = vmatpush2.msra.mxu0 0.0
      %2569 = vmatprep.subr.mxu0 0.0
      %2570 = vmatpush2.msra.mxu0 0.0
      %2571 = vmatprep.subr.mxu0 0.0
      %2572 = vmatpush2.msra.mxu0 0.0
      %2573 = vmatprep.subr.mxu0 0.0
      %2574 = vmatpush2.msra.mxu0 0.0
      %2575 = vmatprep.subr.mxu0 0.0
      %2576 = vmatpush2.msra.mxu0 0.0
      %2577 = vmatprep.subr.mxu0 0.0
      %2578 = vmatpush2.msra.mxu0 0.0
      %2579 = vmatprep.subr.mxu0 0.0
      %2580 = vmatpush2.msra.mxu0 0.0
      %2581 = vmatprep.subr.mxu0 0.0
      %2582 = vmatpush2.msra.mxu0 0.0
      %2583 = vmatprep.subr.mxu0 0.0
      %2584 = vmatpush2.msra.mxu0 0.0
      %2585 = vmatprep.subr.mxu0 0.0
      %2586 = vmatpush2.msra.mxu0 0.0
      %2587 = vmatprep.subr.mxu0 0.0
      %2588 = vmatpush2.msra.mxu0 0.0
      %2589 = vmatprep.subr.mxu0 0.0
      %2590 = vmatpush2.msra.mxu0 0.0
      %2591 = vmatprep.mubr.f32.mxu0 0.0
      %2592 = vmatmul.mubr.f32.gmra.mxu0 %v2510
      %v2593 = vpop.f32.mrf.mxu0
      %v2594 = vadd.f32 0.0, %v2593
      %v2595 = vpop.f32.mrf.mxu0
      %2596 = vdwg.mxu0
    $region69: #{seq2seq_forward.1} parent=1 // pred_fallthru
      %v2597 = vphi %v2486, %v2594
    %v2598 = vld [vmem:[%s7] sm:$0xff]
    %v2599 = vld [vmem:[%s7 + $0x8] sm:$0xff]
    %v2600 = vld [vmem:[%s7 + $0x10] sm:$0xff]
    %v2601 = vld [vmem:[%s7 + $0x18] sm:$0xff]
    %2602 = vmatprep.subr.mxu0 0.0
    %2603 = vmatpush1.msra.mxu0 0.0
    %2604 = vmatprep.subr.mxu0 0.0
    %2605 = vmatpush1.msra.mxu0 0.0
    %2606 = vmatprep.subr.mxu0 0.0
    %2607 = vmatpush1.msra.mxu0 0.0
    %2608 = vmatprep.subr.mxu0 0.0
    %2609 = vmatpush1.msra.mxu0 0.0
    %2610 = vmatprep.subr.mxu0 0.0
    %2611 = vmatpush1.msra.mxu0 0.0
    %2612 = vmatprep.subr.mxu0 0.0
    %2613 = vmatpush1.msra.mxu0 0.0
    %2614 = vmatprep.subr.mxu0 0.0
    %2615 = vmatpush1.msra.mxu0 0.0
    %2616 = vmatprep.subr.mxu0 0.0
    %2617 = vmatpush1.msra.mxu0 0.0
    %2618 = vmatprep.subr.mxu0 0.0
    %2619 = vmatpush1.msra.mxu0 0.0
    %2620 = vmatprep.subr.mxu0 0.0
    %2621 = vmatpush1.msra.mxu0 0.0
    %2622 = vmatprep.subr.mxu0 0.0
    %2623 = vmatpush1.msra.mxu0 0.0
    %2624 = vmatprep.subr.mxu0 0.0
    %2625 = vmatpush1.msra.mxu0 0.0
    %2626 = vmatprep.subr.mxu0 0.0
    %2627 = vmatpush1.msra.mxu0 %v2601
    %2628 = vmatprep.subr.mxu0 0.0
    %2629 = vmatpush1.msra.mxu0 %v2600
    %2630 = vmatprep.subr.mxu0 0.0
    %2631 = vmatpush1.msra.mxu0 %v2599
    %2632 = vmatprep.subr.mxu0 0.0
    %2633 = vmatpush1.msra.mxu0 %v2598
    %2634 = vmatprep.subr.mxu0 0.0
    %2635 = vmatpush2.msra.mxu0 0.0
    %2636 = vmatprep.subr.mxu0 0.0
    %2637 = vmatpush2.msra.mxu0 0.0
    %2638 = vmatprep.subr.mxu0 0.0
    %2639 = vmatpush2.msra.mxu0 0.0
    %2640 = vmatprep.subr.mxu0 0.0
    %2641 = vmatpush2.msra.mxu0 0.0
    %2642 = vmatprep.subr.mxu0 0.0
    %2643 = vmatpush2.msra.mxu0 0.0
    %2644 = vmatprep.subr.mxu0 0.0
    %2645 = vmatpush2.msra.mxu0 0.0
    %2646 = vmatprep.subr.mxu0 0.0
    %2647 = vmatpush2.msra.mxu0 0.0
    %2648 = vmatprep.subr.mxu0 0.0
    %2649 = vmatpush2.msra.mxu0 0.0
    %2650 = vmatprep.subr.mxu0 0.0
    %2651 = vmatpush2.msra.mxu0 0.0
    %2652 = vmatprep.subr.mxu0 0.0
    %2653 = vmatpush2.msra.mxu0 0.0
    %2654 = vmatprep.subr.mxu0 0.0
    %2655 = vmatpush2.msra.mxu0 0.0
    %2656 = vmatprep.subr.mxu0 0.0
    %2657 = vmatpush2.msra.mxu0 0.0
    %2658 = vmatprep.subr.mxu0 0.0
    %2659 = vmatpush2.msra.mxu0 0.0
    %2660 = vmatprep.subr.mxu0 0.0
    %2661 = vmatpush2.msra.mxu0 0.0
    %2662 = vmatprep.subr.mxu0 0.0
    %2663 = vmatpush2.msra.mxu0 0.0
    %2664 = vmatprep.subr.mxu0 0.0
    %2665 = vmatpush2.msra.mxu0 0.0
    %2666 = vmatprep.mubr.f32.mxu0 0.0
    %2667 = vmatmul.mubr.f32.gmra.mxu0 %v2405
    %v2668 = vpop.f32.mrf.mxu0
    %v2669 = vadd.f32 0.0, %v2668
    %v2670 = vpop.f32.mrf.mxu0
    %2671 = vdwg.mxu0
    %v2672 = vadd.f32 %v2597, %v2669
    %v2673 = vxor.u32 %v2672, 2147483648
    %v2674 = vmul.f32 %v2673, 1.442695
    %v2675 = vpow.pop %v2674
    %v2676 = vadd.f32 %v2675, 1.0
    %v2677 = vrcp.pop %v2676
    %v2678 = vmul.f32 1.0, %v2677
    %v2679 = vtanh.pop %v2672
    %v2680 = vmul.f32 %v2678, %v2391
    %2682 = vrot.lane.b32.xlu0 %v2679, 64
    %v2683 = vpop.permute.xlu0 %2682
    %v2685 = vmul.f32 %v2678, %v2683
    %2687 = vrot.lane.b32.xlu0 %v2685, 32
    %v2688 = vpop.permute.xlu0 %2687
    %v2690 = vadd.f32 %v2680, %v2688
    %v2691 = vtanh.pop %v2690
    %2693 = vrot.lane.b32.xlu0 %v2691, 64
    %v2694 = vpop.permute.xlu0 %2693
    %v2696 = vmul.f32 %v2678, %v2694
    %v2697 = vld [vmem:[%s8] sm:$0xff]
    %v2698 = vld [vmem:[%s8 + $0x8] sm:$0xff]
    %v2699 = vld [vmem:[%s8 + $0x10] sm:$0xff]
    %v2700 = vld [vmem:[%s8 + $0x18] sm:$0xff]
    %2702 = vrot.lane.b32.xlu0 %v2696, 32
    %v2703 = vpop.permute.xlu0 %2702
    %v2704 = vsel %vm54, %v2703, 0
    %2706 = vmatprep.subr.mxu0 0.0
    %2707 = vmatpush1.msra.mxu0 0.0
    %2708 = vmatprep.subr.mxu0 0.0
    %2709 = vmatpush1.msra.mxu0 0.0
    %2710 = vmatprep.subr.mxu0 0.0
    %2711 = vmatpush1.msra.mxu0 0.0
    %2712 = vmatprep.subr.mxu0 0.0
    %2713 = vmatpush1.msra.mxu0 0.0
    %2714 = vmatprep.subr.mxu0 0.0
    %2715 = vmatpush1.msra.mxu0 0.0
    %2716 = vmatprep.subr.mxu0 0.0
    %2717 = vmatpush1.msra.mxu0 0.0
    %2718 = vmatprep.subr.mxu0 0.0
    %2719 = vmatpush1.msra.mxu0 0.0
    %2720 = vmatprep.subr.mxu0 0.0
    %2721 = vmatpush1.msra.mxu0 0.0
    %2722 = vmatprep.subr.mxu0 0.0
    %2723 = vmatpush1.msra.mxu0 0.0
    %2724 = vmatprep.subr.mxu0 0.0
    %2725 = vmatpush1.msra.mxu0 0.0
    %2726 = vmatprep.subr.mxu0 0.0
    %2727 = vmatpush1.msra.mxu0 0.0
    %2728 = vmatprep.subr.mxu0 0.0
    %2729 = vmatpush1.msra.mxu0 0.0
    %2730 = vmatprep.subr.mxu0 0.0
    %2731 = vmatpush1.msra.mxu0 %v2700
    %2732 = vmatprep.subr.mxu0 0.0
    %2733 = vmatpush1.msra.mxu0 %v2699
    %2734 = vmatprep.subr.mxu0 0.0
    %2735 = vmatpush1.msra.mxu0 %v2698
    %2736 = vmatprep.subr.mxu0 0.0
    %2737 = vmatpush1.msra.mxu0 %v2697
    %2738 = vmatprep.subr.mxu0 0.0
    %2739 = vmatpush2.msra.mxu0 0.0
    %2740 = vmatprep.subr.mxu0 0.0
    %2741 = vmatpush2.msra.mxu0 0.0
    %2742 = vmatprep.subr.mxu0 0.0
    %2743 = vmatpush2.msra.mxu0 0.0
    %2744 = vmatprep.subr.mxu0 0.0
    %2745 = vmatpush2.msra.mxu0 0.0
    %2746 = vmatprep.subr.mxu0 0.0
    %2747 = vmatpush2.msra.mxu0 0.0
    %2748 = vmatprep.subr.mxu0 0.0
    %2749 = vmatpush2.msra.mxu0 0.0
    %2750 = vmatprep.subr.mxu0 0.0
    %2751 = vmatpush2.msra.mxu0 0.0
    %2752 = vmatprep.subr.mxu0 0.0
    %2753 = vmatpush2.msra.mxu0 0.0
    %2754 = vmatprep.subr.mxu0 0.0
    %2755 = vmatpush2.msra.mxu0 0.0
    %2756 = vmatprep.subr.mxu0 0.0
    %2757 = vmatpush2.msra.mxu0 0.0
    %2758 = vmatprep.subr.mxu0 0.0
    %2759 = vmatpush2.msra.mxu0 0.0
    %2760 = vmatprep.subr.mxu0 0.0
    %2761 = vmatpush2.msra.mxu0 0.0
    %2762 = vmatprep.subr.mxu0 0.0
    %2763 = vmatpush2.msra.mxu0 0.0
    %2764 = vmatprep.subr.mxu0 0.0
    %2765 = vmatpush2.msra.mxu0 0.0
    %2766 = vmatprep.subr.mxu0 0.0
    %2767 = vmatpush2.msra.mxu0 0.0
    %2768 = vmatprep.subr.mxu0 0.0
    %2769 = vmatpush2.msra.mxu0 0.0
    %2770 = vmatprep.mubr.f32.mxu0 0.0
    %2771 = vmatmul.mubr.f32.gmra.mxu0 %v2704
    %v2772 = vpop.f32.mrf.mxu0
    %v2773 = vadd.f32 %v1693, %v2772
    %v2774 = vpop.f32.mrf.mxu0
    %2775 = vdwg.mxu0
    %s2776 = scalar_lea.vmem [#allocation5], 32
    %2777 = vst [vmem:[%s2776] sm:$0xff] %v2773
    %s2778 = sld [smem:[#allocation2 + $0x4]]
    %p2779 = scmp.eq.s32.totalorder %s2778, 1
    // Predicated region
    $region70: #{seq2seq_forward.1} parent=1 // pred_check
      %p2780 = pneg %p2779
    $region71: #{seq2seq_forward.1} parent=1 // pred_check_branch
      %2782 = sbr.rel (%p2780) target = $region73
    $region72: #{seq2seq_forward.1} parent=1 // pred_region
      %s2783 = scalar_lea.vmem %s3, 32
      %v2784 = vld [vmem:[%s2783] sm:$0xff]
    $region73: #{seq2seq_forward.1} parent=1 // pred_fallthru
      %v2785 = vphi 0, %v2784
    %p2786 = pneg %p2779
    // Predicated region
    $region74: #{seq2seq_forward.1} parent=1 // pred_check
      _
    $region75: #{seq2seq_forward.1} parent=1 // pred_check_branch
      %2788 = sbr.rel (%p2779) target = $region77
    $region76: #{seq2seq_forward.1} parent=1 // pred_region
      %2789 = vmax.xlane.f32.xlu0 %v2773
      %v2790 = vpop.xlane.xlu0 %2789
      %vm2791 = vcmp.eq.f32.partialorder %v2773, %v2790
      %v2792 = vsel %vm2791, %v1687, 128
      %v2793 = vand.u32 %v2792, 65535
      %v2794 = vshra.s32 %v2792, 16
      %v2795 = vcvt.s32.f32 %v2793
      %v2796 = vcvt.s32.f32 %v2794
      %2797 = vmin.xlane.f32.xlu0 %v2796
      %v2798 = vpop.xlane.xlu0 %2797
      %vm2799 = vcmp.eq.f32.partialorder %v2796, %v2798
      %v2800 = vsel %vm2799, %v2795, inf
      %2801 = vmin.xlane.f32.xlu0 %v2800
      %v2802 = vpop.xlane.xlu0 %2801
      %v2803 = vcvt.f32.s32 %v2802
      %v2804 = vcvt.f32.s32 %v2798
      %v2805 = vshll.u32 %v2804, 16
      %v2806 = vadd.s32 %v2805, %v2803
      %vm2807 = vcmp.eq.s32.totalorder %v1687, %v2806
      %v2808 = vsel %vm2807, 1, 0
      %v2809 = vcvt.s32.f32 %v2808
      %v2810 = vld [vmem:[%s4] sm:$0xff]
      %v2811 = vld [vmem:[%s4 + $0x8] sm:$0xff]
      %v2812 = vld [vmem:[%s4 + $0x10] sm:$0xff]
      %v2813 = vld [vmem:[%s4 + $0x18] sm:$0xff]
      %v2814 = vld [vmem:[%s4 + $0x20] sm:$0xff]
      %v2815 = vld [vmem:[%s4 + $0x28] sm:$0xff]
      %v2816 = vld [vmem:[%s4 + $0x30] sm:$0xff]
      %v2817 = vld [vmem:[%s4 + $0x38] sm:$0xff]
      %v2818 = vld [vmem:[%s4 + $0x40] sm:$0xff]
      %v2819 = vld [vmem:[%s4 + $0x48] sm:$0xff]
      %v2820 = vld [vmem:[%s4 + $0x50] sm:$0xff]
      %v2821 = vld [vmem:[%s4 + $0x58] sm:$0xff]
      %v2822 = vld [vmem:[%s4 + $0x60] sm:$0xff]
      %v2823 = vld [vmem:[%s4 + $0x68] sm:$0xff]
      %v2824 = vld [vmem:[%s4 + $0x70] sm:$0xff]
      %v2825 = vld [vmem:[%s4 + $0x78] sm:$0xff]
      %2826 = vmatprep.subr.mxu0 0.0
      %2827 = vmatpush1.msra.mxu0 %v2825
      %2828 = vmatprep.subr.mxu0 0.0
      %2829 = vmatpush1.msra.mxu0 %v2824
      %2830 = vmatprep.subr.mxu0 0.0
      %2831 = vmatpush1.msra.mxu0 %v2823
      %2832 = vmatprep.subr.mxu0 0.0
      %2833 = vmatpush1.msra.mxu0 %v2822
      %2834 = vmatprep.subr.mxu0 0.0
      %2835 = vmatpush1.msra.mxu0 %v2821
      %2836 = vmatprep.subr.mxu0 0.0
      %2837 = vmatpush1.msra.mxu0 %v2820
      %2838 = vmatprep.subr.mxu0 0.0
      %2839 = vmatpush1.msra.mxu0 %v2819
      %2840 = vmatprep.subr.mxu0 0.0
      %2841 = vmatpush1.msra.mxu0 %v2818
      %2842 = vmatprep.subr.mxu0 0.0
      %2843 = vmatpush1.msra.mxu0 %v2817
      %2844 = vmatprep.subr.mxu0 0.0
      %2845 = vmatpush1.msra.mxu0 %v2816
      %2846 = vmatprep.subr.mxu0 0.0
      %2847 = vmatpush1.msra.mxu0 %v2815
      %2848 = vmatprep.subr.mxu0 0.0
      %2849 = vmatpush1.msra.mxu0 %v2814
      %2850 = vmatprep.subr.mxu0 0.0
      %2851 = vmatpush1.msra.mxu0 %v2813
      %2852 = vmatprep.subr.mxu0 0.0
      %2853 = vmatpush1.msra.mxu0 %v2812
      %2854 = vmatprep.subr.mxu0 0.0
      %2855 = vmatpush1.msra.mxu0 %v2811
      %2856 = vmatprep.subr.mxu0 0.0
      %2857 = vmatpush1.msra.mxu0 %v2810
      %2858 = vmatprep.subr.mxu0 0.0
      %2859 = vmatpush2.msra.mxu0 0.0
      %2860 = vmatprep.subr.mxu0 0.0
      %2861 = vmatpush2.msra.mxu0 0.0
      %2862 = vmatprep.subr.mxu0 0.0
      %2863 = vmatpush2.msra.mxu0 0.0
      %2864 = vmatprep.subr.mxu0 0.0
      %2865 = vmatpush2.msra.mxu0 0.0
      %2866 = vmatprep.subr.mxu0 0.0
      %2867 = vmatpush2.msra.mxu0 0.0
      %2868 = vmatprep.subr.mxu0 0.0
      %2869 = vmatpush2.msra.mxu0 0.0
      %2870 = vmatprep.subr.mxu0 0.0
      %2871 = vmatpush2.msra.mxu0 0.0
      %2872 = vmatprep.subr.mxu0 0.0
      %2873 = vmatpush2.msra.mxu0 0.0
      %2874 = vmatprep.subr.mxu0 0.0
      %2875 = vmatpush2.msra.mxu0 0.0
      %2876 = vmatprep.subr.mxu0 0.0
      %2877 = vmatpush2.msra.mxu0 0.0
      %2878 = vmatprep.subr.mxu0 0.0
      %2879 = vmatpush2.msra.mxu0 0.0
      %2880 = vmatprep.subr.mxu0 0.0
      %2881 = vmatpush2.msra.mxu0 0.0
      %2882 = vmatprep.subr.mxu0 0.0
      %2883 = vmatpush2.msra.mxu0 0.0
      %2884 = vmatprep.subr.mxu0 0.0
      %2885 = vmatpush2.msra.mxu0 0.0
      %2886 = vmatprep.subr.mxu0 0.0
      %2887 = vmatpush2.msra.mxu0 0.0
      %2888 = vmatprep.subr.mxu0 0.0
      %2889 = vmatpush2.msra.mxu0 0.0
      %2890 = vmatprep.mubr.f32.mxu0 0.0
      %2891 = vmatmul.mubr.f32.gmra.mxu0 %v2809
      %v2892 = vpop.f32.mrf.mxu0
      %v2893 = vadd.f32 0.0, %v2892
      %v2894 = vpop.f32.mrf.mxu0
      %2895 = vdwg.mxu0
    $region77: #{seq2seq_forward.1} parent=1 // pred_fallthru
      %v2896 = vphi %v2785, %v2893
    %v2897 = vld [vmem:[%s7] sm:$0xff]
    %v2898 = vld [vmem:[%s7 + $0x8] sm:$0xff]
    %v2899 = vld [vmem:[%s7 + $0x10] sm:$0xff]
    %v2900 = vld [vmem:[%s7 + $0x18] sm:$0xff]
    %2901 = vmatprep.subr.mxu0 0.0
    %2902 = vmatpush1.msra.mxu0 0.0
    %2903 = vmatprep.subr.mxu0 0.0
    %2904 = vmatpush1.msra.mxu0 0.0
    %2905 = vmatprep.subr.mxu0 0.0
    %2906 = vmatpush1.msra.mxu0 0.0
    %2907 = vmatprep.subr.mxu0 0.0
    %2908 = vmatpush1.msra.mxu0 0.0
    %2909 = vmatprep.subr.mxu0 0.0
    %2910 = vmatpush1.msra.mxu0 0.0
    %2911 = vmatprep.subr.mxu0 0.0
    %2912 = vmatpush1.msra.mxu0 0.0
    %2913 = vmatprep.subr.mxu0 0.0
    %2914 = vmatpush1.msra.mxu0 0.0
    %2915 = vmatprep.subr.mxu0 0.0
    %2916 = vmatpush1.msra.mxu0 0.0
    %2917 = vmatprep.subr.mxu0 0.0
    %2918 = vmatpush1.msra.mxu0 0.0
    %2919 = vmatprep.subr.mxu0 0.0
    %2920 = vmatpush1.msra.mxu0 0.0
    %2921 = vmatprep.subr.mxu0 0.0
    %2922 = vmatpush1.msra.mxu0 0.0
    %2923 = vmatprep.subr.mxu0 0.0
    %2924 = vmatpush1.msra.mxu0 0.0
    %2925 = vmatprep.subr.mxu0 0.0
    %2926 = vmatpush1.msra.mxu0 %v2900
    %2927 = vmatprep.subr.mxu0 0.0
    %2928 = vmatpush1.msra.mxu0 %v2899
    %2929 = vmatprep.subr.mxu0 0.0
    %2930 = vmatpush1.msra.mxu0 %v2898
    %2931 = vmatprep.subr.mxu0 0.0
    %2932 = vmatpush1.msra.mxu0 %v2897
    %2933 = vmatprep.subr.mxu0 0.0
    %2934 = vmatpush2.msra.mxu0 0.0
    %2935 = vmatprep.subr.mxu0 0.0
    %2936 = vmatpush2.msra.mxu0 0.0
    %2937 = vmatprep.subr.mxu0 0.0
    %2938 = vmatpush2.msra.mxu0 0.0
    %2939 = vmatprep.subr.mxu0 0.0
    %2940 = vmatpush2.msra.mxu0 0.0
    %2941 = vmatprep.subr.mxu0 0.0
    %2942 = vmatpush2.msra.mxu0 0.0
    %2943 = vmatprep.subr.mxu0 0.0
    %2944 = vmatpush2.msra.mxu0 0.0
    %2945 = vmatprep.subr.mxu0 0.0
    %2946 = vmatpush2.msra.mxu0 0.0
    %2947 = vmatprep.subr.mxu0 0.0
    %2948 = vmatpush2.msra.mxu0 0.0
    %2949 = vmatprep.subr.mxu0 0.0
    %2950 = vmatpush2.msra.mxu0 0.0
    %2951 = vmatprep.subr.mxu0 0.0
    %2952 = vmatpush2.msra.mxu0 0.0
    %2953 = vmatprep.subr.mxu0 0.0
    %2954 = vmatpush2.msra.mxu0 0.0
    %2955 = vmatprep.subr.mxu0 0.0
    %2956 = vmatpush2.msra.mxu0 0.0
    %2957 = vmatprep.subr.mxu0 0.0
    %2958 = vmatpush2.msra.mxu0 0.0
    %2959 = vmatprep.subr.mxu0 0.0
    %2960 = vmatpush2.msra.mxu0 0.0
    %2961 = vmatprep.subr.mxu0 0.0
    %2962 = vmatpush2.msra.mxu0 0.0
    %2963 = vmatprep.subr.mxu0 0.0
    %2964 = vmatpush2.msra.mxu0 0.0
    %2965 = vmatprep.mubr.f32.mxu0 0.0
    %2966 = vmatmul.mubr.f32.gmra.mxu0 %v2704
    %v2967 = vpop.f32.mrf.mxu0
    %v2968 = vadd.f32 0.0, %v2967
    %v2969 = vpop.f32.mrf.mxu0
    %2970 = vdwg.mxu0
    %v2971 = vadd.f32 %v2896, %v2968
    %v2972 = vxor.u32 %v2971, 2147483648
    %v2973 = vmul.f32 %v2972, 1.442695
    %v2974 = vpow.pop %v2973
    %v2975 = vadd.f32 %v2974, 1.0
    %v2976 = vrcp.pop %v2975
    %v2977 = vmul.f32 1.0, %v2976
    %v2978 = vtanh.pop %v2971
    %v2979 = vmul.f32 %v2977, %v2690
    %2981 = vrot.lane.b32.xlu0 %v2978, 64
    %v2982 = vpop.permute.xlu0 %2981
    %v2984 = vmul.f32 %v2977, %v2982
    %2986 = vrot.lane.b32.xlu0 %v2984, 32
    %v2987 = vpop.permute.xlu0 %2986
    %v2989 = vadd.f32 %v2979, %v2987
    %v2990 = vtanh.pop %v2989
    %2992 = vrot.lane.b32.xlu0 %v2990, 64
    %v2993 = vpop.permute.xlu0 %2992
    %v2995 = vmul.f32 %v2977, %v2993
    %v2996 = vld [vmem:[%s8] sm:$0xff]
    %v2997 = vld [vmem:[%s8 + $0x8] sm:$0xff]
    %v2998 = vld [vmem:[%s8 + $0x10] sm:$0xff]
    %v2999 = vld [vmem:[%s8 + $0x18] sm:$0xff]
    %3001 = vrot.lane.b32.xlu0 %v2995, 32
    %v3002 = vpop.permute.xlu0 %3001
    %v3003 = vsel %vm54, %v3002, 0
    %3005 = vmatprep.subr.mxu0 0.0
    %3006 = vmatpush1.msra.mxu0 0.0
    %3007 = vmatprep.subr.mxu0 0.0
    %3008 = vmatpush1.msra.mxu0 0.0
    %3009 = vmatprep.subr.mxu0 0.0
    %3010 = vmatpush1.msra.mxu0 0.0
    %3011 = vmatprep.subr.mxu0 0.0
    %3012 = vmatpush1.msra.mxu0 0.0
    %3013 = vmatprep.subr.mxu0 0.0
    %3014 = vmatpush1.msra.mxu0 0.0
    %3015 = vmatprep.subr.mxu0 0.0
    %3016 = vmatpush1.msra.mxu0 0.0
    %3017 = vmatprep.subr.mxu0 0.0
    %3018 = vmatpush1.msra.mxu0 0.0
    %3019 = vmatprep.subr.mxu0 0.0
    %3020 = vmatpush1.msra.mxu0 0.0
    %3021 = vmatprep.subr.mxu0 0.0
    %3022 = vmatpush1.msra.mxu0 0.0
    %3023 = vmatprep.subr.mxu0 0.0
    %3024 = vmatpush1.msra.mxu0 0.0
    %3025 = vmatprep.subr.mxu0 0.0
    %3026 = vmatpush1.msra.mxu0 0.0
    %3027 = vmatprep.subr.mxu0 0.0
    %3028 = vmatpush1.msra.mxu0 0.0
    %3029 = vmatprep.subr.mxu0 0.0
    %3030 = vmatpush1.msra.mxu0 %v2999
    %3031 = vmatprep.subr.mxu0 0.0
    %3032 = vmatpush1.msra.mxu0 %v2998
    %3033 = vmatprep.subr.mxu0 0.0
    %3034 = vmatpush1.msra.mxu0 %v2997
    %3035 = vmatprep.subr.mxu0 0.0
    %3036 = vmatpush1.msra.mxu0 %v2996
    %3037 = vmatprep.subr.mxu0 0.0
    %3038 = vmatpush2.msra.mxu0 0.0
    %3039 = vmatprep.subr.mxu0 0.0
    %3040 = vmatpush2.msra.mxu0 0.0
    %3041 = vmatprep.subr.mxu0 0.0
    %3042 = vmatpush2.msra.mxu0 0.0
    %3043 = vmatprep.subr.mxu0 0.0
    %3044 = vmatpush2.msra.mxu0 0.0
    %3045 = vmatprep.subr.mxu0 0.0
    %3046 = vmatpush2.msra.mxu0 0.0
    %3047 = vmatprep.subr.mxu0 0.0
    %3048 = vmatpush2.msra.mxu0 0.0
    %3049 = vmatprep.subr.mxu0 0.0
    %3050 = vmatpush2.msra.mxu0 0.0
    %3051 = vmatprep.subr.mxu0 0.0
    %3052 = vmatpush2.msra.mxu0 0.0
    %3053 = vmatprep.subr.mxu0 0.0
    %3054 = vmatpush2.msra.mxu0 0.0
    %3055 = vmatprep.subr.mxu0 0.0
    %3056 = vmatpush2.msra.mxu0 0.0
    %3057 = vmatprep.subr.mxu0 0.0
    %3058 = vmatpush2.msra.mxu0 0.0
    %3059 = vmatprep.subr.mxu0 0.0
    %3060 = vmatpush2.msra.mxu0 0.0
    %3061 = vmatprep.subr.mxu0 0.0
    %3062 = vmatpush2.msra.mxu0 0.0
    %3063 = vmatprep.subr.mxu0 0.0
    %3064 = vmatpush2.msra.mxu0 0.0
    %3065 = vmatprep.subr.mxu0 0.0
    %3066 = vmatpush2.msra.mxu0 0.0
    %3067 = vmatprep.subr.mxu0 0.0
    %3068 = vmatpush2.msra.mxu0 0.0
    %3069 = vmatprep.mubr.f32.mxu0 0.0
    %3070 = vmatmul.mubr.f32.gmra.mxu0 %v3003
    %v3071 = vpop.f32.mrf.mxu0
    %v3072 = vadd.f32 %v1693, %v3071
    %v3073 = vpop.f32.mrf.mxu0
    %3074 = vdwg.mxu0
    %s3075 = scalar_lea.vmem [#allocation5], 40
    %3076 = vst [vmem:[%s3075] sm:$0xff] %v3072
    %s3077 = sld [smem:[#allocation2 + $0x5]]
    %p3078 = scmp.eq.s32.totalorder %s3077, 1
    // Predicated region
    $region78: #{seq2seq_forward.1} parent=1 // pred_check
      %p3079 = pneg %p3078
    $region79: #{seq2seq_forward.1} parent=1 // pred_check_branch
      %3081 = sbr.rel (%p3079) target = $region81
    $region80: #{seq2seq_forward.1} parent=1 // pred_region
      %s3082 = scalar_lea.vmem %s3, 40
      %v3083 = vld [vmem:[%s3082] sm:$0xff]
    $region81: #{seq2seq_forward.1} parent=1 // pred_fallthru
      %v3084 = vphi 0, %v3083
    %p3085 = pneg %p3078
    // Predicated region
    $region82: #{seq2seq_forward.1} parent=1 // pred_check
      _
    $region83: #{seq2seq_forward.1} parent=1 // pred_check_branch
      %3087 = sbr.rel (%p3078) target = $region85
    $region84: #{seq2seq_forward.1} parent=1 // pred_region
      %3088 = vmax.xlane.f32.xlu0 %v3072
      %v3089 = vpop.xlane.xlu0 %3088
      %vm3090 = vcmp.eq.f32.partialorder %v3072, %v3089
      %v3091 = vsel %vm3090, %v1687, 128
      %v3092 = vand.u32 %v3091, 65535
      %v3093 = vshra.s32 %v3091, 16
      %v3094 = vcvt.s32.f32 %v3092
      %v3095 = vcvt.s32.f32 %v3093
      %3096 = vmin.xlane.f32.xlu0 %v3095
      %v3097 = vpop.xlane.xlu0 %3096
      %vm3098 = vcmp.eq.f32.partialorder %v3095, %v3097
      %v3099 = vsel %vm3098, %v3094, inf
      %3100 = vmin.xlane.f32.xlu0 %v3099
      %v3101 = vpop.xlane.xlu0 %3100
      %v3102 = vcvt.f32.s32 %v3101
      %v3103 = vcvt.f32.s32 %v3097
      %v3104 = vshll.u32 %v3103, 16
      %v3105 = vadd.s32 %v3104, %v3102
      %vm3106 = vcmp.eq.s32.totalorder %v1687, %v3105
      %v3107 = vsel %vm3106, 1, 0
      %v3108 = vcvt.s32.f32 %v3107
      %v3109 = vld [vmem:[%s4] sm:$0xff]
      %v3110 = vld [vmem:[%s4 + $0x8] sm:$0xff]
      %v3111 = vld [vmem:[%s4 + $0x10] sm:$0xff]
      %v3112 = vld [vmem:[%s4 + $0x18] sm:$0xff]
      %v3113 = vld [vmem:[%s4 + $0x20] sm:$0xff]
      %v3114 = vld [vmem:[%s4 + $0x28] sm:$0xff]
      %v3115 = vld [vmem:[%s4 + $0x30] sm:$0xff]
      %v3116 = vld [vmem:[%s4 + $0x38] sm:$0xff]
      %v3117 = vld [vmem:[%s4 + $0x40] sm:$0xff]
      %v3118 = vld [vmem:[%s4 + $0x48] sm:$0xff]
      %v3119 = vld [vmem:[%s4 + $0x50] sm:$0xff]
      %v3120 = vld [vmem:[%s4 + $0x58] sm:$0xff]
      %v3121 = vld [vmem:[%s4 + $0x60] sm:$0xff]
      %v3122 = vld [vmem:[%s4 + $0x68] sm:$0xff]
      %v3123 = vld [vmem:[%s4 + $0x70] sm:$0xff]
      %v3124 = vld [vmem:[%s4 + $0x78] sm:$0xff]
      %3125 = vmatprep.subr.mxu0 0.0
      %3126 = vmatpush1.msra.mxu0 %v3124
      %3127 = vmatprep.subr.mxu0 0.0
      %3128 = vmatpush1.msra.mxu0 %v3123
      %3129 = vmatprep.subr.mxu0 0.0
      %3130 = vmatpush1.msra.mxu0 %v3122
      %3131 = vmatprep.subr.mxu0 0.0
      %3132 = vmatpush1.msra.mxu0 %v3121
      %3133 = vmatprep.subr.mxu0 0.0
      %3134 = vmatpush1.msra.mxu0 %v3120
      %3135 = vmatprep.subr.mxu0 0.0
      %3136 = vmatpush1.msra.mxu0 %v3119
      %3137 = vmatprep.subr.mxu0 0.0
      %3138 = vmatpush1.msra.mxu0 %v3118
      %3139 = vmatprep.subr.mxu0 0.0
      %3140 = vmatpush1.msra.mxu0 %v3117
      %3141 = vmatprep.subr.mxu0 0.0
      %3142 = vmatpush1.msra.mxu0 %v3116
      %3143 = vmatprep.subr.mxu0 0.0
      %3144 = vmatpush1.msra.mxu0 %v3115
      %3145 = vmatprep.subr.mxu0 0.0
      %3146 = vmatpush1.msra.mxu0 %v3114
      %3147 = vmatprep.subr.mxu0 0.0
      %3148 = vmatpush1.msra.mxu0 %v3113
      %3149 = vmatprep.subr.mxu0 0.0
      %3150 = vmatpush1.msra.mxu0 %v3112
      %3151 = vmatprep.subr.mxu0 0.0
      %3152 = vmatpush1.msra.mxu0 %v3111
      %3153 = vmatprep.subr.mxu0 0.0
      %3154 = vmatpush1.msra.mxu0 %v3110
      %3155 = vmatprep.subr.mxu0 0.0
      %3156 = vmatpush1.msra.mxu0 %v3109
      %3157 = vmatprep.subr.mxu0 0.0
      %3158 = vmatpush2.msra.mxu0 0.0
      %3159 = vmatprep.subr.mxu0 0.0
      %3160 = vmatpush2.msra.mxu0 0.0
      %3161 = vmatprep.subr.mxu0 0.0
      %3162 = vmatpush2.msra.mxu0 0.0
      %3163 = vmatprep.subr.mxu0 0.0
      %3164 = vmatpush2.msra.mxu0 0.0
      %3165 = vmatprep.subr.mxu0 0.0
      %3166 = vmatpush2.msra.mxu0 0.0
      %3167 = vmatprep.subr.mxu0 0.0
      %3168 = vmatpush2.msra.mxu0 0.0
      %3169 = vmatprep.subr.mxu0 0.0
      %3170 = vmatpush2.msra.mxu0 0.0
      %3171 = vmatprep.subr.mxu0 0.0
      %3172 = vmatpush2.msra.mxu0 0.0
      %3173 = vmatprep.subr.mxu0 0.0
      %3174 = vmatpush2.msra.mxu0 0.0
      %3175 = vmatprep.subr.mxu0 0.0
      %3176 = vmatpush2.msra.mxu0 0.0
      %3177 = vmatprep.subr.mxu0 0.0
      %3178 = vmatpush2.msra.mxu0 0.0
      %3179 = vmatprep.subr.mxu0 0.0
      %3180 = vmatpush2.msra.mxu0 0.0
      %3181 = vmatprep.subr.mxu0 0.0
      %3182 = vmatpush2.msra.mxu0 0.0
      %3183 = vmatprep.subr.mxu0 0.0
      %3184 = vmatpush2.msra.mxu0 0.0
      %3185 = vmatprep.subr.mxu0 0.0
      %3186 = vmatpush2.msra.mxu0 0.0
      %3187 = vmatprep.subr.mxu0 0.0
      %3188 = vmatpush2.msra.mxu0 0.0
      %3189 = vmatprep.mubr.f32.mxu0 0.0
      %3190 = vmatmul.mubr.f32.gmra.mxu0 %v3108
      %v3191 = vpop.f32.mrf.mxu0
      %v3192 = vadd.f32 0.0, %v3191
      %v3193 = vpop.f32.mrf.mxu0
      %3194 = vdwg.mxu0
    $region85: #{seq2seq_forward.1} parent=1 // pred_fallthru
      %v3195 = vphi %v3084, %v3192
    %v3196 = vld [vmem:[%s7] sm:$0xff]
    %v3197 = vld [vmem:[%s7 + $0x8] sm:$0xff]
    %v3198 = vld [vmem:[%s7 + $0x10] sm:$0xff]
    %v3199 = vld [vmem:[%s7 + $0x18] sm:$0xff]
    %3200 = vmatprep.subr.mxu0 0.0
    %3201 = vmatpush1.msra.mxu0 0.0
    %3202 = vmatprep.subr.mxu0 0.0
    %3203 = vmatpush1.msra.mxu0 0.0
    %3204 = vmatprep.subr.mxu0 0.0
    %3205 = vmatpush1.msra.mxu0 0.0
    %3206 = vmatprep.subr.mxu0 0.0
    %3207 = vmatpush1.msra.mxu0 0.0
    %3208 = vmatprep.subr.mxu0 0.0
    %3209 = vmatpush1.msra.mxu0 0.0
    %3210 = vmatprep.subr.mxu0 0.0
    %3211 = vmatpush1.msra.mxu0 0.0
    %3212 = vmatprep.subr.mxu0 0.0
    %3213 = vmatpush1.msra.mxu0 0.0
    %3214 = vmatprep.subr.mxu0 0.0
    %3215 = vmatpush1.msra.mxu0 0.0
    %3216 = vmatprep.subr.mxu0 0.0
    %3217 = vmatpush1.msra.mxu0 0.0
    %3218 = vmatprep.subr.mxu0 0.0
    %3219 = vmatpush1.msra.mxu0 0.0
    %3220 = vmatprep.subr.mxu0 0.0
    %3221 = vmatpush1.msra.mxu0 0.0
    %3222 = vmatprep.subr.mxu0 0.0
    %3223 = vmatpush1.msra.mxu0 0.0
    %3224 = vmatprep.subr.mxu0 0.0
    %3225 = vmatpush1.msra.mxu0 %v3199
    %3226 = vmatprep.subr.mxu0 0.0
    %3227 = vmatpush1.msra.mxu0 %v3198
    %3228 = vmatprep.subr.mxu0 0.0
    %3229 = vmatpush1.msra.mxu0 %v3197
    %3230 = vmatprep.subr.mxu0 0.0
    %3231 = vmatpush1.msra.mxu0 %v3196
    %3232 = vmatprep.subr.mxu0 0.0
    %3233 = vmatpush2.msra.mxu0 0.0
    %3234 = vmatprep.subr.mxu0 0.0
    %3235 = vmatpush2.msra.mxu0 0.0
    %3236 = vmatprep.subr.mxu0 0.0
    %3237 = vmatpush2.msra.mxu0 0.0
    %3238 = vmatprep.subr.mxu0 0.0
    %3239 = vmatpush2.msra.mxu0 0.0
    %3240 = vmatprep.subr.mxu0 0.0
    %3241 = vmatpush2.msra.mxu0 0.0
    %3242 = vmatprep.subr.mxu0 0.0
    %3243 = vmatpush2.msra.mxu0 0.0
    %3244 = vmatprep.subr.mxu0 0.0
    %3245 = vmatpush2.msra.mxu0 0.0
    %3246 = vmatprep.subr.mxu0 0.0
    %3247 = vmatpush2.msra.mxu0 0.0
    %3248 = vmatprep.subr.mxu0 0.0
    %3249 = vmatpush2.msra.mxu0 0.0
    %3250 = vmatprep.subr.mxu0 0.0
    %3251 = vmatpush2.msra.mxu0 0.0
    %3252 = vmatprep.subr.mxu0 0.0
    %3253 = vmatpush2.msra.mxu0 0.0
    %3254 = vmatprep.subr.mxu0 0.0
    %3255 = vmatpush2.msra.mxu0 0.0
    %3256 = vmatprep.subr.mxu0 0.0
    %3257 = vmatpush2.msra.mxu0 0.0
    %3258 = vmatprep.subr.mxu0 0.0
    %3259 = vmatpush2.msra.mxu0 0.0
    %3260 = vmatprep.subr.mxu0 0.0
    %3261 = vmatpush2.msra.mxu0 0.0
    %3262 = vmatprep.subr.mxu0 0.0
    %3263 = vmatpush2.msra.mxu0 0.0
    %3264 = vmatprep.mubr.f32.mxu0 0.0
    %3265 = vmatmul.mubr.f32.gmra.mxu0 %v3003
    %v3266 = vpop.f32.mrf.mxu0
    %v3267 = vadd.f32 0.0, %v3266
    %v3268 = vpop.f32.mrf.mxu0
    %3269 = vdwg.mxu0
    %v3270 = vadd.f32 %v3195, %v3267
    %v3271 = vxor.u32 %v3270, 2147483648
    %v3272 = vmul.f32 %v3271, 1.442695
    %v3273 = vpow.pop %v3272
    %v3274 = vadd.f32 %v3273, 1.0
    %v3275 = vrcp.pop %v3274
    %v3276 = vmul.f32 1.0, %v3275
    %v3277 = vtanh.pop %v3270
    %v3278 = vmul.f32 %v3276, %v2989
    %3280 = vrot.lane.b32.xlu0 %v3277, 64
    %v3281 = vpop.permute.xlu0 %3280
    %v3283 = vmul.f32 %v3276, %v3281
    %3285 = vrot.lane.b32.xlu0 %v3283, 32
    %v3286 = vpop.permute.xlu0 %3285
    %v3288 = vadd.f32 %v3278, %v3286
    %v3289 = vtanh.pop %v3288
    %3291 = vrot.lane.b32.xlu0 %v3289, 64
    %v3292 = vpop.permute.xlu0 %3291
    %v3294 = vmul.f32 %v3276, %v3292
    %v3295 = vld [vmem:[%s8] sm:$0xff]
    %v3296 = vld [vmem:[%s8 + $0x8] sm:$0xff]
    %v3297 = vld [vmem:[%s8 + $0x10] sm:$0xff]
    %v3298 = vld [vmem:[%s8 + $0x18] sm:$0xff]
    %3300 = vrot.lane.b32.xlu0 %v3294, 32
    %v3301 = vpop.permute.xlu0 %3300
    %v3302 = vsel %vm54, %v3301, 0
    %3304 = vmatprep.subr.mxu0 0.0
    %3305 = vmatpush1.msra.mxu0 0.0
    %3306 = vmatprep.subr.mxu0 0.0
    %3307 = vmatpush1.msra.mxu0 0.0
    %3308 = vmatprep.subr.mxu0 0.0
    %3309 = vmatpush1.msra.mxu0 0.0
    %3310 = vmatprep.subr.mxu0 0.0
    %3311 = vmatpush1.msra.mxu0 0.0
    %3312 = vmatprep.subr.mxu0 0.0
    %3313 = vmatpush1.msra.mxu0 0.0
    %3314 = vmatprep.subr.mxu0 0.0
    %3315 = vmatpush1.msra.mxu0 0.0
    %3316 = vmatprep.subr.mxu0 0.0
    %3317 = vmatpush1.msra.mxu0 0.0
    %3318 = vmatprep.subr.mxu0 0.0
    %3319 = vmatpush1.msra.mxu0 0.0
    %3320 = vmatprep.subr.mxu0 0.0
    %3321 = vmatpush1.msra.mxu0 0.0
    %3322 = vmatprep.subr.mxu0 0.0
    %3323 = vmatpush1.msra.mxu0 0.0
    %3324 = vmatprep.subr.mxu0 0.0
    %3325 = vmatpush1.msra.mxu0 0.0
    %3326 = vmatprep.subr.mxu0 0.0
    %3327 = vmatpush1.msra.mxu0 0.0
    %3328 = vmatprep.subr.mxu0 0.0
    %3329 = vmatpush1.msra.mxu0 %v3298
    %3330 = vmatprep.subr.mxu0 0.0
    %3331 = vmatpush1.msra.mxu0 %v3297
    %3332 = vmatprep.subr.mxu0 0.0
    %3333 = vmatpush1.msra.mxu0 %v3296
    %3334 = vmatprep.subr.mxu0 0.0
    %3335 = vmatpush1.msra.mxu0 %v3295
    %3336 = vmatprep.subr.mxu0 0.0
    %3337 = vmatpush2.msra.mxu0 0.0
    %3338 = vmatprep.subr.mxu0 0.0
    %3339 = vmatpush2.msra.mxu0 0.0
    %3340 = vmatprep.subr.mxu0 0.0
    %3341 = vmatpush2.msra.mxu0 0.0
    %3342 = vmatprep.subr.mxu0 0.0
    %3343 = vmatpush2.msra.mxu0 0.0
    %3344 = vmatprep.subr.mxu0 0.0
    %3345 = vmatpush2.msra.mxu0 0.0
    %3346 = vmatprep.subr.mxu0 0.0
    %3347 = vmatpush2.msra.mxu0 0.0
    %3348 = vmatprep.subr.mxu0 0.0
    %3349 = vmatpush2.msra.mxu0 0.0
    %3350 = vmatprep.subr.mxu0 0.0
    %3351 = vmatpush2.msra.mxu0 0.0
    %3352 = vmatprep.subr.mxu0 0.0
    %3353 = vmatpush2.msra.mxu0 0.0
    %3354 = vmatprep.subr.mxu0 0.0
    %3355 = vmatpush2.msra.mxu0 0.0
    %3356 = vmatprep.subr.mxu0 0.0
    %3357 = vmatpush2.msra.mxu0 0.0
    %3358 = vmatprep.subr.mxu0 0.0
    %3359 = vmatpush2.msra.mxu0 0.0
    %3360 = vmatprep.subr.mxu0 0.0
    %3361 = vmatpush2.msra.mxu0 0.0
    %3362 = vmatprep.subr.mxu0 0.0
    %3363 = vmatpush2.msra.mxu0 0.0
    %3364 = vmatprep.subr.mxu0 0.0
    %3365 = vmatpush2.msra.mxu0 0.0
    %3366 = vmatprep.subr.mxu0 0.0
    %3367 = vmatpush2.msra.mxu0 0.0
    %3368 = vmatprep.mubr.f32.mxu0 0.0
    %3369 = vmatmul.mubr.f32.gmra.mxu0 %v3302
    %v3370 = vpop.f32.mrf.mxu0
    %v3371 = vadd.f32 %v1693, %v3370
    %v3372 = vpop.f32.mrf.mxu0
    %3373 = vdwg.mxu0
    %s3374 = scalar_lea.vmem [#allocation5], 48
    %3375 = vst [vmem:[%s3374] sm:$0xff] %v3371
    %s3376 = sld [smem:[#allocation2 + $0x6]]
    %p3377 = scmp.eq.s32.totalorder %s3376, 1
    // Predicated region
    $region86: #{seq2seq_forward.1} parent=1 // pred_check
      %p3378 = pneg %p3377
    $region87: #{seq2seq_forward.1} parent=1 // pred_check_branch
      %3380 = sbr.rel (%p3378) target = $region89
    $region88: #{seq2seq_forward.1} parent=1 // pred_region
      %s3381 = scalar_lea.vmem %s3, 48
      %v3382 = vld [vmem:[%s3381] sm:$0xff]
    $region89: #{seq2seq_forward.1} parent=1 // pred_fallthru
      %v3383 = vphi 0, %v3382
    %p3384 = pneg %p3377
    // Predicated region
    $region90: #{seq2seq_forward.1} parent=1 // pred_check
      _
    $region91: #{seq2seq_forward.1} parent=1 // pred_check_branch
      %3386 = sbr.rel (%p3377) target = $region93
    $region92: #{seq2seq_forward.1} parent=1 // pred_region
      %3387 = vmax.xlane.f32.xlu0 %v3371
      %v3388 = vpop.xlane.xlu0 %3387
      %vm3389 = vcmp.eq.f32.partialorder %v3371, %v3388
      %v3390 = vsel %vm3389, %v1687, 128
      %v3391 = vand.u32 %v3390, 65535
      %v3392 = vshra.s32 %v3390, 16
      %v3393 = vcvt.s32.f32 %v3391
      %v3394 = vcvt.s32.f32 %v3392
      %3395 = vmin.xlane.f32.xlu0 %v3394
      %v3396 = vpop.xlane.xlu0 %3395
      %vm3397 = vcmp.eq.f32.partialorder %v3394, %v3396
      %v3398 = vsel %vm3397, %v3393, inf
      %3399 = vmin.xlane.f32.xlu0 %v3398
      %v3400 = vpop.xlane.xlu0 %3399
      %v3401 = vcvt.f32.s32 %v3400
      %v3402 = vcvt.f32.s32 %v3396
      %v3403 = vshll.u32 %v3402, 16
      %v3404 = vadd.s32 %v3403, %v3401
      %vm3405 = vcmp.eq.s32.totalorder %v1687, %v3404
      %v3406 = vsel %vm3405, 1, 0
      %v3407 = vcvt.s32.f32 %v3406
      %v3408 = vld [vmem:[%s4] sm:$0xff]
      %v3409 = vld [vmem:[%s4 + $0x8] sm:$0xff]
      %v3410 = vld [vmem:[%s4 + $0x10] sm:$0xff]
      %v3411 = vld [vmem:[%s4 + $0x18] sm:$0xff]
      %v3412 = vld [vmem:[%s4 + $0x20] sm:$0xff]
      %v3413 = vld [vmem:[%s4 + $0x28] sm:$0xff]
      %v3414 = vld [vmem:[%s4 + $0x30] sm:$0xff]
      %v3415 = vld [vmem:[%s4 + $0x38] sm:$0xff]
      %v3416 = vld [vmem:[%s4 + $0x40] sm:$0xff]
      %v3417 = vld [vmem:[%s4 + $0x48] sm:$0xff]
      %v3418 = vld [vmem:[%s4 + $0x50] sm:$0xff]
      %v3419 = vld [vmem:[%s4 + $0x58] sm:$0xff]
      %v3420 = vld [vmem:[%s4 + $0x60] sm:$0xff]
      %v3421 = vld [vmem:[%s4 + $0x68] sm:$0xff]
      %v3422 = vld [vmem:[%s4 + $0x70] sm:$0xff]
      %v3423 = vld [vmem:[%s4 + $0x78] sm:$0xff]
      %3424 = vmatprep.subr.mxu0 0.0
      %3425 = vmatpush1.msra.mxu0 %v3423
      %3426 = vmatprep.subr.mxu0 0.0
      %3427 = vmatpush1.msra.mxu0 %v3422
      %3428 = vmatprep.subr.mxu0 0.0
      %3429 = vmatpush1.msra.mxu0 %v3421
      %3430 = vmatprep.subr.mxu0 0.0
      %3431 = vmatpush1.msra.mxu0 %v3420
      %3432 = vmatprep.subr.mxu0 0.0
      %3433 = vmatpush1.msra.mxu0 %v3419
      %3434 = vmatprep.subr.mxu0 0.0
      %3435 = vmatpush1.msra.mxu0 %v3418
      %3436 = vmatprep.subr.mxu0 0.0
      %3437 = vmatpush1.msra.mxu0 %v3417
      %3438 = vmatprep.subr.mxu0 0.0
      %3439 = vmatpush1.msra.mxu0 %v3416
      %3440 = vmatprep.subr.mxu0 0.0
      %3441 = vmatpush1.msra.mxu0 %v3415
      %3442 = vmatprep.subr.mxu0 0.0
      %3443 = vmatpush1.msra.mxu0 %v3414
      %3444 = vmatprep.subr.mxu0 0.0
      %3445 = vmatpush1.msra.mxu0 %v3413
      %3446 = vmatprep.subr.mxu0 0.0
      %3447 = vmatpush1.msra.mxu0 %v3412
      %3448 = vmatprep.subr.mxu0 0.0
      %3449 = vmatpush1.msra.mxu0 %v3411
      %3450 = vmatprep.subr.mxu0 0.0
      %3451 = vmatpush1.msra.mxu0 %v3410
      %3452 = vmatprep.subr.mxu0 0.0
      %3453 = vmatpush1.msra.mxu0 %v3409
      %3454 = vmatprep.subr.mxu0 0.0
      %3455 = vmatpush1.msra.mxu0 %v3408
      %3456 = vmatprep.subr.mxu0 0.0
      %3457 = vmatpush2.msra.mxu0 0.0
      %3458 = vmatprep.subr.mxu0 0.0
      %3459 = vmatpush2.msra.mxu0 0.0
      %3460 = vmatprep.subr.mxu0 0.0
      %3461 = vmatpush2.msra.mxu0 0.0
      %3462 = vmatprep.subr.mxu0 0.0
      %3463 = vmatpush2.msra.mxu0 0.0
      %3464 = vmatprep.subr.mxu0 0.0
      %3465 = vmatpush2.msra.mxu0 0.0
      %3466 = vmatprep.subr.mxu0 0.0
      %3467 = vmatpush2.msra.mxu0 0.0
      %3468 = vmatprep.subr.mxu0 0.0
      %3469 = vmatpush2.msra.mxu0 0.0
      %3470 = vmatprep.subr.mxu0 0.0
      %3471 = vmatpush2.msra.mxu0 0.0
      %3472 = vmatprep.subr.mxu0 0.0
      %3473 = vmatpush2.msra.mxu0 0.0
      %3474 = vmatprep.subr.mxu0 0.0
      %3475 = vmatpush2.msra.mxu0 0.0
      %3476 = vmatprep.subr.mxu0 0.0
      %3477 = vmatpush2.msra.mxu0 0.0
      %3478 = vmatprep.subr.mxu0 0.0
      %3479 = vmatpush2.msra.mxu0 0.0
      %3480 = vmatprep.subr.mxu0 0.0
      %3481 = vmatpush2.msra.mxu0 0.0
      %3482 = vmatprep.subr.mxu0 0.0
      %3483 = vmatpush2.msra.mxu0 0.0
      %3484 = vmatprep.subr.mxu0 0.0
      %3485 = vmatpush2.msra.mxu0 0.0
      %3486 = vmatprep.subr.mxu0 0.0
      %3487 = vmatpush2.msra.mxu0 0.0
      %3488 = vmatprep.mubr.f32.mxu0 0.0
      %3489 = vmatmul.mubr.f32.gmra.mxu0 %v3407
      %v3490 = vpop.f32.mrf.mxu0
      %v3491 = vadd.f32 0.0, %v3490
      %v3492 = vpop.f32.mrf.mxu0
      %3493 = vdwg.mxu0
    $region93: #{seq2seq_forward.1} parent=1 // pred_fallthru
      %v3494 = vphi %v3383, %v3491
    %v3495 = vld [vmem:[%s7] sm:$0xff]
    %v3496 = vld [vmem:[%s7 + $0x8] sm:$0xff]
    %v3497 = vld [vmem:[%s7 + $0x10] sm:$0xff]
    %v3498 = vld [vmem:[%s7 + $0x18] sm:$0xff]
    %3499 = vmatprep.subr.mxu0 0.0
    %3500 = vmatpush1.msra.mxu0 0.0
    %3501 = vmatprep.subr.mxu0 0.0
    %3502 = vmatpush1.msra.mxu0 0.0
    %3503 = vmatprep.subr.mxu0 0.0
    %3504 = vmatpush1.msra.mxu0 0.0
    %3505 = vmatprep.subr.mxu0 0.0
    %3506 = vmatpush1.msra.mxu0 0.0
    %3507 = vmatprep.subr.mxu0 0.0
    %3508 = vmatpush1.msra.mxu0 0.0
    %3509 = vmatprep.subr.mxu0 0.0
    %3510 = vmatpush1.msra.mxu0 0.0
    %3511 = vmatprep.subr.mxu0 0.0
    %3512 = vmatpush1.msra.mxu0 0.0
    %3513 = vmatprep.subr.mxu0 0.0
    %3514 = vmatpush1.msra.mxu0 0.0
    %3515 = vmatprep.subr.mxu0 0.0
    %3516 = vmatpush1.msra.mxu0 0.0
    %3517 = vmatprep.subr.mxu0 0.0
    %3518 = vmatpush1.msra.mxu0 0.0
    %3519 = vmatprep.subr.mxu0 0.0
    %3520 = vmatpush1.msra.mxu0 0.0
    %3521 = vmatprep.subr.mxu0 0.0
    %3522 = vmatpush1.msra.mxu0 0.0
    %3523 = vmatprep.subr.mxu0 0.0
    %3524 = vmatpush1.msra.mxu0 %v3498
    %3525 = vmatprep.subr.mxu0 0.0
    %3526 = vmatpush1.msra.mxu0 %v3497
    %3527 = vmatprep.subr.mxu0 0.0
    %3528 = vmatpush1.msra.mxu0 %v3496
    %3529 = vmatprep.subr.mxu0 0.0
    %3530 = vmatpush1.msra.mxu0 %v3495
    %3531 = vmatprep.subr.mxu0 0.0
    %3532 = vmatpush2.msra.mxu0 0.0
    %3533 = vmatprep.subr.mxu0 0.0
    %3534 = vmatpush2.msra.mxu0 0.0
    %3535 = vmatprep.subr.mxu0 0.0
    %3536 = vmatpush2.msra.mxu0 0.0
    %3537 = vmatprep.subr.mxu0 0.0
    %3538 = vmatpush2.msra.mxu0 0.0
    %3539 = vmatprep.subr.mxu0 0.0
    %3540 = vmatpush2.msra.mxu0 0.0
    %3541 = vmatprep.subr.mxu0 0.0
    %3542 = vmatpush2.msra.mxu0 0.0
    %3543 = vmatprep.subr.mxu0 0.0
    %3544 = vmatpush2.msra.mxu0 0.0
    %3545 = vmatprep.subr.mxu0 0.0
    %3546 = vmatpush2.msra.mxu0 0.0
    %3547 = vmatprep.subr.mxu0 0.0
    %3548 = vmatpush2.msra.mxu0 0.0
    %3549 = vmatprep.subr.mxu0 0.0
    %3550 = vmatpush2.msra.mxu0 0.0
    %3551 = vmatprep.subr.mxu0 0.0
    %3552 = vmatpush2.msra.mxu0 0.0
    %3553 = vmatprep.subr.mxu0 0.0
    %3554 = vmatpush2.msra.mxu0 0.0
    %3555 = vmatprep.subr.mxu0 0.0
    %3556 = vmatpush2.msra.mxu0 0.0
    %3557 = vmatprep.subr.mxu0 0.0
    %3558 = vmatpush2.msra.mxu0 0.0
    %3559 = vmatprep.subr.mxu0 0.0
    %3560 = vmatpush2.msra.mxu0 0.0
    %3561 = vmatprep.subr.mxu0 0.0
    %3562 = vmatpush2.msra.mxu0 0.0
    %3563 = vmatprep.mubr.f32.mxu0 0.0
    %3564 = vmatmul.mubr.f32.gmra.mxu0 %v3302
    %v3565 = vpop.f32.mrf.mxu0
    %v3566 = vadd.f32 0.0, %v3565
    %v3567 = vpop.f32.mrf.mxu0
    %3568 = vdwg.mxu0
    %v3569 = vadd.f32 %v3494, %v3566
    %v3570 = vxor.u32 %v3569, 2147483648
    %v3571 = vmul.f32 %v3570, 1.442695
    %v3572 = vpow.pop %v3571
    %v3573 = vadd.f32 %v3572, 1.0
    %v3574 = vrcp.pop %v3573
    %v3575 = vmul.f32 1.0, %v3574
    %v3576 = vtanh.pop %v3569
    %v3577 = vmul.f32 %v3575, %v3288
    %3579 = vrot.lane.b32.xlu0 %v3576, 64
    %v3580 = vpop.permute.xlu0 %3579
    %v3582 = vmul.f32 %v3575, %v3580
    %3584 = vrot.lane.b32.xlu0 %v3582, 32
    %v3585 = vpop.permute.xlu0 %3584
    %v3587 = vadd.f32 %v3577, %v3585
    %v3588 = vtanh.pop %v3587
    %3590 = vrot.lane.b32.xlu0 %v3588, 64
    %v3591 = vpop.permute.xlu0 %3590
    %v3593 = vmul.f32 %v3575, %v3591
    %v3594 = vld [vmem:[%s8] sm:$0xff]
    %v3595 = vld [vmem:[%s8 + $0x8] sm:$0xff]
    %v3596 = vld [vmem:[%s8 + $0x10] sm:$0xff]
    %v3597 = vld [vmem:[%s8 + $0x18] sm:$0xff]
    %3599 = vrot.lane.b32.xlu0 %v3593, 32
    %v3600 = vpop.permute.xlu0 %3599
    %v3601 = vsel %vm54, %v3600, 0
    %3603 = vmatprep.subr.mxu0 0.0
    %3604 = vmatpush1.msra.mxu0 0.0
    %3605 = vmatprep.subr.mxu0 0.0
    %3606 = vmatpush1.msra.mxu0 0.0
    %3607 = vmatprep.subr.mxu0 0.0
    %3608 = vmatpush1.msra.mxu0 0.0
    %3609 = vmatprep.subr.mxu0 0.0
    %3610 = vmatpush1.msra.mxu0 0.0
    %3611 = vmatprep.subr.mxu0 0.0
    %3612 = vmatpush1.msra.mxu0 0.0
    %3613 = vmatprep.subr.mxu0 0.0
    %3614 = vmatpush1.msra.mxu0 0.0
    %3615 = vmatprep.subr.mxu0 0.0
    %3616 = vmatpush1.msra.mxu0 0.0
    %3617 = vmatprep.subr.mxu0 0.0
    %3618 = vmatpush1.msra.mxu0 0.0
    %3619 = vmatprep.subr.mxu0 0.0
    %3620 = vmatpush1.msra.mxu0 0.0
    %3621 = vmatprep.subr.mxu0 0.0
    %3622 = vmatpush1.msra.mxu0 0.0
    %3623 = vmatprep.subr.mxu0 0.0
    %3624 = vmatpush1.msra.mxu0 0.0
    %3625 = vmatprep.subr.mxu0 0.0
    %3626 = vmatpush1.msra.mxu0 0.0
    %3627 = vmatprep.subr.mxu0 0.0
    %3628 = vmatpush1.msra.mxu0 %v3597
    %3629 = vmatprep.subr.mxu0 0.0
    %3630 = vmatpush1.msra.mxu0 %v3596
    %3631 = vmatprep.subr.mxu0 0.0
    %3632 = vmatpush1.msra.mxu0 %v3595
    %3633 = vmatprep.subr.mxu0 0.0
    %3634 = vmatpush1.msra.mxu0 %v3594
    %3635 = vmatprep.subr.mxu0 0.0
    %3636 = vmatpush2.msra.mxu0 0.0
    %3637 = vmatprep.subr.mxu0 0.0
    %3638 = vmatpush2.msra.mxu0 0.0
    %3639 = vmatprep.subr.mxu0 0.0
    %3640 = vmatpush2.msra.mxu0 0.0
    %3641 = vmatprep.subr.mxu0 0.0
    %3642 = vmatpush2.msra.mxu0 0.0
    %3643 = vmatprep.subr.mxu0 0.0
    %3644 = vmatpush2.msra.mxu0 0.0
    %3645 = vmatprep.subr.mxu0 0.0
    %3646 = vmatpush2.msra.mxu0 0.0
    %3647 = vmatprep.subr.mxu0 0.0
    %3648 = vmatpush2.msra.mxu0 0.0
    %3649 = vmatprep.subr.mxu0 0.0
    %3650 = vmatpush2.msra.mxu0 0.0
    %3651 = vmatprep.subr.mxu0 0.0
    %3652 = vmatpush2.msra.mxu0 0.0
    %3653 = vmatprep.subr.mxu0 0.0
    %3654 = vmatpush2.msra.mxu0 0.0
    %3655 = vmatprep.subr.mxu0 0.0
    %3656 = vmatpush2.msra.mxu0 0.0
    %3657 = vmatprep.subr.mxu0 0.0
    %3658 = vmatpush2.msra.mxu0 0.0
    %3659 = vmatprep.subr.mxu0 0.0
    %3660 = vmatpush2.msra.mxu0 0.0
    %3661 = vmatprep.subr.mxu0 0.0
    %3662 = vmatpush2.msra.mxu0 0.0
    %3663 = vmatprep.subr.mxu0 0.0
    %3664 = vmatpush2.msra.mxu0 0.0
    %3665 = vmatprep.subr.mxu0 0.0
    %3666 = vmatpush2.msra.mxu0 0.0
    %3667 = vmatprep.mubr.f32.mxu0 0.0
    %3668 = vmatmul.mubr.f32.gmra.mxu0 %v3601
    %v3669 = vpop.f32.mrf.mxu0
    %v3670 = vadd.f32 %v1693, %v3669
    %v3671 = vpop.f32.mrf.mxu0
    %3672 = vdwg.mxu0
    %s3673 = scalar_lea.vmem [#allocation5], 56
    %3674 = vst [vmem:[%s3673] sm:$0xff] %v3670
    // Predicated region
    $region94: #{seq2seq_forward.1} parent=1 // pred_check
      _
    $region95: #{seq2seq_forward.1} parent=1 // pred_check_branch
      %3676 = sbr.rel (0) target = $region97
    $region96: #{seq2seq_forward.1} parent=1 // pred_region
      %s3678 = ssub.s32 1024, 1024
      %3679 = vsyncadd [#allocation3], %s3678
      %s3680 = sshll.u32 [#allocation5], 4
      %s3681 = int_to_ptr.vmem [resolvable:$true] %s3680
      %3686 = dma.vmem_to_hbm [thread:$0]  %s3681, 1024, %s10, [#allocation3], 128, 128, 8
    $region97: #{seq2seq_forward.1} parent=1 // pred_fallthru
      _
    // Predicated region
    $region98: #{seq2seq_forward.1} parent=1 // pred_check
      _
    $region99: #{seq2seq_forward.1} parent=1 // pred_check_branch
      %3688 = sbr.rel (0) target = $region101
    $region100: #{seq2seq_forward.1} parent=1 // pred_region
      %3689 = dma.done [#allocation3], 1024
    $region101: #{seq2seq_forward.1} parent=1 // pred_fallthru
      _
    %3690 = vsyncpa [#allocation3], 1
    %3691 = vsyncpa [#allocation4], 1

</llo_original>
